<compile_context>
chip_gen: v6e
topology: v6e:2x2x1
jax: 0.10.0
libtpu: 0.0.40
codegen_flags: <defaults>
</compile_context>

<pallas_src>
import functools

import numpy as np
import jax
import jax.numpy as jnp
from jax.experimental import pallas as pl
from jax.experimental.pallas import tpu as pltpu


# ----------------------------------------------------------------------------
# Pallas kernel (entire ObservationEncoder forward pass)
# ----------------------------------------------------------------------------
def _cnn_path(x, a1_ref, s1_ref, a2_ref, s2_ref, wl_ref, bl_ref):
    """Fused conv+BN+ReLU+pool (x2) + final linear.

    x: (TM, Cin*S*S) flat images.  a*_ref: (4, rows, cols) per-pool-corner folded
    conv matrices, s*_ref: (1, cols) folded shifts.  Everything stays in VMEM.
    """
    p1 = None
    for k in range(4):  # 4 corners of each 2x2 pooling window
        h = jnp.dot(x, a1_ref[k], preferred_element_type=jnp.float32) + s1_ref[...]
        h = jnp.maximum(h, 0.0)
        p1 = h if p1 is None else jnp.maximum(p1, h)
    p2 = None
    for k in range(4):
        h = jnp.dot(p1, a2_ref[k], preferred_element_type=jnp.float32) + s2_ref[...]
        h = jnp.maximum(h, 0.0)
        p2 = h if p2 is None else jnp.maximum(p2, h)
    return jnp.dot(p2, wl_ref[...], preferred_element_type=jnp.float32) + bl_ref[...]


def _obs_encoder_kernel(
    # row-blocked inputs
    xg_ref, xb1_ref, xb2_ref, xb3_ref,
    # grid CNN (folded)
    ga1_ref, gs1_ref, ga2_ref, gs2_ref, gwl_ref, gbl_ref,
    # block CNN (folded, shared by the 3 blocks)
    ba1_ref, bs1_ref, ba2_ref, bs2_ref, bwl_ref, bbl_ref,
    # ResidualMLP: input linear split per encoder (avoids a lane concat)
    wing_ref, winb1_ref, winb2_ref, winb3_ref, bin_ref,
    # stacked hidden layers: (L,256,256), (L,1,256) x3
    wh_ref, bh_ref, gh_ref, betah_ref,
    # output linear
    wout_ref, bout_ref,
    # output
    out_ref,
):
    g_enc = _cnn_path(xg_ref[...], ga1_ref, gs1_ref, ga2_ref, gs2_ref, gwl_ref, gbl_ref)
    e1 = _cnn_path(xb1_ref[...], ba1_ref, bs1_ref, ba2_ref, bs2_ref, bwl_ref, bbl_ref)
    e2 = _cnn_path(xb2_ref[...], ba1_ref, bs1_ref, ba2_ref, bs2_ref, bwl_ref, bbl_ref)
    e3 = _cnn_path(xb3_ref[...], ba1_ref, bs1_ref, ba2_ref, bs2_ref, bwl_ref, bbl_ref)

    # Input linear of the ResidualMLP, with the 128-wide concat folded away.
    h = (jnp.dot(g_enc, wing_ref[...], preferred_element_type=jnp.float32)
         + jnp.dot(e1, winb1_ref[...], preferred_element_type=jnp.float32)
         + jnp.dot(e2, winb2_ref[...], preferred_element_type=jnp.float32)
         + jnp.dot(e3, winb3_ref[...], preferred_element_type=jnp.float32)
         + bin_ref[...])

    num_hidden = wh_ref.shape[0]
    for i in range(num_hidden):  # static unroll: Linear + LayerNorm + ReLU + residual
        z = jnp.dot(h, wh_ref[i], preferred_element_type=jnp.float32) + bh_ref[i]
        mean = jnp.mean(z, axis=-1, keepdims=True)
        cent = z - mean
        var = jnp.mean(cent * cent, axis=-1, keepdims=True)
        zn = cent * jax.lax.rsqrt(var + 1e-5) * gh_ref[i] + betah_ref[i]
        h = h + jnp.maximum(zn, 0.0)

    out_ref[...] = (jnp.dot(h, wout_ref[...], preferred_element_type=jnp.float32)
                    + bout_ref[...]).astype(out_ref.dtype)


# ----------------------------------------------------------------------------
# pallas_call wrapper
# ----------------------------------------------------------------------------
def _row_spec(tm, cols):
    return pl.BlockSpec((tm, cols), lambda i: (i, 0))


def _bcast_spec(arr):
    zeros = (0,) * arr.ndim
    return pl.BlockSpec(arr.shape, lambda i: zeros)


@functools.partial(jax.jit, static_argnames=("grid_side", "block_side"))
def observation_encoder(state, folded, grid_side=10, block_side=5):
    """state: (B, T, grid_side^2 + 3*block_side^2) -> (B, T, out_dim)."""
    B, T, _ = state.shape
    N = B * T
    gl = grid_side * grid_side
    bl = block_side * block_side

    s2d = state.reshape(N, -1).astype(jnp.float32)
    xg = s2d[:, :gl]
    xb1 = s2d[:, gl:gl + bl]
    xb2 = s2d[:, gl + bl:gl + 2 * bl]
    xb3 = s2d[:, gl + 2 * bl:gl + 3 * bl]

    # Row tiling over N: full batch per step while it fits, 128-row tiles beyond
    # that (keeps VMEM bounded on v7x, and the "parallel" axis feeds both TCs).
    tm = N if N <= 128 else 128
    grid = (pl.cdiv(N, tm),)

    g, b, m = folded["grid"], folded["block"], folded["mlp"]
    weight_args = [
        g["a1"], g["s1"], g["a2"], g["s2"], g["wl"], g["bl"],
        b["a1"], b["s1"], b["a2"], b["s2"], b["wl"], b["bl"],
        m["win_g"], m["win_b1"], m["win_b2"], m["win_b3"], m["b_in"],
        m["wh"], m["bh"], m["gh"], m["betah"],
        m["w_out"], m["b_out"],
    ]
    args = [xg, xb1, xb2, xb3] + weight_args
    in_specs = [_row_spec(tm, gl), _row_spec(tm, bl), _row_spec(tm, bl), _row_spec(tm, bl)]
    in_specs += [_bcast_spec(a) for a in weight_args]

    out_dim = m["w_out"].shape[1]
    out = pl.pallas_call(
        _obs_encoder_kernel,
        out_shape=jax.ShapeDtypeStruct((N, out_dim), jnp.float32),
        grid=grid,
        in_specs=in_specs,
        out_specs=_row_spec(tm, out_dim),
        compiler_params=pltpu.CompilerParams(dimension_semantics=("parallel",)),
    )(*args)
    return out.reshape(B, T, out_dim)


# ----------------------------------------------------------------------------
# Host-side folding of (conv + BN + ReLU + maxpool) into per-corner matrices
# ----------------------------------------------------------------------------
def _fold_bn(conv_b, gamma, beta, mean, var, eps=1e-5):
    conv_b, gamma, beta, mean, var = (
        np.asarray(a, np.float32) for a in (conv_b, gamma, beta, mean, var))
    scale = gamma / np.sqrt(var + eps)
    shift = (conv_b - mean) * scale + beta
    return scale, shift


def _conv_pool_matrix(w, scale, shift, side):
    """Build per-pool-corner dense matrices for conv3x3(pad=1) -> BN -> pool corner.

    w: (Cout, Cin, 3, 3) PyTorch layout.  Input flat layout: row = ci*S*S + i*S + j
    (NCHW flatten).  Output flat layout: col = co*Ho*Ho + oi*Ho + oj (NCHW flatten),
    so the final nn.Linear operates on exactly PyTorch's Flatten() ordering.
    """
    w = np.asarray(w, np.float32)
    c_out, c_in, _, _ = w.shape
    ho = side // 2  # floor-mode pool drops the trailing row/col of odd maps
    a = np.zeros((4, c_in * side * side, c_out * ho * ho), np.float32)
    for k, (di, dj) in enumerate(((0, 0), (0, 1), (1, 0), (1, 1))):
        for co in range(c_out):
            for oi in range(ho):
                for oj in range(ho):
                    col = co * ho * ho + oi * ho + oj
                    pi, pj = 2 * oi + di, 2 * oj + dj  # conv-output pixel of this corner
                    for ci in range(c_in):
                        for ti in range(3):
                            for tj in range(3):
                                ii, jj = pi + ti - 1, pj + tj - 1
                                if 0 <= ii < side and 0 <= jj < side:
                                    row = ci * side * side + ii * side + jj
                                    a[k, row, col] += w[co, ci, ti, tj] * scale[co]
    shift_cols = np.repeat(np.asarray(shift, np.float32), ho * ho).reshape(1, -1)
    return jnp.asarray(a), jnp.asarray(shift_cols)


def _fold_cnn(raw, side):
    s1, t1 = _fold_bn(raw["b1"], raw["g1"], raw["be1"], raw["m1"], raw["v1"])
    s2, t2 = _fold_bn(raw["b2"], raw["g2"], raw["be2"], raw["m2"], raw["v2"])
    a1, sh1 = _conv_pool_matrix(raw["w1"], s1, t1, side)
    a2, sh2 = _conv_pool_matrix(raw["w2"], s2, t2, side // 2)
    return dict(a1=a1, s1=sh1, a2=a2, s2=sh2,
                wl=jnp.asarray(raw["wl"], jnp.float32),
                bl=jnp.asarray(raw["bl"], jnp.float32).reshape(1, -1))


def _fold_mlp(raw, grid_out, block_out):
    w_in = jnp.asarray(raw["w_in"], jnp.float32)
    return dict(
        win_g=w_in[:grid_out],
        win_b1=w_in[grid_out:grid_out + block_out],
        win_b2=w_in[grid_out + block_out:grid_out + 2 * block_out],
        win_b3=w_in[grid_out + 2 * block_out:],
        b_in=jnp.asarray(raw["b_in"], jnp.float32).reshape(1, -1),
        wh=jnp.stack([jnp.asarray(l["w"], jnp.float32) for l in raw["hidden"]]),
        bh=jnp.stack([jnp.asarray(l["b"], jnp.float32).reshape(1, -1) for l in raw["hidden"]]),
        gh=jnp.stack([jnp.asarray(l["g"], jnp.float32).reshape(1, -1) for l in raw["hidden"]]),
        betah=jnp.stack([jnp.asarray(l["beta"], jnp.float32).reshape(1, -1) for l in raw["hidden"]]),
        w_out=jnp.asarray(raw["w_out"], jnp.float32),
        b_out=jnp.asarray(raw["b_out"], jnp.float32).reshape(1, -1),
    )


def fold_params(raw, grid_side=10, block_side=5):
    grid_out = raw["grid"]["wl"].shape[1]
    block_out = raw["block"]["wl"].shape[1]
    return dict(grid=_fold_cnn(raw["grid"], grid_side),
                block=_fold_cnn(raw["block"], block_side),
                mlp=_fold_mlp(raw["mlp"], grid_out, block_out))


# ----------------------------------------------------------------------------
# Deterministic synthetic parameters (PyTorch layouts, no checkpoint loading)
# ----------------------------------------------------------------------------
def init_raw_cnn_params(key, side, out_dim):
    ks = jax.random.split(key, 14)
    flat_dim = ((side // 2) // 2) ** 2 * 16
    return dict(
        w1=0.3 * jax.random.normal(ks[0], (8, 1, 3, 3), jnp.float32),
        b1=0.1 * jax.random.normal(ks[1], (8,), jnp.float32),
        g1=jax.random.uniform(ks[2], (8,), jnp.float32, 0.5, 1.5),
        be1=0.1 * jax.random.normal(ks[3], (8,), jnp.float32),
        m1=0.1 * jax.random.normal(ks[4], (8,), jnp.float32),
        v1=jax.random.uniform(ks[5], (8,), jnp.float32, 0.5, 1.5),
        w2=0.2 * jax.random.normal(ks[6], (16, 8, 3, 3), jnp.float32),
        b2=0.1 * jax.random.normal(ks[7], (16,), jnp.float32),
        g2=jax.random.uniform(ks[8], (16,), jnp.float32, 0.5, 1.5),
        be2=0.1 * jax.random.normal(ks[9], (16,), jnp.float32),
        m2=0.1 * jax.random.normal(ks[10], (16,), jnp.float32),
        v2=jax.random.uniform(ks[11], (16,), jnp.float32, 0.5, 1.5),
        wl=0.1 * jax.random.normal(ks[12], (flat_dim, out_dim), jnp.float32),
        bl=0.1 * jax.random.normal(ks[13], (out_dim,), jnp.float32),
    )


def init_raw_mlp_params(key, in_dim, hidden_dim, out_dim, num_hidden=2):
    ks = jax.random.split(key, 4 + num_hidden)
    limit = (6.0 / (hidden_dim + hidden_dim)) ** 0.5  # xavier_uniform
    hidden = []
    for i in range(num_hidden):
        hidden.append(dict(
            w=jax.random.uniform(ks[2 + i], (hidden_dim, hidden_dim), jnp.float32, -limit, limit),
            b=jnp.zeros((hidden_dim,), jnp.float32),
            g=jnp.ones((hidden_dim,), jnp.float32),      # LayerNorm weight
            beta=jnp.zeros((hidden_dim,), jnp.float32),  # LayerNorm bias
        ))
    return dict(
        w_in=0.1 * jax.random.normal(ks[0], (in_dim, hidden_dim), jnp.float32),
        b_in=0.05 * jax.random.normal(ks[1], (hidden_dim,), jnp.float32),
        hidden=hidden,
        w_out=0.1 * jax.random.normal(ks[2 + num_hidden], (hidden_dim, out_dim), jnp.float32),
        b_out=0.05 * jax.random.normal(ks[3 + num_hidden], (out_dim,), jnp.float32),
    )


def init_raw_params(key, grid_side=10, block_side=5, grid_out=80, block_out=16,
                    mlp_hidden=256, mlp_out=32, num_hidden=2):
    kg, kb, km = jax.random.split(key, 3)
    return dict(
        grid=init_raw_cnn_params(kg, grid_side, grid_out),
        block=init_raw_cnn_params(kb, block_side, block_out),
        mlp=init_raw_mlp_params(km, grid_out + 3 * block_out, mlp_hidden, mlp_out, num_hidden),
    )


# ----------------------------------------------------------------------------
# Pure-JAX reference (mirrors the PyTorch module, eval-mode BN)
# ----------------------------------------------------------------------------
def _ref_cnn(x_nchw, p):
    hp = jax.lax.Precision.HIGHEST

    def bn(y, g, be, m, v):
        inv = (g / jnp.sqrt(v + 1e-5)).reshape(1, -1, 1, 1)
        return (y - m.reshape(1, -1, 1, 1)) * inv + be.reshape(1, -1, 1, 1)

    y = jax.lax.conv_general_dilated(x_nchw, p["w1"], (1, 1), ((1, 1), (1, 1)),
                                     dimension_numbers=("NCHW", "OIHW", "NCHW"),
                                     precision=hp)
    y = jnp.maximum(bn(y + p["b1"].reshape(1, -1, 1, 1), p["g1"], p["be1"], p["m1"], p["v1"]), 0.0)
    y = jax.lax.reduce_window(y, -jnp.inf, jax.lax.max, (1, 1, 2, 2), (1, 1, 2, 2), "VALID")
    y = jax.lax.conv_general_dilated(y, p["w2"], (1, 1), ((1, 1), (1, 1)),
                                     dimension_numbers=("NCHW", "OIHW", "NCHW"),
                                     precision=hp)
    y = jnp.maximum(bn(y + p["b2"].reshape(1, -1, 1, 1), p["g2"], p["be2"], p["m2"], p["v2"]), 0.0)
    y = jax.lax.reduce_window(y, -jnp.inf, jax.lax.max, (1, 1, 2, 2), (1, 1, 2, 2), "VALID")
    flat = y.reshape(y.shape[0], -1)
    return jnp.dot(flat, p["wl"], precision=hp) + p["bl"]


def _ref_mlp(x, p):
    hp = jax.lax.Precision.HIGHEST
    h = jnp.dot(x, p["w_in"], precision=hp) + p["b_in"]
    for layer in p["hidden"]:
        z = jnp.dot(h, layer["w"], precision=hp) + layer["b"]
        mean = z.mean(-1, keepdims=True)
        var = ((z - mean) ** 2).mean(-1, keepdims=True)
        zn = (z - mean) * jax.lax.rsqrt(var + 1e-5) * layer["g"] + layer["beta"]
        h = h + jnp.maximum(zn, 0.0)
    return jnp.dot(h, p["w_out"], precision=hp) + p["b_out"]


def _ref_observation_encoder(state, raw, grid_side=10, block_side=5):
    B, T, _ = state.shape
    N = B * T
    gl, bl = grid_side * grid_side, block_side * block_side
    s2d = state.reshape(N, -1)
    grids = s2d[:, :gl].reshape(N, 1, grid_side, grid_side)
    b1 = s2d[:, gl:gl + bl].reshape(N, 1, block_side, block_side)
    b2 = s2d[:, gl + bl:gl + 2 * bl].reshape(N, 1, block_side, block_side)
    b3 = s2d[:, gl + 2 * bl:gl + 3 * bl].reshape(N, 1, block_side, block_side)
    enc = jnp.concatenate([_ref_cnn(grids, raw["grid"]),
                           _ref_cnn(b1, raw["block"]),
                           _ref_cnn(b2, raw["block"]),
                           _ref_cnn(b3, raw["block"])], axis=-1)
    return _ref_mlp(enc, raw["mlp"]).reshape(B, T, -1)


# ----------------------------------------------------------------------------
if __name__ == "__main__":
    key = jax.random.PRNGKey(0)
    kp, kx = jax.random.split(key)

    B, T = 2, 8
    grid_side, block_side = 10, 5
    state_dim = grid_side * grid_side + 3 * block_side * block_side  # 175
    out_dim = 32

    raw = init_raw_params(kp, grid_side=grid_side, block_side=block_side,
                          grid_out=80, block_out=16, mlp_hidden=256, mlp_out=out_dim)
    folded = fold_params(raw, grid_side=grid_side, block_side=block_side)
    state = jax.random.normal(kx, (B, T, state_dim), dtype=jnp.float32)

    out = observation_encoder(state, folded, grid_side=grid_side, block_side=block_side)
    out = jax.block_until_ready(out)

    assert out.shape == (B, T, out_dim), out.shape
    assert bool(jnp.all(jnp.isfinite(out)))

    ref = _ref_observation_encoder(state, raw, grid_side, block_side)
    max_err = float(jnp.max(jnp.abs(out - ref)))
    assert max_err < 5e-2, f"mismatch vs pure-JAX reference: max abs err {max_err}"

    print("KERNEL_OK")
</pallas_src>

<mosaic_0001>
module attributes {stable_mosaic.version = 11 : i64} {
  func.func @_obs_encoder_kernel(%arg0: i32, %arg1: memref<16x100xf32, #tpu.memory_space<vmem>>, %arg2: memref<16x25xf32, #tpu.memory_space<vmem>>, %arg3: memref<16x25xf32, #tpu.memory_space<vmem>>, %arg4: memref<16x25xf32, #tpu.memory_space<vmem>>, %arg5: memref<4x100x200xf32, #tpu.memory_space<vmem>>, %arg6: memref<1x200xf32, #tpu.memory_space<vmem>>, %arg7: memref<4x200x64xf32, #tpu.memory_space<vmem>>, %arg8: memref<1x64xf32, #tpu.memory_space<vmem>>, %arg9: memref<64x80xf32, #tpu.memory_space<vmem>>, %arg10: memref<1x80xf32, #tpu.memory_space<vmem>>, %arg11: memref<4x25x32xf32, #tpu.memory_space<vmem>>, %arg12: memref<1x32xf32, #tpu.memory_space<vmem>>, %arg13: memref<4x32x16xf32, #tpu.memory_space<vmem>>, %arg14: memref<1x16xf32, #tpu.memory_space<vmem>>, %arg15: memref<16x16xf32, #tpu.memory_space<vmem>>, %arg16: memref<1x16xf32, #tpu.memory_space<vmem>>, %arg17: memref<80x256xf32, #tpu.memory_space<vmem>>, %arg18: memref<16x256xf32, #tpu.memory_space<vmem>>, %arg19: memref<16x256xf32, #tpu.memory_space<vmem>>, %arg20: memref<16x256xf32, #tpu.memory_space<vmem>>, %arg21: memref<1x256xf32, #tpu.memory_space<vmem>>, %arg22: memref<2x256x256xf32, #tpu.memory_space<vmem>>, %arg23: memref<2x1x256xf32, #tpu.memory_space<vmem>>, %arg24: memref<2x1x256xf32, #tpu.memory_space<vmem>>, %arg25: memref<2x1x256xf32, #tpu.memory_space<vmem>>, %arg26: memref<256x32xf32, #tpu.memory_space<vmem>>, %arg27: memref<1x32xf32, #tpu.memory_space<vmem>>, %arg28: memref<16x32xf32, #tpu.memory_space<vmem>>) attributes {dimension_semantics = [#tpu.dimension_semantics<parallel>], iteration_bounds = array<i64: 1>, scalar_prefetch = 0 : i64, scratch_operands = 0 : i64, tpu.core_type = #tpu.core_type<tc>, window_params = [{transform_indices = @transform_0, window_bounds = array<i64: 16, 100>}, {transform_indices = @transform_1, window_bounds = array<i64: 16, 25>}, {transform_indices = @transform_2, window_bounds = array<i64: 16, 25>}, {transform_indices = @transform_3, window_bounds = array<i64: 16, 25>}, {pipeline_mode = #tpu.pipeline_mode<synchronous>, transform_indices = @transform_4, window_bounds = array<i64: 4, 100, 200>}, {pipeline_mode = #tpu.pipeline_mode<synchronous>, transform_indices = @transform_5, window_bounds = array<i64: 1, 200>}, {pipeline_mode = #tpu.pipeline_mode<synchronous>, transform_indices = @transform_6, window_bounds = array<i64: 4, 200, 64>}, {pipeline_mode = #tpu.pipeline_mode<synchronous>, transform_indices = @transform_7, window_bounds = array<i64: 1, 64>}, {pipeline_mode = #tpu.pipeline_mode<synchronous>, transform_indices = @transform_8, window_bounds = array<i64: 64, 80>}, {pipeline_mode = #tpu.pipeline_mode<synchronous>, transform_indices = @transform_9, window_bounds = array<i64: 1, 80>}, {pipeline_mode = #tpu.pipeline_mode<synchronous>, transform_indices = @transform_10, window_bounds = array<i64: 4, 25, 32>}, {pipeline_mode = #tpu.pipeline_mode<synchronous>, transform_indices = @transform_11, window_bounds = array<i64: 1, 32>}, {pipeline_mode = #tpu.pipeline_mode<synchronous>, transform_indices = @transform_12, window_bounds = array<i64: 4, 32, 16>}, {pipeline_mode = #tpu.pipeline_mode<synchronous>, transform_indices = @transform_13, window_bounds = array<i64: 1, 16>}, {pipeline_mode = #tpu.pipeline_mode<synchronous>, transform_indices = @transform_14, window_bounds = array<i64: 16, 16>}, {pipeline_mode = #tpu.pipeline_mode<synchronous>, transform_indices = @transform_15, window_bounds = array<i64: 1, 16>}, {pipeline_mode = #tpu.pipeline_mode<synchronous>, transform_indices = @transform_16, window_bounds = array<i64: 80, 256>}, {pipeline_mode = #tpu.pipeline_mode<synchronous>, transform_indices = @transform_17, window_bounds = array<i64: 16, 256>}, {pipeline_mode = #tpu.pipeline_mode<synchronous>, transform_indices = @transform_18, window_bounds = array<i64: 16, 256>}, {pipeline_mode = #tpu.pipeline_mode<synchronous>, transform_indices = @transform_19, window_bounds = array<i64: 16, 256>}, {pipeline_mode = #tpu.pipeline_mode<synchronous>, transform_indices = @transform_20, window_bounds = array<i64: 1, 256>}, {pipeline_mode = #tpu.pipeline_mode<synchronous>, transform_indices = @transform_21, window_bounds = array<i64: 2, 256, 256>}, {pipeline_mode = #tpu.pipeline_mode<synchronous>, transform_indices = @transform_22, window_bounds = array<i64: 2, 1, 256>}, {pipeline_mode = #tpu.pipeline_mode<synchronous>, transform_indices = @transform_23, window_bounds = array<i64: 2, 1, 256>}, {pipeline_mode = #tpu.pipeline_mode<synchronous>, transform_indices = @transform_24, window_bounds = array<i64: 2, 1, 256>}, {pipeline_mode = #tpu.pipeline_mode<synchronous>, transform_indices = @transform_25, window_bounds = array<i64: 256, 32>}, {pipeline_mode = #tpu.pipeline_mode<synchronous>, transform_indices = @transform_26, window_bounds = array<i64: 1, 32>}, {transform_indices = @transform_27, window_bounds = array<i64: 16, 32>}]} {
    %c0 = arith.constant 0 : index
    %c0_0 = arith.constant 0 : index
    %0 = vector.load %arg1[%c0, %c0_0] : memref<16x100xf32, #tpu.memory_space<vmem>>, vector<16x100xf32>
    %c0_1 = arith.constant 0 : index
    %c0_2 = arith.constant 0 : index
    %c0_3 = arith.constant 0 : index
    %1 = vector.load %arg5[%c0_1, %c0_2, %c0_3] : memref<4x100x200xf32, #tpu.memory_space<vmem>>, vector<1x100x200xf32>
    %2 = vector.shape_cast %1 : vector<1x100x200xf32> to vector<100x200xf32>
    %cst = arith.constant dense<0.000000e+00> : vector<16x200xf32>
    %3 = tpu.matmul %0, %2, %cst {dimension_numbers = #tpu.dot_dimension_numbers<[1], [0], [0], [1], [0, 0, 1, 1], [], []>} : vector<16x100xf32>, vector<100x200xf32>, vector<16x200xf32> -> vector<16x200xf32>
    %c0_4 = arith.constant 0 : index
    %c0_5 = arith.constant 0 : index
    %4 = vector.load %arg6[%c0_4, %c0_5] : memref<1x200xf32, #tpu.memory_space<vmem>>, vector<1x200xf32>
    %5 = vector.broadcast %4 : vector<1x200xf32> to vector<16x200xf32>
    %6 = arith.addf %3, %5 : vector<16x200xf32>
    %cst_6 = arith.constant 0.000000e+00 : f32
    %7 = vector.broadcast %cst_6 : f32 to vector<16x200xf32>
    %8 = arith.maximumf %6, %7 : vector<16x200xf32>
    %c1 = arith.constant 1 : index
    %c0_7 = arith.constant 0 : index
    %c0_8 = arith.constant 0 : index
    %9 = vector.load %arg5[%c1, %c0_7, %c0_8] : memref<4x100x200xf32, #tpu.memory_space<vmem>>, vector<1x100x200xf32>
    %10 = vector.shape_cast %9 : vector<1x100x200xf32> to vector<100x200xf32>
    %cst_9 = arith.constant dense<0.000000e+00> : vector<16x200xf32>
    %11 = tpu.matmul %0, %10, %cst_9 {dimension_numbers = #tpu.dot_dimension_numbers<[1], [0], [0], [1], [0, 0, 1, 1], [], []>} : vector<16x100xf32>, vector<100x200xf32>, vector<16x200xf32> -> vector<16x200xf32>
    %c0_10 = arith.constant 0 : index
    %c0_11 = arith.constant 0 : index
    %12 = vector.load %arg6[%c0_10, %c0_11] : memref<1x200xf32, #tpu.memory_space<vmem>>, vector<1x200xf32>
    %13 = vector.broadcast %12 : vector<1x200xf32> to vector<16x200xf32>
    %14 = arith.addf %11, %13 : vector<16x200xf32>
    %cst_12 = arith.constant 0.000000e+00 : f32
    %15 = vector.broadcast %cst_12 : f32 to vector<16x200xf32>
    %16 = arith.maximumf %14, %15 : vector<16x200xf32>
    %17 = arith.maximumf %8, %16 : vector<16x200xf32>
    %c2 = arith.constant 2 : index
    %c0_13 = arith.constant 0 : index
    %c0_14 = arith.constant 0 : index
    %18 = vector.load %arg5[%c2, %c0_13, %c0_14] : memref<4x100x200xf32, #tpu.memory_space<vmem>>, vector<1x100x200xf32>
    %19 = vector.shape_cast %18 : vector<1x100x200xf32> to vector<100x200xf32>
    %cst_15 = arith.constant dense<0.000000e+00> : vector<16x200xf32>
    %20 = tpu.matmul %0, %19, %cst_15 {dimension_numbers = #tpu.dot_dimension_numbers<[1], [0], [0], [1], [0, 0, 1, 1], [], []>} : vector<16x100xf32>, vector<100x200xf32>, vector<16x200xf32> -> vector<16x200xf32>
    %c0_16 = arith.constant 0 : index
    %c0_17 = arith.constant 0 : index
    %21 = vector.load %arg6[%c0_16, %c0_17] : memref<1x200xf32, #tpu.memory_space<vmem>>, vector<1x200xf32>
    %22 = vector.broadcast %21 : vector<1x200xf32> to vector<16x200xf32>
    %23 = arith.addf %20, %22 : vector<16x200xf32>
    %cst_18 = arith.constant 0.000000e+00 : f32
    %24 = vector.broadcast %cst_18 : f32 to vector<16x200xf32>
    %25 = arith.maximumf %23, %24 : vector<16x200xf32>
    %26 = arith.maximumf %17, %25 : vector<16x200xf32>
    %c3 = arith.constant 3 : index
    %c0_19 = arith.constant 0 : index
    %c0_20 = arith.constant 0 : index
    %27 = vector.load %arg5[%c3, %c0_19, %c0_20] : memref<4x100x200xf32, #tpu.memory_space<vmem>>, vector<1x100x200xf32>
    %28 = vector.shape_cast %27 : vector<1x100x200xf32> to vector<100x200xf32>
    %cst_21 = arith.constant dense<0.000000e+00> : vector<16x200xf32>
    %29 = tpu.matmul %0, %28, %cst_21 {dimension_numbers = #tpu.dot_dimension_numbers<[1], [0], [0], [1], [0, 0, 1, 1], [], []>} : vector<16x100xf32>, vector<100x200xf32>, vector<16x200xf32> -> vector<16x200xf32>
    %c0_22 = arith.constant 0 : index
    %c0_23 = arith.constant 0 : index
    %30 = vector.load %arg6[%c0_22, %c0_23] : memref<1x200xf32, #tpu.memory_space<vmem>>, vector<1x200xf32>
    %31 = vector.broadcast %30 : vector<1x200xf32> to vector<16x200xf32>
    %32 = arith.addf %29, %31 : vector<16x200xf32>
    %cst_24 = arith.constant 0.000000e+00 : f32
    %33 = vector.broadcast %cst_24 : f32 to vector<16x200xf32>
    %34 = arith.maximumf %32, %33 : vector<16x200xf32>
    %35 = arith.maximumf %26, %34 : vector<16x200xf32>
    %c0_25 = arith.constant 0 : index
    %c0_26 = arith.constant 0 : index
    %c0_27 = arith.constant 0 : index
    %36 = vector.load %arg7[%c0_25, %c0_26, %c0_27] : memref<4x200x64xf32, #tpu.memory_space<vmem>>, vector<1x200x64xf32>
    %37 = vector.shape_cast %36 : vector<1x200x64xf32> to vector<200x64xf32>
    %cst_28 = arith.constant dense<0.000000e+00> : vector<16x64xf32>
    %38 = tpu.matmul %35, %37, %cst_28 {dimension_numbers = #tpu.dot_dimension_numbers<[1], [0], [0], [1], [0, 0, 1, 1], [], []>} : vector<16x200xf32>, vector<200x64xf32>, vector<16x64xf32> -> vector<16x64xf32>
    %c0_29 = arith.constant 0 : index
    %c0_30 = arith.constant 0 : index
    %39 = vector.load %arg8[%c0_29, %c0_30] : memref<1x64xf32, #tpu.memory_space<vmem>>, vector<1x64xf32>
    %40 = vector.broadcast %39 : vector<1x64xf32> to vector<16x64xf32>
    %41 = arith.addf %38, %40 : vector<16x64xf32>
    %cst_31 = arith.constant 0.000000e+00 : f32
    %42 = vector.broadcast %cst_31 : f32 to vector<16x64xf32>
    %43 = arith.maximumf %41, %42 : vector<16x64xf32>
    %c1_32 = arith.constant 1 : index
    %c0_33 = arith.constant 0 : index
    %c0_34 = arith.constant 0 : index
    %44 = vector.load %arg7[%c1_32, %c0_33, %c0_34] : memref<4x200x64xf32, #tpu.memory_space<vmem>>, vector<1x200x64xf32>
    %45 = vector.shape_cast %44 : vector<1x200x64xf32> to vector<200x64xf32>
    %cst_35 = arith.constant dense<0.000000e+00> : vector<16x64xf32>
    %46 = tpu.matmul %35, %45, %cst_35 {dimension_numbers = #tpu.dot_dimension_numbers<[1], [0], [0], [1], [0, 0, 1, 1], [], []>} : vector<16x200xf32>, vector<200x64xf32>, vector<16x64xf32> -> vector<16x64xf32>
    %c0_36 = arith.constant 0 : index
    %c0_37 = arith.constant 0 : index
    %47 = vector.load %arg8[%c0_36, %c0_37] : memref<1x64xf32, #tpu.memory_space<vmem>>, vector<1x64xf32>
    %48 = vector.broadcast %47 : vector<1x64xf32> to vector<16x64xf32>
    %49 = arith.addf %46, %48 : vector<16x64xf32>
    %cst_38 = arith.constant 0.000000e+00 : f32
    %50 = vector.broadcast %cst_38 : f32 to vector<16x64xf32>
    %51 = arith.maximumf %49, %50 : vector<16x64xf32>
    %52 = arith.maximumf %43, %51 : vector<16x64xf32>
    %c2_39 = arith.constant 2 : index
    %c0_40 = arith.constant 0 : index
    %c0_41 = arith.constant 0 : index
    %53 = vector.load %arg7[%c2_39, %c0_40, %c0_41] : memref<4x200x64xf32, #tpu.memory_space<vmem>>, vector<1x200x64xf32>
    %54 = vector.shape_cast %53 : vector<1x200x64xf32> to vector<200x64xf32>
    %cst_42 = arith.constant dense<0.000000e+00> : vector<16x64xf32>
    %55 = tpu.matmul %35, %54, %cst_42 {dimension_numbers = #tpu.dot_dimension_numbers<[1], [0], [0], [1], [0, 0, 1, 1], [], []>} : vector<16x200xf32>, vector<200x64xf32>, vector<16x64xf32> -> vector<16x64xf32>
    %c0_43 = arith.constant 0 : index
    %c0_44 = arith.constant 0 : index
    %56 = vector.load %arg8[%c0_43, %c0_44] : memref<1x64xf32, #tpu.memory_space<vmem>>, vector<1x64xf32>
    %57 = vector.broadcast %56 : vector<1x64xf32> to vector<16x64xf32>
    %58 = arith.addf %55, %57 : vector<16x64xf32>
    %cst_45 = arith.constant 0.000000e+00 : f32
    %59 = vector.broadcast %cst_45 : f32 to vector<16x64xf32>
    %60 = arith.maximumf %58, %59 : vector<16x64xf32>
    %61 = arith.maximumf %52, %60 : vector<16x64xf32>
    %c3_46 = arith.constant 3 : index
    %c0_47 = arith.constant 0 : index
    %c0_48 = arith.constant 0 : index
    %62 = vector.load %arg7[%c3_46, %c0_47, %c0_48] : memref<4x200x64xf32, #tpu.memory_space<vmem>>, vector<1x200x64xf32>
    %63 = vector.shape_cast %62 : vector<1x200x64xf32> to vector<200x64xf32>
    %cst_49 = arith.constant dense<0.000000e+00> : vector<16x64xf32>
    %64 = tpu.matmul %35, %63, %cst_49 {dimension_numbers = #tpu.dot_dimension_numbers<[1], [0], [0], [1], [0, 0, 1, 1], [], []>} : vector<16x200xf32>, vector<200x64xf32>, vector<16x64xf32> -> vector<16x64xf32>
    %c0_50 = arith.constant 0 : index
    %c0_51 = arith.constant 0 : index
    %65 = vector.load %arg8[%c0_50, %c0_51] : memref<1x64xf32, #tpu.memory_space<vmem>>, vector<1x64xf32>
    %66 = vector.broadcast %65 : vector<1x64xf32> to vector<16x64xf32>
    %67 = arith.addf %64, %66 : vector<16x64xf32>
    %cst_52 = arith.constant 0.000000e+00 : f32
    %68 = vector.broadcast %cst_52 : f32 to vector<16x64xf32>
    %69 = arith.maximumf %67, %68 : vector<16x64xf32>
    %70 = arith.maximumf %61, %69 : vector<16x64xf32>
    %c0_53 = arith.constant 0 : index
    %c0_54 = arith.constant 0 : index
    %71 = vector.load %arg9[%c0_53, %c0_54] : memref<64x80xf32, #tpu.memory_space<vmem>>, vector<64x80xf32>
    %cst_55 = arith.constant dense<0.000000e+00> : vector<16x80xf32>
    %72 = tpu.matmul %70, %71, %cst_55 {dimension_numbers = #tpu.dot_dimension_numbers<[1], [0], [0], [1], [0, 0, 1, 1], [], []>} : vector<16x64xf32>, vector<64x80xf32>, vector<16x80xf32> -> vector<16x80xf32>
    %c0_56 = arith.constant 0 : index
    %c0_57 = arith.constant 0 : index
    %73 = vector.load %arg10[%c0_56, %c0_57] : memref<1x80xf32, #tpu.memory_space<vmem>>, vector<1x80xf32>
    %74 = vector.broadcast %73 : vector<1x80xf32> to vector<16x80xf32>
    %75 = arith.addf %72, %74 : vector<16x80xf32>
    %c0_58 = arith.constant 0 : index
    %c0_59 = arith.constant 0 : index
    %76 = vector.load %arg2[%c0_58, %c0_59] : memref<16x25xf32, #tpu.memory_space<vmem>>, vector<16x25xf32>
    %c0_60 = arith.constant 0 : index
    %c0_61 = arith.constant 0 : index
    %c0_62 = arith.constant 0 : index
    %77 = vector.load %arg11[%c0_60, %c0_61, %c0_62] : memref<4x25x32xf32, #tpu.memory_space<vmem>>, vector<1x25x32xf32>
    %78 = vector.shape_cast %77 : vector<1x25x32xf32> to vector<25x32xf32>
    %cst_63 = arith.constant dense<0.000000e+00> : vector<16x32xf32>
    %79 = tpu.matmul %76, %78, %cst_63 {dimension_numbers = #tpu.dot_dimension_numbers<[1], [0], [0], [1], [0, 0, 1, 1], [], []>} : vector<16x25xf32>, vector<25x32xf32>, vector<16x32xf32> -> vector<16x32xf32>
    %c0_64 = arith.constant 0 : index
    %c0_65 = arith.constant 0 : index
    %80 = vector.load %arg12[%c0_64, %c0_65] : memref<1x32xf32, #tpu.memory_space<vmem>>, vector<1x32xf32>
    %81 = vector.broadcast %80 : vector<1x32xf32> to vector<16x32xf32>
    %82 = arith.addf %79, %81 : vector<16x32xf32>
    %cst_66 = arith.constant 0.000000e+00 : f32
    %83 = vector.broadcast %cst_66 : f32 to vector<16x32xf32>
    %84 = arith.maximumf %82, %83 : vector<16x32xf32>
    %c1_67 = arith.constant 1 : index
    %c0_68 = arith.constant 0 : index
    %c0_69 = arith.constant 0 : index
    %85 = vector.load %arg11[%c1_67, %c0_68, %c0_69] : memref<4x25x32xf32, #tpu.memory_space<vmem>>, vector<1x25x32xf32>
    %86 = vector.shape_cast %85 : vector<1x25x32xf32> to vector<25x32xf32>
    %cst_70 = arith.constant dense<0.000000e+00> : vector<16x32xf32>
    %87 = tpu.matmul %76, %86, %cst_70 {dimension_numbers = #tpu.dot_dimension_numbers<[1], [0], [0], [1], [0, 0, 1, 1], [], []>} : vector<16x25xf32>, vector<25x32xf32>, vector<16x32xf32> -> vector<16x32xf32>
    %c0_71 = arith.constant 0 : index
    %c0_72 = arith.constant 0 : index
    %88 = vector.load %arg12[%c0_71, %c0_72] : memref<1x32xf32, #tpu.memory_space<vmem>>, vector<1x32xf32>
    %89 = vector.broadcast %88 : vector<1x32xf32> to vector<16x32xf32>
    %90 = arith.addf %87, %89 : vector<16x32xf32>
    %cst_73 = arith.constant 0.000000e+00 : f32
    %91 = vector.broadcast %cst_73 : f32 to vector<16x32xf32>
    %92 = arith.maximumf %90, %91 : vector<16x32xf32>
    %93 = arith.maximumf %84, %92 : vector<16x32xf32>
    %c2_74 = arith.constant 2 : index
    %c0_75 = arith.constant 0 : index
    %c0_76 = arith.constant 0 : index
    %94 = vector.load %arg11[%c2_74, %c0_75, %c0_76] : memref<4x25x32xf32, #tpu.memory_space<vmem>>, vector<1x25x32xf32>
    %95 = vector.shape_cast %94 : vector<1x25x32xf32> to vector<25x32xf32>
    %cst_77 = arith.constant dense<0.000000e+00> : vector<16x32xf32>
    %96 = tpu.matmul %76, %95, %cst_77 {dimension_numbers = #tpu.dot_dimension_numbers<[1], [0], [0], [1], [0, 0, 1, 1], [], []>} : vector<16x25xf32>, vector<25x32xf32>, vector<16x32xf32> -> vector<16x32xf32>
    %c0_78 = arith.constant 0 : index
    %c0_79 = arith.constant 0 : index
    %97 = vector.load %arg12[%c0_78, %c0_79] : memref<1x32xf32, #tpu.memory_space<vmem>>, vector<1x32xf32>
    %98 = vector.broadcast %97 : vector<1x32xf32> to vector<16x32xf32>
    %99 = arith.addf %96, %98 : vector<16x32xf32>
    %cst_80 = arith.constant 0.000000e+00 : f32
    %100 = vector.broadcast %cst_80 : f32 to vector<16x32xf32>
    %101 = arith.maximumf %99, %100 : vector<16x32xf32>
    %102 = arith.maximumf %93, %101 : vector<16x32xf32>
    %c3_81 = arith.constant 3 : index
    %c0_82 = arith.constant 0 : index
    %c0_83 = arith.constant 0 : index
    %103 = vector.load %arg11[%c3_81, %c0_82, %c0_83] : memref<4x25x32xf32, #tpu.memory_space<vmem>>, vector<1x25x32xf32>
    %104 = vector.shape_cast %103 : vector<1x25x32xf32> to vector<25x32xf32>
    %cst_84 = arith.constant dense<0.000000e+00> : vector<16x32xf32>
    %105 = tpu.matmul %76, %104, %cst_84 {dimension_numbers = #tpu.dot_dimension_numbers<[1], [0], [0], [1], [0, 0, 1, 1], [], []>} : vector<16x25xf32>, vector<25x32xf32>, vector<16x32xf32> -> vector<16x32xf32>
    %c0_85 = arith.constant 0 : index
    %c0_86 = arith.constant 0 : index
    %106 = vector.load %arg12[%c0_85, %c0_86] : memref<1x32xf32, #tpu.memory_space<vmem>>, vector<1x32xf32>
    %107 = vector.broadcast %106 : vector<1x32xf32> to vector<16x32xf32>
    %108 = arith.addf %105, %107 : vector<16x32xf32>
    %cst_87 = arith.constant 0.000000e+00 : f32
    %109 = vector.broadcast %cst_87 : f32 to vector<16x32xf32>
    %110 = arith.maximumf %108, %109 : vector<16x32xf32>
    %111 = arith.maximumf %102, %110 : vector<16x32xf32>
    %c0_88 = arith.constant 0 : index
    %c0_89 = arith.constant 0 : index
    %c0_90 = arith.constant 0 : index
    %112 = vector.load %arg13[%c0_88, %c0_89, %c0_90] : memref<4x32x16xf32, #tpu.memory_space<vmem>>, vector<1x32x16xf32>
    %113 = vector.shape_cast %112 : vector<1x32x16xf32> to vector<32x16xf32>
    %cst_91 = arith.constant dense<0.000000e+00> : vector<16x16xf32>
    %114 = tpu.matmul %111, %113, %cst_91 {dimension_numbers = #tpu.dot_dimension_numbers<[1], [0], [0], [1], [0, 0, 1, 1], [], []>} : vector<16x32xf32>, vector<32x16xf32>, vector<16x16xf32> -> vector<16x16xf32>
    %c0_92 = arith.constant 0 : index
    %c0_93 = arith.constant 0 : index
    %115 = vector.load %arg14[%c0_92, %c0_93] : memref<1x16xf32, #tpu.memory_space<vmem>>, vector<1x16xf32>
    %116 = vector.broadcast %115 : vector<1x16xf32> to vector<16x16xf32>
    %117 = arith.addf %114, %116 : vector<16x16xf32>
    %cst_94 = arith.constant 0.000000e+00 : f32
    %118 = vector.broadcast %cst_94 : f32 to vector<16x16xf32>
    %119 = arith.maximumf %117, %118 : vector<16x16xf32>
    %c1_95 = arith.constant 1 : index
    %c0_96 = arith.constant 0 : index
    %c0_97 = arith.constant 0 : index
    %120 = vector.load %arg13[%c1_95, %c0_96, %c0_97] : memref<4x32x16xf32, #tpu.memory_space<vmem>>, vector<1x32x16xf32>
    %121 = vector.shape_cast %120 : vector<1x32x16xf32> to vector<32x16xf32>
    %cst_98 = arith.constant dense<0.000000e+00> : vector<16x16xf32>
    %122 = tpu.matmul %111, %121, %cst_98 {dimension_numbers = #tpu.dot_dimension_numbers<[1], [0], [0], [1], [0, 0, 1, 1], [], []>} : vector<16x32xf32>, vector<32x16xf32>, vector<16x16xf32> -> vector<16x16xf32>
    %c0_99 = arith.constant 0 : index
    %c0_100 = arith.constant 0 : index
    %123 = vector.load %arg14[%c0_99, %c0_100] : memref<1x16xf32, #tpu.memory_space<vmem>>, vector<1x16xf32>
    %124 = vector.broadcast %123 : vector<1x16xf32> to vector<16x16xf32>
    %125 = arith.addf %122, %124 : vector<16x16xf32>
    %cst_101 = arith.constant 0.000000e+00 : f32
    %126 = vector.broadcast %cst_101 : f32 to vector<16x16xf32>
    %127 = arith.maximumf %125, %126 : vector<16x16xf32>
    %128 = arith.maximumf %119, %127 : vector<16x16xf32>
    %c2_102 = arith.constant 2 : index
    %c0_103 = arith.constant 0 : index
    %c0_104 = arith.constant 0 : index
    %129 = vector.load %arg13[%c2_102, %c0_103, %c0_104] : memref<4x32x16xf32, #tpu.memory_space<vmem>>, vector<1x32x16xf32>
    %130 = vector.shape_cast %129 : vector<1x32x16xf32> to vector<32x16xf32>
    %cst_105 = arith.constant dense<0.000000e+00> : vector<16x16xf32>
    %131 = tpu.matmul %111, %130, %cst_105 {dimension_numbers = #tpu.dot_dimension_numbers<[1], [0], [0], [1], [0, 0, 1, 1], [], []>} : vector<16x32xf32>, vector<32x16xf32>, vector<16x16xf32> -> vector<16x16xf32>
    %c0_106 = arith.constant 0 : index
    %c0_107 = arith.constant 0 : index
    %132 = vector.load %arg14[%c0_106, %c0_107] : memref<1x16xf32, #tpu.memory_space<vmem>>, vector<1x16xf32>
    %133 = vector.broadcast %132 : vector<1x16xf32> to vector<16x16xf32>
    %134 = arith.addf %131, %133 : vector<16x16xf32>
    %cst_108 = arith.constant 0.000000e+00 : f32
    %135 = vector.broadcast %cst_108 : f32 to vector<16x16xf32>
    %136 = arith.maximumf %134, %135 : vector<16x16xf32>
    %137 = arith.maximumf %128, %136 : vector<16x16xf32>
    %c3_109 = arith.constant 3 : index
    %c0_110 = arith.constant 0 : index
    %c0_111 = arith.constant 0 : index
    %138 = vector.load %arg13[%c3_109, %c0_110, %c0_111] : memref<4x32x16xf32, #tpu.memory_space<vmem>>, vector<1x32x16xf32>
    %139 = vector.shape_cast %138 : vector<1x32x16xf32> to vector<32x16xf32>
    %cst_112 = arith.constant dense<0.000000e+00> : vector<16x16xf32>
    %140 = tpu.matmul %111, %139, %cst_112 {dimension_numbers = #tpu.dot_dimension_numbers<[1], [0], [0], [1], [0, 0, 1, 1], [], []>} : vector<16x32xf32>, vector<32x16xf32>, vector<16x16xf32> -> vector<16x16xf32>
    %c0_113 = arith.constant 0 : index
    %c0_114 = arith.constant 0 : index
    %141 = vector.load %arg14[%c0_113, %c0_114] : memref<1x16xf32, #tpu.memory_space<vmem>>, vector<1x16xf32>
    %142 = vector.broadcast %141 : vector<1x16xf32> to vector<16x16xf32>
    %143 = arith.addf %140, %142 : vector<16x16xf32>
    %cst_115 = arith.constant 0.000000e+00 : f32
    %144 = vector.broadcast %cst_115 : f32 to vector<16x16xf32>
    %145 = arith.maximumf %143, %144 : vector<16x16xf32>
    %146 = arith.maximumf %137, %145 : vector<16x16xf32>
    %c0_116 = arith.constant 0 : index
    %c0_117 = arith.constant 0 : index
    %147 = vector.load %arg15[%c0_116, %c0_117] : memref<16x16xf32, #tpu.memory_space<vmem>>, vector<16x16xf32>
    %cst_118 = arith.constant dense<0.000000e+00> : vector<16x16xf32>
    %148 = tpu.matmul %146, %147, %cst_118 {dimension_numbers = #tpu.dot_dimension_numbers<[1], [0], [0], [1], [0, 0, 1, 1], [], []>} : vector<16x16xf32>, vector<16x16xf32>, vector<16x16xf32> -> vector<16x16xf32>
    %c0_119 = arith.constant 0 : index
    %c0_120 = arith.constant 0 : index
    %149 = vector.load %arg16[%c0_119, %c0_120] : memref<1x16xf32, #tpu.memory_space<vmem>>, vector<1x16xf32>
    %150 = vector.broadcast %149 : vector<1x16xf32> to vector<16x16xf32>
    %151 = arith.addf %148, %150 : vector<16x16xf32>
    %c0_121 = arith.constant 0 : index
    %c0_122 = arith.constant 0 : index
    %152 = vector.load %arg3[%c0_121, %c0_122] : memref<16x25xf32, #tpu.memory_space<vmem>>, vector<16x25xf32>
    %c0_123 = arith.constant 0 : index
    %c0_124 = arith.constant 0 : index
    %c0_125 = arith.constant 0 : index
    %153 = vector.load %arg11[%c0_123, %c0_124, %c0_125] : memref<4x25x32xf32, #tpu.memory_space<vmem>>, vector<1x25x32xf32>
    %154 = vector.shape_cast %153 : vector<1x25x32xf32> to vector<25x32xf32>
    %cst_126 = arith.constant dense<0.000000e+00> : vector<16x32xf32>
    %155 = tpu.matmul %152, %154, %cst_126 {dimension_numbers = #tpu.dot_dimension_numbers<[1], [0], [0], [1], [0, 0, 1, 1], [], []>} : vector<16x25xf32>, vector<25x32xf32>, vector<16x32xf32> -> vector<16x32xf32>
    %c0_127 = arith.constant 0 : index
    %c0_128 = arith.constant 0 : index
    %156 = vector.load %arg12[%c0_127, %c0_128] : memref<1x32xf32, #tpu.memory_space<vmem>>, vector<1x32xf32>
    %157 = vector.broadcast %156 : vector<1x32xf32> to vector<16x32xf32>
    %158 = arith.addf %155, %157 : vector<16x32xf32>
    %cst_129 = arith.constant 0.000000e+00 : f32
    %159 = vector.broadcast %cst_129 : f32 to vector<16x32xf32>
    %160 = arith.maximumf %158, %159 : vector<16x32xf32>
    %c1_130 = arith.constant 1 : index
    %c0_131 = arith.constant 0 : index
    %c0_132 = arith.constant 0 : index
    %161 = vector.load %arg11[%c1_130, %c0_131, %c0_132] : memref<4x25x32xf32, #tpu.memory_space<vmem>>, vector<1x25x32xf32>
    %162 = vector.shape_cast %161 : vector<1x25x32xf32> to vector<25x32xf32>
    %cst_133 = arith.constant dense<0.000000e+00> : vector<16x32xf32>
    %163 = tpu.matmul %152, %162, %cst_133 {dimension_numbers = #tpu.dot_dimension_numbers<[1], [0], [0], [1], [0, 0, 1, 1], [], []>} : vector<16x25xf32>, vector<25x32xf32>, vector<16x32xf32> -> vector<16x32xf32>
    %c0_134 = arith.constant 0 : index
    %c0_135 = arith.constant 0 : index
    %164 = vector.load %arg12[%c0_134, %c0_135] : memref<1x32xf32, #tpu.memory_space<vmem>>, vector<1x32xf32>
    %165 = vector.broadcast %164 : vector<1x32xf32> to vector<16x32xf32>
    %166 = arith.addf %163, %165 : vector<16x32xf32>
    %cst_136 = arith.constant 0.000000e+00 : f32
    %167 = vector.broadcast %cst_136 : f32 to vector<16x32xf32>
    %168 = arith.maximumf %166, %167 : vector<16x32xf32>
    %169 = arith.maximumf %160, %168 : vector<16x32xf32>
    %c2_137 = arith.constant 2 : index
    %c0_138 = arith.constant 0 : index
    %c0_139 = arith.constant 0 : index
    %170 = vector.load %arg11[%c2_137, %c0_138, %c0_139] : memref<4x25x32xf32, #tpu.memory_space<vmem>>, vector<1x25x32xf32>
    %171 = vector.shape_cast %170 : vector<1x25x32xf32> to vector<25x32xf32>
    %cst_140 = arith.constant dense<0.000000e+00> : vector<16x32xf32>
    %172 = tpu.matmul %152, %171, %cst_140 {dimension_numbers = #tpu.dot_dimension_numbers<[1], [0], [0], [1], [0, 0, 1, 1], [], []>} : vector<16x25xf32>, vector<25x32xf32>, vector<16x32xf32> -> vector<16x32xf32>
    %c0_141 = arith.constant 0 : index
    %c0_142 = arith.constant 0 : index
    %173 = vector.load %arg12[%c0_141, %c0_142] : memref<1x32xf32, #tpu.memory_space<vmem>>, vector<1x32xf32>
    %174 = vector.broadcast %173 : vector<1x32xf32> to vector<16x32xf32>
    %175 = arith.addf %172, %174 : vector<16x32xf32>
    %cst_143 = arith.constant 0.000000e+00 : f32
    %176 = vector.broadcast %cst_143 : f32 to vector<16x32xf32>
    %177 = arith.maximumf %175, %176 : vector<16x32xf32>
    %178 = arith.maximumf %169, %177 : vector<16x32xf32>
    %c3_144 = arith.constant 3 : index
    %c0_145 = arith.constant 0 : index
    %c0_146 = arith.constant 0 : index
    %179 = vector.load %arg11[%c3_144, %c0_145, %c0_146] : memref<4x25x32xf32, #tpu.memory_space<vmem>>, vector<1x25x32xf32>
    %180 = vector.shape_cast %179 : vector<1x25x32xf32> to vector<25x32xf32>
    %cst_147 = arith.constant dense<0.000000e+00> : vector<16x32xf32>
    %181 = tpu.matmul %152, %180, %cst_147 {dimension_numbers = #tpu.dot_dimension_numbers<[1], [0], [0], [1], [0, 0, 1, 1], [], []>} : vector<16x25xf32>, vector<25x32xf32>, vector<16x32xf32> -> vector<16x32xf32>
    %c0_148 = arith.constant 0 : index
    %c0_149 = arith.constant 0 : index
    %182 = vector.load %arg12[%c0_148, %c0_149] : memref<1x32xf32, #tpu.memory_space<vmem>>, vector<1x32xf32>
    %183 = vector.broadcast %182 : vector<1x32xf32> to vector<16x32xf32>
    %184 = arith.addf %181, %183 : vector<16x32xf32>
    %cst_150 = arith.constant 0.000000e+00 : f32
    %185 = vector.broadcast %cst_150 : f32 to vector<16x32xf32>
    %186 = arith.maximumf %184, %185 : vector<16x32xf32>
    %187 = arith.maximumf %178, %186 : vector<16x32xf32>
    %c0_151 = arith.constant 0 : index
    %c0_152 = arith.constant 0 : index
    %c0_153 = arith.constant 0 : index
    %188 = vector.load %arg13[%c0_151, %c0_152, %c0_153] : memref<4x32x16xf32, #tpu.memory_space<vmem>>, vector<1x32x16xf32>
    %189 = vector.shape_cast %188 : vector<1x32x16xf32> to vector<32x16xf32>
    %cst_154 = arith.constant dense<0.000000e+00> : vector<16x16xf32>
    %190 = tpu.matmul %187, %189, %cst_154 {dimension_numbers = #tpu.dot_dimension_numbers<[1], [0], [0], [1], [0, 0, 1, 1], [], []>} : vector<16x32xf32>, vector<32x16xf32>, vector<16x16xf32> -> vector<16x16xf32>
    %c0_155 = arith.constant 0 : index
    %c0_156 = arith.constant 0 : index
    %191 = vector.load %arg14[%c0_155, %c0_156] : memref<1x16xf32, #tpu.memory_space<vmem>>, vector<1x16xf32>
    %192 = vector.broadcast %191 : vector<1x16xf32> to vector<16x16xf32>
    %193 = arith.addf %190, %192 : vector<16x16xf32>
    %cst_157 = arith.constant 0.000000e+00 : f32
    %194 = vector.broadcast %cst_157 : f32 to vector<16x16xf32>
    %195 = arith.maximumf %193, %194 : vector<16x16xf32>
    %c1_158 = arith.constant 1 : index
    %c0_159 = arith.constant 0 : index
    %c0_160 = arith.constant 0 : index
    %196 = vector.load %arg13[%c1_158, %c0_159, %c0_160] : memref<4x32x16xf32, #tpu.memory_space<vmem>>, vector<1x32x16xf32>
    %197 = vector.shape_cast %196 : vector<1x32x16xf32> to vector<32x16xf32>
    %cst_161 = arith.constant dense<0.000000e+00> : vector<16x16xf32>
    %198 = tpu.matmul %187, %197, %cst_161 {dimension_numbers = #tpu.dot_dimension_numbers<[1], [0], [0], [1], [0, 0, 1, 1], [], []>} : vector<16x32xf32>, vector<32x16xf32>, vector<16x16xf32> -> vector<16x16xf32>
    %c0_162 = arith.constant 0 : index
    %c0_163 = arith.constant 0 : index
    %199 = vector.load %arg14[%c0_162, %c0_163] : memref<1x16xf32, #tpu.memory_space<vmem>>, vector<1x16xf32>
    %200 = vector.broadcast %199 : vector<1x16xf32> to vector<16x16xf32>
    %201 = arith.addf %198, %200 : vector<16x16xf32>
    %cst_164 = arith.constant 0.000000e+00 : f32
    %202 = vector.broadcast %cst_164 : f32 to vector<16x16xf32>
    %203 = arith.maximumf %201, %202 : vector<16x16xf32>
    %204 = arith.maximumf %195, %203 : vector<16x16xf32>
    %c2_165 = arith.constant 2 : index
    %c0_166 = arith.constant 0 : index
    %c0_167 = arith.constant 0 : index
    %205 = vector.load %arg13[%c2_165, %c0_166, %c0_167] : memref<4x32x16xf32, #tpu.memory_space<vmem>>, vector<1x32x16xf32>
    %206 = vector.shape_cast %205 : vector<1x32x16xf32> to vector<32x16xf32>
    %cst_168 = arith.constant dense<0.000000e+00> : vector<16x16xf32>
    %207 = tpu.matmul %187, %206, %cst_168 {dimension_numbers = #tpu.dot_dimension_numbers<[1], [0], [0], [1], [0, 0, 1, 1], [], []>} : vector<16x32xf32>, vector<32x16xf32>, vector<16x16xf32> -> vector<16x16xf32>
    %c0_169 = arith.constant 0 : index
    %c0_170 = arith.constant 0 : index
    %208 = vector.load %arg14[%c0_169, %c0_170] : memref<1x16xf32, #tpu.memory_space<vmem>>, vector<1x16xf32>
    %209 = vector.broadcast %208 : vector<1x16xf32> to vector<16x16xf32>
    %210 = arith.addf %207, %209 : vector<16x16xf32>
    %cst_171 = arith.constant 0.000000e+00 : f32
    %211 = vector.broadcast %cst_171 : f32 to vector<16x16xf32>
    %212 = arith.maximumf %210, %211 : vector<16x16xf32>
    %213 = arith.maximumf %204, %212 : vector<16x16xf32>
    %c3_172 = arith.constant 3 : index
    %c0_173 = arith.constant 0 : index
    %c0_174 = arith.constant 0 : index
    %214 = vector.load %arg13[%c3_172, %c0_173, %c0_174] : memref<4x32x16xf32, #tpu.memory_space<vmem>>, vector<1x32x16xf32>
    %215 = vector.shape_cast %214 : vector<1x32x16xf32> to vector<32x16xf32>
    %cst_175 = arith.constant dense<0.000000e+00> : vector<16x16xf32>
    %216 = tpu.matmul %187, %215, %cst_175 {dimension_numbers = #tpu.dot_dimension_numbers<[1], [0], [0], [1], [0, 0, 1, 1], [], []>} : vector<16x32xf32>, vector<32x16xf32>, vector<16x16xf32> -> vector<16x16xf32>
    %c0_176 = arith.constant 0 : index
    %c0_177 = arith.constant 0 : index
    %217 = vector.load %arg14[%c0_176, %c0_177] : memref<1x16xf32, #tpu.memory_space<vmem>>, vector<1x16xf32>
    %218 = vector.broadcast %217 : vector<1x16xf32> to vector<16x16xf32>
    %219 = arith.addf %216, %218 : vector<16x16xf32>
    %cst_178 = arith.constant 0.000000e+00 : f32
    %220 = vector.broadcast %cst_178 : f32 to vector<16x16xf32>
    %221 = arith.maximumf %219, %220 : vector<16x16xf32>
    %222 = arith.maximumf %213, %221 : vector<16x16xf32>
    %c0_179 = arith.constant 0 : index
    %c0_180 = arith.constant 0 : index
    %223 = vector.load %arg15[%c0_179, %c0_180] : memref<16x16xf32, #tpu.memory_space<vmem>>, vector<16x16xf32>
    %cst_181 = arith.constant dense<0.000000e+00> : vector<16x16xf32>
    %224 = tpu.matmul %222, %223, %cst_181 {dimension_numbers = #tpu.dot_dimension_numbers<[1], [0], [0], [1], [0, 0, 1, 1], [], []>} : vector<16x16xf32>, vector<16x16xf32>, vector<16x16xf32> -> vector<16x16xf32>
    %c0_182 = arith.constant 0 : index
    %c0_183 = arith.constant 0 : index
    %225 = vector.load %arg16[%c0_182, %c0_183] : memref<1x16xf32, #tpu.memory_space<vmem>>, vector<1x16xf32>
    %226 = vector.broadcast %225 : vector<1x16xf32> to vector<16x16xf32>
    %227 = arith.addf %224, %226 : vector<16x16xf32>
    %c0_184 = arith.constant 0 : index
    %c0_185 = arith.constant 0 : index
    %228 = vector.load %arg4[%c0_184, %c0_185] : memref<16x25xf32, #tpu.memory_space<vmem>>, vector<16x25xf32>
    %c0_186 = arith.constant 0 : index
    %c0_187 = arith.constant 0 : index
    %c0_188 = arith.constant 0 : index
    %229 = vector.load %arg11[%c0_186, %c0_187, %c0_188] : memref<4x25x32xf32, #tpu.memory_space<vmem>>, vector<1x25x32xf32>
    %230 = vector.shape_cast %229 : vector<1x25x32xf32> to vector<25x32xf32>
    %cst_189 = arith.constant dense<0.000000e+00> : vector<16x32xf32>
    %231 = tpu.matmul %228, %230, %cst_189 {dimension_numbers = #tpu.dot_dimension_numbers<[1], [0], [0], [1], [0, 0, 1, 1], [], []>} : vector<16x25xf32>, vector<25x32xf32>, vector<16x32xf32> -> vector<16x32xf32>
    %c0_190 = arith.constant 0 : index
    %c0_191 = arith.constant 0 : index
    %232 = vector.load %arg12[%c0_190, %c0_191] : memref<1x32xf32, #tpu.memory_space<vmem>>, vector<1x32xf32>
    %233 = vector.broadcast %232 : vector<1x32xf32> to vector<16x32xf32>
    %234 = arith.addf %231, %233 : vector<16x32xf32>
    %cst_192 = arith.constant 0.000000e+00 : f32
    %235 = vector.broadcast %cst_192 : f32 to vector<16x32xf32>
    %236 = arith.maximumf %234, %235 : vector<16x32xf32>
    %c1_193 = arith.constant 1 : index
    %c0_194 = arith.constant 0 : index
    %c0_195 = arith.constant 0 : index
    %237 = vector.load %arg11[%c1_193, %c0_194, %c0_195] : memref<4x25x32xf32, #tpu.memory_space<vmem>>, vector<1x25x32xf32>
    %238 = vector.shape_cast %237 : vector<1x25x32xf32> to vector<25x32xf32>
    %cst_196 = arith.constant dense<0.000000e+00> : vector<16x32xf32>
    %239 = tpu.matmul %228, %238, %cst_196 {dimension_numbers = #tpu.dot_dimension_numbers<[1], [0], [0], [1], [0, 0, 1, 1], [], []>} : vector<16x25xf32>, vector<25x32xf32>, vector<16x32xf32> -> vector<16x32xf32>
    %c0_197 = arith.constant 0 : index
    %c0_198 = arith.constant 0 : index
    %240 = vector.load %arg12[%c0_197, %c0_198] : memref<1x32xf32, #tpu.memory_space<vmem>>, vector<1x32xf32>
    %241 = vector.broadcast %240 : vector<1x32xf32> to vector<16x32xf32>
    %242 = arith.addf %239, %241 : vector<16x32xf32>
    %cst_199 = arith.constant 0.000000e+00 : f32
    %243 = vector.broadcast %cst_199 : f32 to vector<16x32xf32>
    %244 = arith.maximumf %242, %243 : vector<16x32xf32>
    %245 = arith.maximumf %236, %244 : vector<16x32xf32>
    %c2_200 = arith.constant 2 : index
    %c0_201 = arith.constant 0 : index
    %c0_202 = arith.constant 0 : index
    %246 = vector.load %arg11[%c2_200, %c0_201, %c0_202] : memref<4x25x32xf32, #tpu.memory_space<vmem>>, vector<1x25x32xf32>
    %247 = vector.shape_cast %246 : vector<1x25x32xf32> to vector<25x32xf32>
    %cst_203 = arith.constant dense<0.000000e+00> : vector<16x32xf32>
    %248 = tpu.matmul %228, %247, %cst_203 {dimension_numbers = #tpu.dot_dimension_numbers<[1], [0], [0], [1], [0, 0, 1, 1], [], []>} : vector<16x25xf32>, vector<25x32xf32>, vector<16x32xf32> -> vector<16x32xf32>
    %c0_204 = arith.constant 0 : index
    %c0_205 = arith.constant 0 : index
    %249 = vector.load %arg12[%c0_204, %c0_205] : memref<1x32xf32, #tpu.memory_space<vmem>>, vector<1x32xf32>
    %250 = vector.broadcast %249 : vector<1x32xf32> to vector<16x32xf32>
    %251 = arith.addf %248, %250 : vector<16x32xf32>
    %cst_206 = arith.constant 0.000000e+00 : f32
    %252 = vector.broadcast %cst_206 : f32 to vector<16x32xf32>
    %253 = arith.maximumf %251, %252 : vector<16x32xf32>
    %254 = arith.maximumf %245, %253 : vector<16x32xf32>
    %c3_207 = arith.constant 3 : index
    %c0_208 = arith.constant 0 : index
    %c0_209 = arith.constant 0 : index
    %255 = vector.load %arg11[%c3_207, %c0_208, %c0_209] : memref<4x25x32xf32, #tpu.memory_space<vmem>>, vector<1x25x32xf32>
    %256 = vector.shape_cast %255 : vector<1x25x32xf32> to vector<25x32xf32>
    %cst_210 = arith.constant dense<0.000000e+00> : vector<16x32xf32>
    %257 = tpu.matmul %228, %256, %cst_210 {dimension_numbers = #tpu.dot_dimension_numbers<[1], [0], [0], [1], [0, 0, 1, 1], [], []>} : vector<16x25xf32>, vector<25x32xf32>, vector<16x32xf32> -> vector<16x32xf32>
    %c0_211 = arith.constant 0 : index
    %c0_212 = arith.constant 0 : index
    %258 = vector.load %arg12[%c0_211, %c0_212] : memref<1x32xf32, #tpu.memory_space<vmem>>, vector<1x32xf32>
    %259 = vector.broadcast %258 : vector<1x32xf32> to vector<16x32xf32>
    %260 = arith.addf %257, %259 : vector<16x32xf32>
    %cst_213 = arith.constant 0.000000e+00 : f32
    %261 = vector.broadcast %cst_213 : f32 to vector<16x32xf32>
    %262 = arith.maximumf %260, %261 : vector<16x32xf32>
    %263 = arith.maximumf %254, %262 : vector<16x32xf32>
    %c0_214 = arith.constant 0 : index
    %c0_215 = arith.constant 0 : index
    %c0_216 = arith.constant 0 : index
    %264 = vector.load %arg13[%c0_214, %c0_215, %c0_216] : memref<4x32x16xf32, #tpu.memory_space<vmem>>, vector<1x32x16xf32>
    %265 = vector.shape_cast %264 : vector<1x32x16xf32> to vector<32x16xf32>
    %cst_217 = arith.constant dense<0.000000e+00> : vector<16x16xf32>
    %266 = tpu.matmul %263, %265, %cst_217 {dimension_numbers = #tpu.dot_dimension_numbers<[1], [0], [0], [1], [0, 0, 1, 1], [], []>} : vector<16x32xf32>, vector<32x16xf32>, vector<16x16xf32> -> vector<16x16xf32>
    %c0_218 = arith.constant 0 : index
    %c0_219 = arith.constant 0 : index
    %267 = vector.load %arg14[%c0_218, %c0_219] : memref<1x16xf32, #tpu.memory_space<vmem>>, vector<1x16xf32>
    %268 = vector.broadcast %267 : vector<1x16xf32> to vector<16x16xf32>
    %269 = arith.addf %266, %268 : vector<16x16xf32>
    %cst_220 = arith.constant 0.000000e+00 : f32
    %270 = vector.broadcast %cst_220 : f32 to vector<16x16xf32>
    %271 = arith.maximumf %269, %270 : vector<16x16xf32>
    %c1_221 = arith.constant 1 : index
    %c0_222 = arith.constant 0 : index
    %c0_223 = arith.constant 0 : index
    %272 = vector.load %arg13[%c1_221, %c0_222, %c0_223] : memref<4x32x16xf32, #tpu.memory_space<vmem>>, vector<1x32x16xf32>
    %273 = vector.shape_cast %272 : vector<1x32x16xf32> to vector<32x16xf32>
    %cst_224 = arith.constant dense<0.000000e+00> : vector<16x16xf32>
    %274 = tpu.matmul %263, %273, %cst_224 {dimension_numbers = #tpu.dot_dimension_numbers<[1], [0], [0], [1], [0, 0, 1, 1], [], []>} : vector<16x32xf32>, vector<32x16xf32>, vector<16x16xf32> -> vector<16x16xf32>
    %c0_225 = arith.constant 0 : index
    %c0_226 = arith.constant 0 : index
    %275 = vector.load %arg14[%c0_225, %c0_226] : memref<1x16xf32, #tpu.memory_space<vmem>>, vector<1x16xf32>
    %276 = vector.broadcast %275 : vector<1x16xf32> to vector<16x16xf32>
    %277 = arith.addf %274, %276 : vector<16x16xf32>
    %cst_227 = arith.constant 0.000000e+00 : f32
    %278 = vector.broadcast %cst_227 : f32 to vector<16x16xf32>
    %279 = arith.maximumf %277, %278 : vector<16x16xf32>
    %280 = arith.maximumf %271, %279 : vector<16x16xf32>
    %c2_228 = arith.constant 2 : index
    %c0_229 = arith.constant 0 : index
    %c0_230 = arith.constant 0 : index
    %281 = vector.load %arg13[%c2_228, %c0_229, %c0_230] : memref<4x32x16xf32, #tpu.memory_space<vmem>>, vector<1x32x16xf32>
    %282 = vector.shape_cast %281 : vector<1x32x16xf32> to vector<32x16xf32>
    %cst_231 = arith.constant dense<0.000000e+00> : vector<16x16xf32>
    %283 = tpu.matmul %263, %282, %cst_231 {dimension_numbers = #tpu.dot_dimension_numbers<[1], [0], [0], [1], [0, 0, 1, 1], [], []>} : vector<16x32xf32>, vector<32x16xf32>, vector<16x16xf32> -> vector<16x16xf32>
    %c0_232 = arith.constant 0 : index
    %c0_233 = arith.constant 0 : index
    %284 = vector.load %arg14[%c0_232, %c0_233] : memref<1x16xf32, #tpu.memory_space<vmem>>, vector<1x16xf32>
    %285 = vector.broadcast %284 : vector<1x16xf32> to vector<16x16xf32>
    %286 = arith.addf %283, %285 : vector<16x16xf32>
    %cst_234 = arith.constant 0.000000e+00 : f32
    %287 = vector.broadcast %cst_234 : f32 to vector<16x16xf32>
    %288 = arith.maximumf %286, %287 : vector<16x16xf32>
    %289 = arith.maximumf %280, %288 : vector<16x16xf32>
    %c3_235 = arith.constant 3 : index
    %c0_236 = arith.constant 0 : index
    %c0_237 = arith.constant 0 : index
    %290 = vector.load %arg13[%c3_235, %c0_236, %c0_237] : memref<4x32x16xf32, #tpu.memory_space<vmem>>, vector<1x32x16xf32>
    %291 = vector.shape_cast %290 : vector<1x32x16xf32> to vector<32x16xf32>
    %cst_238 = arith.constant dense<0.000000e+00> : vector<16x16xf32>
    %292 = tpu.matmul %263, %291, %cst_238 {dimension_numbers = #tpu.dot_dimension_numbers<[1], [0], [0], [1], [0, 0, 1, 1], [], []>} : vector<16x32xf32>, vector<32x16xf32>, vector<16x16xf32> -> vector<16x16xf32>
    %c0_239 = arith.constant 0 : index
    %c0_240 = arith.constant 0 : index
    %293 = vector.load %arg14[%c0_239, %c0_240] : memref<1x16xf32, #tpu.memory_space<vmem>>, vector<1x16xf32>
    %294 = vector.broadcast %293 : vector<1x16xf32> to vector<16x16xf32>
    %295 = arith.addf %292, %294 : vector<16x16xf32>
    %cst_241 = arith.constant 0.000000e+00 : f32
    %296 = vector.broadcast %cst_241 : f32 to vector<16x16xf32>
    %297 = arith.maximumf %295, %296 : vector<16x16xf32>
    %298 = arith.maximumf %289, %297 : vector<16x16xf32>
    %c0_242 = arith.constant 0 : index
    %c0_243 = arith.constant 0 : index
    %299 = vector.load %arg15[%c0_242, %c0_243] : memref<16x16xf32, #tpu.memory_space<vmem>>, vector<16x16xf32>
    %cst_244 = arith.constant dense<0.000000e+00> : vector<16x16xf32>
    %300 = tpu.matmul %298, %299, %cst_244 {dimension_numbers = #tpu.dot_dimension_numbers<[1], [0], [0], [1], [0, 0, 1, 1], [], []>} : vector<16x16xf32>, vector<16x16xf32>, vector<16x16xf32> -> vector<16x16xf32>
    %c0_245 = arith.constant 0 : index
    %c0_246 = arith.constant 0 : index
    %301 = vector.load %arg16[%c0_245, %c0_246] : memref<1x16xf32, #tpu.memory_space<vmem>>, vector<1x16xf32>
    %302 = vector.broadcast %301 : vector<1x16xf32> to vector<16x16xf32>
    %303 = arith.addf %300, %302 : vector<16x16xf32>
    %c0_247 = arith.constant 0 : index
    %c0_248 = arith.constant 0 : index
    %304 = vector.load %arg17[%c0_247, %c0_248] : memref<80x256xf32, #tpu.memory_space<vmem>>, vector<80x256xf32>
    %cst_249 = arith.constant dense<0.000000e+00> : vector<16x256xf32>
    %305 = tpu.matmul %75, %304, %cst_249 {dimension_numbers = #tpu.dot_dimension_numbers<[1], [0], [0], [1], [0, 0, 1, 1], [], []>} : vector<16x80xf32>, vector<80x256xf32>, vector<16x256xf32> -> vector<16x256xf32>
    %c0_250 = arith.constant 0 : index
    %c0_251 = arith.constant 0 : index
    %306 = vector.load %arg18[%c0_250, %c0_251] : memref<16x256xf32, #tpu.memory_space<vmem>>, vector<16x256xf32>
    %cst_252 = arith.constant dense<0.000000e+00> : vector<16x256xf32>
    %307 = tpu.matmul %151, %306, %cst_252 {dimension_numbers = #tpu.dot_dimension_numbers<[1], [0], [0], [1], [0, 0, 1, 1], [], []>} : vector<16x16xf32>, vector<16x256xf32>, vector<16x256xf32> -> vector<16x256xf32>
    %308 = arith.addf %305, %307 : vector<16x256xf32>
    %c0_253 = arith.constant 0 : index
    %c0_254 = arith.constant 0 : index
    %309 = vector.load %arg19[%c0_253, %c0_254] : memref<16x256xf32, #tpu.memory_space<vmem>>, vector<16x256xf32>
    %cst_255 = arith.constant dense<0.000000e+00> : vector<16x256xf32>
    %310 = tpu.matmul %227, %309, %cst_255 {dimension_numbers = #tpu.dot_dimension_numbers<[1], [0], [0], [1], [0, 0, 1, 1], [], []>} : vector<16x16xf32>, vector<16x256xf32>, vector<16x256xf32> -> vector<16x256xf32>
    %311 = arith.addf %308, %310 : vector<16x256xf32>
    %c0_256 = arith.constant 0 : index
    %c0_257 = arith.constant 0 : index
    %312 = vector.load %arg20[%c0_256, %c0_257] : memref<16x256xf32, #tpu.memory_space<vmem>>, vector<16x256xf32>
    %cst_258 = arith.constant dense<0.000000e+00> : vector<16x256xf32>
    %313 = tpu.matmul %303, %312, %cst_258 {dimension_numbers = #tpu.dot_dimension_numbers<[1], [0], [0], [1], [0, 0, 1, 1], [], []>} : vector<16x16xf32>, vector<16x256xf32>, vector<16x256xf32> -> vector<16x256xf32>
    %314 = arith.addf %311, %313 : vector<16x256xf32>
    %c0_259 = arith.constant 0 : index
    %c0_260 = arith.constant 0 : index
    %315 = vector.load %arg21[%c0_259, %c0_260] : memref<1x256xf32, #tpu.memory_space<vmem>>, vector<1x256xf32>
    %316 = vector.broadcast %315 : vector<1x256xf32> to vector<16x256xf32>
    %317 = arith.addf %314, %316 : vector<16x256xf32>
    %c0_261 = arith.constant 0 : index
    %c0_262 = arith.constant 0 : index
    %c0_263 = arith.constant 0 : index
    %318 = vector.load %arg22[%c0_261, %c0_262, %c0_263] : memref<2x256x256xf32, #tpu.memory_space<vmem>>, vector<1x256x256xf32>
    %319 = vector.shape_cast %318 : vector<1x256x256xf32> to vector<256x256xf32>
    %cst_264 = arith.constant dense<0.000000e+00> : vector<16x256xf32>
    %320 = tpu.matmul %317, %319, %cst_264 {dimension_numbers = #tpu.dot_dimension_numbers<[1], [0], [0], [1], [0, 0, 1, 1], [], []>} : vector<16x256xf32>, vector<256x256xf32>, vector<16x256xf32> -> vector<16x256xf32>
    %c0_265 = arith.constant 0 : index
    %c0_266 = arith.constant 0 : index
    %c0_267 = arith.constant 0 : index
    %321 = vector.load %arg23[%c0_265, %c0_266, %c0_267] : memref<2x1x256xf32, #tpu.memory_space<vmem>>, vector<1x1x256xf32>
    %322 = vector.shape_cast %321 : vector<1x1x256xf32> to vector<1x256xf32>
    %323 = vector.broadcast %322 : vector<1x256xf32> to vector<16x256xf32>
    %324 = arith.addf %320, %323 : vector<16x256xf32>
    %cst_268 = arith.constant dense<0.000000e+00> : vector<16xf32>
    %325 = vector.multi_reduction <add>, %324, %cst_268 [1] : vector<16x256xf32> to vector<16xf32>
    %326 = vector.shape_cast %325 : vector<16xf32> to vector<16x1xf32>
    %cst_269 = arith.constant 2.560000e+02 : f32
    %327 = vector.broadcast %cst_269 : f32 to vector<16x1xf32>
    %328 = arith.divf %326, %327 : vector<16x1xf32>
    %329 = vector.broadcast %328 : vector<16x1xf32> to vector<16x256xf32>
    %330 = arith.subf %324, %329 : vector<16x256xf32>
    %331 = arith.mulf %330, %330 : vector<16x256xf32>
    %cst_270 = arith.constant dense<0.000000e+00> : vector<16xf32>
    %332 = vector.multi_reduction <add>, %331, %cst_270 [1] : vector<16x256xf32> to vector<16xf32>
    %333 = vector.shape_cast %332 : vector<16xf32> to vector<16x1xf32>
    %cst_271 = arith.constant 2.560000e+02 : f32
    %334 = vector.broadcast %cst_271 : f32 to vector<16x1xf32>
    %335 = arith.divf %333, %334 : vector<16x1xf32>
    %cst_272 = arith.constant 9.99999974E-6 : f32
    %336 = vector.broadcast %cst_272 : f32 to vector<16x1xf32>
    %337 = arith.addf %335, %336 : vector<16x1xf32>
    %338 = math.rsqrt %337 : vector<16x1xf32>
    %339 = vector.broadcast %338 : vector<16x1xf32> to vector<16x256xf32>
    %340 = arith.mulf %330, %339 : vector<16x256xf32>
    %c0_273 = arith.constant 0 : index
    %c0_274 = arith.constant 0 : index
    %c0_275 = arith.constant 0 : index
    %341 = vector.load %arg24[%c0_273, %c0_274, %c0_275] : memref<2x1x256xf32, #tpu.memory_space<vmem>>, vector<1x1x256xf32>
    %342 = vector.shape_cast %341 : vector<1x1x256xf32> to vector<1x256xf32>
    %343 = vector.broadcast %342 : vector<1x256xf32> to vector<16x256xf32>
    %344 = arith.mulf %340, %343 : vector<16x256xf32>
    %c0_276 = arith.constant 0 : index
    %c0_277 = arith.constant 0 : index
    %c0_278 = arith.constant 0 : index
    %345 = vector.load %arg25[%c0_276, %c0_277, %c0_278] : memref<2x1x256xf32, #tpu.memory_space<vmem>>, vector<1x1x256xf32>
    %346 = vector.shape_cast %345 : vector<1x1x256xf32> to vector<1x256xf32>
    %347 = vector.broadcast %346 : vector<1x256xf32> to vector<16x256xf32>
    %348 = arith.addf %344, %347 : vector<16x256xf32>
    %cst_279 = arith.constant 0.000000e+00 : f32
    %349 = vector.broadcast %cst_279 : f32 to vector<16x256xf32>
    %350 = arith.maximumf %348, %349 : vector<16x256xf32>
    %351 = arith.addf %317, %350 : vector<16x256xf32>
    %c1_280 = arith.constant 1 : index
    %c0_281 = arith.constant 0 : index
    %c0_282 = arith.constant 0 : index
    %352 = vector.load %arg22[%c1_280, %c0_281, %c0_282] : memref<2x256x256xf32, #tpu.memory_space<vmem>>, vector<1x256x256xf32>
    %353 = vector.shape_cast %352 : vector<1x256x256xf32> to vector<256x256xf32>
    %cst_283 = arith.constant dense<0.000000e+00> : vector<16x256xf32>
    %354 = tpu.matmul %351, %353, %cst_283 {dimension_numbers = #tpu.dot_dimension_numbers<[1], [0], [0], [1], [0, 0, 1, 1], [], []>} : vector<16x256xf32>, vector<256x256xf32>, vector<16x256xf32> -> vector<16x256xf32>
    %c1_284 = arith.constant 1 : index
    %c0_285 = arith.constant 0 : index
    %c0_286 = arith.constant 0 : index
    %355 = vector.load %arg23[%c1_284, %c0_285, %c0_286] : memref<2x1x256xf32, #tpu.memory_space<vmem>>, vector<1x1x256xf32>
    %356 = vector.shape_cast %355 : vector<1x1x256xf32> to vector<1x256xf32>
    %357 = vector.broadcast %356 : vector<1x256xf32> to vector<16x256xf32>
    %358 = arith.addf %354, %357 : vector<16x256xf32>
    %cst_287 = arith.constant dense<0.000000e+00> : vector<16xf32>
    %359 = vector.multi_reduction <add>, %358, %cst_287 [1] : vector<16x256xf32> to vector<16xf32>
    %360 = vector.shape_cast %359 : vector<16xf32> to vector<16x1xf32>
    %cst_288 = arith.constant 2.560000e+02 : f32
    %361 = vector.broadcast %cst_288 : f32 to vector<16x1xf32>
    %362 = arith.divf %360, %361 : vector<16x1xf32>
    %363 = vector.broadcast %362 : vector<16x1xf32> to vector<16x256xf32>
    %364 = arith.subf %358, %363 : vector<16x256xf32>
    %365 = arith.mulf %364, %364 : vector<16x256xf32>
    %cst_289 = arith.constant dense<0.000000e+00> : vector<16xf32>
    %366 = vector.multi_reduction <add>, %365, %cst_289 [1] : vector<16x256xf32> to vector<16xf32>
    %367 = vector.shape_cast %366 : vector<16xf32> to vector<16x1xf32>
    %cst_290 = arith.constant 2.560000e+02 : f32
    %368 = vector.broadcast %cst_290 : f32 to vector<16x1xf32>
    %369 = arith.divf %367, %368 : vector<16x1xf32>
    %cst_291 = arith.constant 9.99999974E-6 : f32
    %370 = vector.broadcast %cst_291 : f32 to vector<16x1xf32>
    %371 = arith.addf %369, %370 : vector<16x1xf32>
    %372 = math.rsqrt %371 : vector<16x1xf32>
    %373 = vector.broadcast %372 : vector<16x1xf32> to vector<16x256xf32>
    %374 = arith.mulf %364, %373 : vector<16x256xf32>
    %c1_292 = arith.constant 1 : index
    %c0_293 = arith.constant 0 : index
    %c0_294 = arith.constant 0 : index
    %375 = vector.load %arg24[%c1_292, %c0_293, %c0_294] : memref<2x1x256xf32, #tpu.memory_space<vmem>>, vector<1x1x256xf32>
    %376 = vector.shape_cast %375 : vector<1x1x256xf32> to vector<1x256xf32>
    %377 = vector.broadcast %376 : vector<1x256xf32> to vector<16x256xf32>
    %378 = arith.mulf %374, %377 : vector<16x256xf32>
    %c1_295 = arith.constant 1 : index
    %c0_296 = arith.constant 0 : index
    %c0_297 = arith.constant 0 : index
    %379 = vector.load %arg25[%c1_295, %c0_296, %c0_297] : memref<2x1x256xf32, #tpu.memory_space<vmem>>, vector<1x1x256xf32>
    %380 = vector.shape_cast %379 : vector<1x1x256xf32> to vector<1x256xf32>
    %381 = vector.broadcast %380 : vector<1x256xf32> to vector<16x256xf32>
    %382 = arith.addf %378, %381 : vector<16x256xf32>
    %cst_298 = arith.constant 0.000000e+00 : f32
    %383 = vector.broadcast %cst_298 : f32 to vector<16x256xf32>
    %384 = arith.maximumf %382, %383 : vector<16x256xf32>
    %385 = arith.addf %351, %384 : vector<16x256xf32>
    %c0_299 = arith.constant 0 : index
    %c0_300 = arith.constant 0 : index
    %386 = vector.load %arg26[%c0_299, %c0_300] : memref<256x32xf32, #tpu.memory_space<vmem>>, vector<256x32xf32>
    %cst_301 = arith.constant dense<0.000000e+00> : vector<16x32xf32>
    %387 = tpu.matmul %385, %386, %cst_301 {dimension_numbers = #tpu.dot_dimension_numbers<[1], [0], [0], [1], [0, 0, 1, 1], [], []>} : vector<16x256xf32>, vector<256x32xf32>, vector<16x32xf32> -> vector<16x32xf32>
    %c0_302 = arith.constant 0 : index
    %c0_303 = arith.constant 0 : index
    %388 = vector.load %arg27[%c0_302, %c0_303] : memref<1x32xf32, #tpu.memory_space<vmem>>, vector<1x32xf32>
    %389 = vector.broadcast %388 : vector<1x32xf32> to vector<16x32xf32>
    %390 = arith.addf %387, %389 : vector<16x32xf32>
    %c0_304 = arith.constant 0 : index
    %c0_305 = arith.constant 0 : index
    %391 = vector.load %arg28[%c0_304, %c0_305] : memref<16x32xf32, #tpu.memory_space<vmem>>, vector<16x32xf32>
    tpu.vector_store %arg28[%c0_304, %c0_305], %390 {strides = array<i32>} : memref<16x32xf32, #tpu.memory_space<vmem>>, vector<16x32xf32>,
    return
  }
  func.func @transform_0(%arg0: i32) -> (i32, i32) {
    %c0_i32 = arith.constant 0 : i32
    %c0_i32_0 = arith.constant 0 : i32
    return %arg0, %c0_i32 : i32, i32
  }
  func.func @transform_1(%arg0: i32) -> (i32, i32) {
    %c0_i32 = arith.constant 0 : i32
    %c0_i32_0 = arith.constant 0 : i32
    return %arg0, %c0_i32 : i32, i32
  }
  func.func @transform_2(%arg0: i32) -> (i32, i32) {
    %c0_i32 = arith.constant 0 : i32
    %c0_i32_0 = arith.constant 0 : i32
    return %arg0, %c0_i32 : i32, i32
  }
  func.func @transform_3(%arg0: i32) -> (i32, i32) {
    %c0_i32 = arith.constant 0 : i32
    %c0_i32_0 = arith.constant 0 : i32
    return %arg0, %c0_i32 : i32, i32
  }
  func.func @transform_4(%arg0: i32) -> (i32, i32, i32) {
    %c0_i32 = arith.constant 0 : i32
    %c0_i32_0 = arith.constant 0 : i32
    %c0_i32_1 = arith.constant 0 : i32
    %c0_i32_2 = arith.constant 0 : i32
    return %c0_i32, %c0_i32_0, %c0_i32_1 : i32, i32, i32
  }
  func.func @transform_5(%arg0: i32) -> (i32, i32) {
    %c0_i32 = arith.constant 0 : i32
    %c0_i32_0 = arith.constant 0 : i32
    %c0_i32_1 = arith.constant 0 : i32
    return %c0_i32, %c0_i32_0 : i32, i32
  }
  func.func @transform_6(%arg0: i32) -> (i32, i32, i32) {
    %c0_i32 = arith.constant 0 : i32
    %c0_i32_0 = arith.constant 0 : i32
    %c0_i32_1 = arith.constant 0 : i32
    %c0_i32_2 = arith.constant 0 : i32
    return %c0_i32, %c0_i32_0, %c0_i32_1 : i32, i32, i32
  }
  func.func @transform_7(%arg0: i32) -> (i32, i32) {
    %c0_i32 = arith.constant 0 : i32
    %c0_i32_0 = arith.constant 0 : i32
    %c0_i32_1 = arith.constant 0 : i32
    return %c0_i32, %c0_i32_0 : i32, i32
  }
  func.func @transform_8(%arg0: i32) -> (i32, i32) {
    %c0_i32 = arith.constant 0 : i32
    %c0_i32_0 = arith.constant 0 : i32
    %c0_i32_1 = arith.constant 0 : i32
    return %c0_i32, %c0_i32_0 : i32, i32
  }
  func.func @transform_9(%arg0: i32) -> (i32, i32) {
    %c0_i32 = arith.constant 0 : i32
    %c0_i32_0 = arith.constant 0 : i32
    %c0_i32_1 = arith.constant 0 : i32
    return %c0_i32, %c0_i32_0 : i32, i32
  }
  func.func @transform_10(%arg0: i32) -> (i32, i32, i32) {
    %c0_i32 = arith.constant 0 : i32
    %c0_i32_0 = arith.constant 0 : i32
    %c0_i32_1 = arith.constant 0 : i32
    %c0_i32_2 = arith.constant 0 : i32
    return %c0_i32, %c0_i32_0, %c0_i32_1 : i32, i32, i32
  }
  func.func @transform_11(%arg0: i32) -> (i32, i32) {
    %c0_i32 = arith.constant 0 : i32
    %c0_i32_0 = arith.constant 0 : i32
    %c0_i32_1 = arith.constant 0 : i32
    return %c0_i32, %c0_i32_0 : i32, i32
  }
  func.func @transform_12(%arg0: i32) -> (i32, i32, i32) {
    %c0_i32 = arith.constant 0 : i32
    %c0_i32_0 = arith.constant 0 : i32
    %c0_i32_1 = arith.constant 0 : i32
    %c0_i32_2 = arith.constant 0 : i32
    return %c0_i32, %c0_i32_0, %c0_i32_1 : i32, i32, i32
  }
  func.func @transform_13(%arg0: i32) -> (i32, i32) {
    %c0_i32 = arith.constant 0 : i32
    %c0_i32_0 = arith.constant 0 : i32
    %c0_i32_1 = arith.constant 0 : i32
    return %c0_i32, %c0_i32_0 : i32, i32
  }
  func.func @transform_14(%arg0: i32) -> (i32, i32) {
    %c0_i32 = arith.constant 0 : i32
    %c0_i32_0 = arith.constant 0 : i32
    %c0_i32_1 = arith.constant 0 : i32
    return %c0_i32, %c0_i32_0 : i32, i32
  }
  func.func @transform_15(%arg0: i32) -> (i32, i32) {
    %c0_i32 = arith.constant 0 : i32
    %c0_i32_0 = arith.constant 0 : i32
    %c0_i32_1 = arith.constant 0 : i32
    return %c0_i32, %c0_i32_0 : i32, i32
  }
  func.func @transform_16(%arg0: i32) -> (i32, i32) {
    %c0_i32 = arith.constant 0 : i32
    %c0_i32_0 = arith.constant 0 : i32
    %c0_i32_1 = arith.constant 0 : i32
    return %c0_i32, %c0_i32_0 : i32, i32
  }
  func.func @transform_17(%arg0: i32) -> (i32, i32) {
    %c0_i32 = arith.constant 0 : i32
    %c0_i32_0 = arith.constant 0 : i32
    %c0_i32_1 = arith.constant 0 : i32
    return %c0_i32, %c0_i32_0 : i32, i32
  }
  func.func @transform_18(%arg0: i32) -> (i32, i32) {
    %c0_i32 = arith.constant 0 : i32
    %c0_i32_0 = arith.constant 0 : i32
    %c0_i32_1 = arith.constant 0 : i32
    return %c0_i32, %c0_i32_0 : i32, i32
  }
  func.func @transform_19(%arg0: i32) -> (i32, i32) {
    %c0_i32 = arith.constant 0 : i32
    %c0_i32_0 = arith.constant 0 : i32
    %c0_i32_1 = arith.constant 0 : i32
    return %c0_i32, %c0_i32_0 : i32, i32
  }
  func.func @transform_20(%arg0: i32) -> (i32, i32) {
    %c0_i32 = arith.constant 0 : i32
    %c0_i32_0 = arith.constant 0 : i32
    %c0_i32_1 = arith.constant 0 : i32
    return %c0_i32, %c0_i32_0 : i32, i32
  }
  func.func @transform_21(%arg0: i32) -> (i32, i32, i32) {
    %c0_i32 = arith.constant 0 : i32
    %c0_i32_0 = arith.constant 0 : i32
    %c0_i32_1 = arith.constant 0 : i32
    %c0_i32_2 = arith.constant 0 : i32
    return %c0_i32, %c0_i32_0, %c0_i32_1 : i32, i32, i32
  }
  func.func @transform_22(%arg0: i32) -> (i32, i32, i32) {
    %c0_i32 = arith.constant 0 : i32
    %c0_i32_0 = arith.constant 0 : i32
    %c0_i32_1 = arith.constant 0 : i32
    %c0_i32_2 = arith.constant 0 : i32
    return %c0_i32, %c0_i32_0, %c0_i32_1 : i32, i32, i32
  }
  func.func @transform_23(%arg0: i32) -> (i32, i32, i32) {
    %c0_i32 = arith.constant 0 : i32
    %c0_i32_0 = arith.constant 0 : i32
    %c0_i32_1 = arith.constant 0 : i32
    %c0_i32_2 = arith.constant 0 : i32
    return %c0_i32, %c0_i32_0, %c0_i32_1 : i32, i32, i32
  }
  func.func @transform_24(%arg0: i32) -> (i32, i32, i32) {
    %c0_i32 = arith.constant 0 : i32
    %c0_i32_0 = arith.constant 0 : i32
    %c0_i32_1 = arith.constant 0 : i32
    %c0_i32_2 = arith.constant 0 : i32
    return %c0_i32, %c0_i32_0, %c0_i32_1 : i32, i32, i32
  }
  func.func @transform_25(%arg0: i32) -> (i32, i32) {
    %c0_i32 = arith.constant 0 : i32
    %c0_i32_0 = arith.constant 0 : i32
    %c0_i32_1 = arith.constant 0 : i32
    return %c0_i32, %c0_i32_0 : i32, i32
  }
  func.func @transform_26(%arg0: i32) -> (i32, i32) {
    %c0_i32 = arith.constant 0 : i32
    %c0_i32_0 = arith.constant 0 : i32
    %c0_i32_1 = arith.constant 0 : i32
    return %c0_i32, %c0_i32_0 : i32, i32
  }
  func.func @transform_27(%arg0: i32) -> (i32, i32) {
    %c0_i32 = arith.constant 0 : i32
    %c0_i32_0 = arith.constant 0 : i32
    return %arg0, %c0_i32 : i32, i32
  }
}

</mosaic_0001>

<llo_original>
// kernel: observation_encoder.1
$region0: #{observation_encoder.1}
  #allocation0 [shape = 'u32[]', space=smem, size = 0x4, offset = 0x4, fixed_abs, tag = 'smem constant byte address 0x4 - core index']
  #allocation1 [shape = 'u32[144,128]{1,0:T(1,128)}', space=vmem, size = 0x12000, scoped, tag = 'internal scratch']
  %s0 = inlined_call_operand.vmem [shape: f32[16,100], index: 0, kind: input, shape index: {}]
  %s1 = inlined_call_operand.vmem [shape: f32[16,25], index: 1, kind: input, shape index: {}]
  %s2 = inlined_call_operand.vmem [shape: f32[16,25], index: 2, kind: input, shape index: {}]
  %s3 = inlined_call_operand.vmem [shape: f32[16,25], index: 3, kind: input, shape index: {}]
  %s4 = inlined_call_operand.vmem [shape: f32[4,100,200], index: 4, kind: input, shape index: {}]
  %s5 = inlined_call_operand.vmem [shape: f32[1,200], index: 5, kind: input, shape index: {}]
  %s6 = inlined_call_operand.vmem [shape: f32[4,200,64], index: 6, kind: input, shape index: {}]
  %s7 = inlined_call_operand.vmem [shape: f32[1,64], index: 7, kind: input, shape index: {}]
  %s8 = inlined_call_operand.vmem [shape: f32[64,80], index: 8, kind: input, shape index: {}]
  %s9 = inlined_call_operand.vmem [shape: f32[1,80], index: 9, kind: input, shape index: {}]
  %s10 = inlined_call_operand.vmem [shape: f32[4,25,32], index: 10, kind: input, shape index: {}]
  %s11 = inlined_call_operand.vmem [shape: f32[1,32], index: 11, kind: input, shape index: {}]
  %s12 = inlined_call_operand.vmem [shape: f32[4,32,16], index: 12, kind: input, shape index: {}]
  %s13 = inlined_call_operand.vmem [shape: f32[1,16], index: 13, kind: input, shape index: {}]
  %s14 = inlined_call_operand.vmem [shape: f32[16,16], index: 14, kind: input, shape index: {}]
  %s15 = inlined_call_operand.vmem [shape: f32[1,16], index: 15, kind: input, shape index: {}]
  %s16 = inlined_call_operand.vmem [shape: f32[80,256], index: 16, kind: input, shape index: {}]
  %s17 = inlined_call_operand.vmem [shape: f32[16,256], index: 17, kind: input, shape index: {}]
  %s18 = inlined_call_operand.vmem [shape: f32[16,256], index: 18, kind: input, shape index: {}]
  %s19 = inlined_call_operand.vmem [shape: f32[16,256], index: 19, kind: input, shape index: {}]
  %s20 = inlined_call_operand.vmem [shape: f32[1,256], index: 20, kind: input, shape index: {}]
  %s21 = inlined_call_operand.vmem [shape: f32[2,256,256], index: 21, kind: input, shape index: {}]
  %s22 = inlined_call_operand.vmem [shape: f32[2,1,256], index: 22, kind: input, shape index: {}]
  %s23 = inlined_call_operand.vmem [shape: f32[2,1,256], index: 23, kind: input, shape index: {}]
  %s24 = inlined_call_operand.vmem [shape: f32[2,1,256], index: 24, kind: input, shape index: {}]
  %s25 = inlined_call_operand.vmem [shape: f32[256,32], index: 25, kind: input, shape index: {}]
  %s26 = inlined_call_operand.vmem [shape: f32[1,32], index: 26, kind: input, shape index: {}]
  %s27 = inlined_call_operand.hbm [shape: f32[16,32], index: 27, kind: output, shape index: {}]
  %s28 = sld [smem:[#allocation0]]
  $region118: #{observation_encoder.1} parent=0
    _
  %s30 = ssub.s32 1, %s28
  %s31 = scalar_select 0, %s30, %s28
  $region1: #{observation_encoder.1} parent=0
    #allocation2 [shape = 'u8[8192]{0}', space=vmem, size = 0x2000, scoped, tag = 'output window, operand 0, single buffered']
    #allocation3 [shape = 's32[1]{0}', space=sflag, size = 0x4, scoped, tag = 'scoped memory for observation_encoder.1']
    %32 = vsyncpa [#allocation3], 0
    // Predicated region
    $region2: #{observation_encoder.1} parent=1 // pred_check
      _
    $region3: #{observation_encoder.1} parent=1 // pred_check_branch
      %34 = sbr.rel (0) target = $region5
    $region4: #{observation_encoder.1} parent=1 // pred_region
      _
    $region5: #{observation_encoder.1} parent=1 // pred_fallthru
      _
    // Predicated region
    $region6: #{observation_encoder.1} parent=1 // pred_check
      _
    $region7: #{observation_encoder.1} parent=1 // pred_check_branch
      %36 = sbr.rel (0) target = $region9
    $region8: #{observation_encoder.1} parent=1 // pred_region
      _
    $region9: #{observation_encoder.1} parent=1 // pred_fallthru
      _
    // Predicated region
    $region10: #{observation_encoder.1} parent=1 // pred_check
      _
    $region11: #{observation_encoder.1} parent=1 // pred_check_branch
      %38 = sbr.rel (0) target = $region13
    $region12: #{observation_encoder.1} parent=1 // pred_region
      _
    $region13: #{observation_encoder.1} parent=1 // pred_fallthru
      _
    // Predicated region
    $region14: #{observation_encoder.1} parent=1 // pred_check
      _
    $region15: #{observation_encoder.1} parent=1 // pred_check_branch
      %40 = sbr.rel (0) target = $region17
    $region16: #{observation_encoder.1} parent=1 // pred_region
      _
    $region17: #{observation_encoder.1} parent=1 // pred_fallthru
      _
    // Predicated region
    $region18: #{observation_encoder.1} parent=1 // pred_check
      _
    $region19: #{observation_encoder.1} parent=1 // pred_check_branch
      %42 = sbr.rel (0) target = $region21
    $region20: #{observation_encoder.1} parent=1 // pred_region
      _
    $region21: #{observation_encoder.1} parent=1 // pred_fallthru
      _
    // Predicated region
    $region22: #{observation_encoder.1} parent=1 // pred_check
      _
    $region23: #{observation_encoder.1} parent=1 // pred_check_branch
      %44 = sbr.rel (0) target = $region25
    $region24: #{observation_encoder.1} parent=1 // pred_region
      _
    $region25: #{observation_encoder.1} parent=1 // pred_fallthru
      _
    // Predicated region
    $region26: #{observation_encoder.1} parent=1 // pred_check
      _
    $region27: #{observation_encoder.1} parent=1 // pred_check_branch
      %46 = sbr.rel (0) target = $region29
    $region28: #{observation_encoder.1} parent=1 // pred_region
      _
    $region29: #{observation_encoder.1} parent=1 // pred_fallthru
      _
    // Predicated region
    $region30: #{observation_encoder.1} parent=1 // pred_check
      _
    $region31: #{observation_encoder.1} parent=1 // pred_check_branch
      %48 = sbr.rel (0) target = $region33
    $region32: #{observation_encoder.1} parent=1 // pred_region
      _
    $region33: #{observation_encoder.1} parent=1 // pred_fallthru
      _
    // Predicated region
    $region34: #{observation_encoder.1} parent=1 // pred_check
      _
    $region35: #{observation_encoder.1} parent=1 // pred_check_branch
      %50 = sbr.rel (0) target = $region37
    $region36: #{observation_encoder.1} parent=1 // pred_region
      _
    $region37: #{observation_encoder.1} parent=1 // pred_fallthru
      _
    // Predicated region
    $region38: #{observation_encoder.1} parent=1 // pred_check
      _
    $region39: #{observation_encoder.1} parent=1 // pred_check_branch
      %52 = sbr.rel (0) target = $region41
    $region40: #{observation_encoder.1} parent=1 // pred_region
      _
    $region41: #{observation_encoder.1} parent=1 // pred_fallthru
      _
    // Predicated region
    $region42: #{observation_encoder.1} parent=1 // pred_check
      _
    $region43: #{observation_encoder.1} parent=1 // pred_check_branch
      %54 = sbr.rel (0) target = $region45
    $region44: #{observation_encoder.1} parent=1 // pred_region
      _
    $region45: #{observation_encoder.1} parent=1 // pred_fallthru
      _
    // Predicated region
    $region46: #{observation_encoder.1} parent=1 // pred_check
      _
    $region47: #{observation_encoder.1} parent=1 // pred_check_branch
      %56 = sbr.rel (0) target = $region49
    $region48: #{observation_encoder.1} parent=1 // pred_region
      _
    $region49: #{observation_encoder.1} parent=1 // pred_fallthru
      _
    // Predicated region
    $region50: #{observation_encoder.1} parent=1 // pred_check
      _
    $region51: #{observation_encoder.1} parent=1 // pred_check_branch
      %58 = sbr.rel (0) target = $region53
    $region52: #{observation_encoder.1} parent=1 // pred_region
      _
    $region53: #{observation_encoder.1} parent=1 // pred_fallthru
      _
    // Predicated region
    $region54: #{observation_encoder.1} parent=1 // pred_check
      _
    $region55: #{observation_encoder.1} parent=1 // pred_check_branch
      %60 = sbr.rel (0) target = $region57
    $region56: #{observation_encoder.1} parent=1 // pred_region
      _
    $region57: #{observation_encoder.1} parent=1 // pred_fallthru
      _
    // Predicated region
    $region58: #{observation_encoder.1} parent=1 // pred_check
      _
    $region59: #{observation_encoder.1} parent=1 // pred_check_branch
      %62 = sbr.rel (0) target = $region61
    $region60: #{observation_encoder.1} parent=1 // pred_region
      _
    $region61: #{observation_encoder.1} parent=1 // pred_fallthru
      _
    // Predicated region
    $region62: #{observation_encoder.1} parent=1 // pred_check
      _
    $region63: #{observation_encoder.1} parent=1 // pred_check_branch
      %64 = sbr.rel (0) target = $region65
    $region64: #{observation_encoder.1} parent=1 // pred_region
      _
    $region65: #{observation_encoder.1} parent=1 // pred_fallthru
      _
    // Predicated region
    $region66: #{observation_encoder.1} parent=1 // pred_check
      _
    $region67: #{observation_encoder.1} parent=1 // pred_check_branch
      %66 = sbr.rel (0) target = $region69
    $region68: #{observation_encoder.1} parent=1 // pred_region
      _
    $region69: #{observation_encoder.1} parent=1 // pred_fallthru
      _
    // Predicated region
    $region70: #{observation_encoder.1} parent=1 // pred_check
      _
    $region71: #{observation_encoder.1} parent=1 // pred_check_branch
      %68 = sbr.rel (0) target = $region73
    $region72: #{observation_encoder.1} parent=1 // pred_region
      _
    $region73: #{observation_encoder.1} parent=1 // pred_fallthru
      _
    // Predicated region
    $region74: #{observation_encoder.1} parent=1 // pred_check
      _
    $region75: #{observation_encoder.1} parent=1 // pred_check_branch
      %70 = sbr.rel (0) target = $region77
    $region76: #{observation_encoder.1} parent=1 // pred_region
      _
    $region77: #{observation_encoder.1} parent=1 // pred_fallthru
      _
    // Predicated region
    $region78: #{observation_encoder.1} parent=1 // pred_check
      _
    $region79: #{observation_encoder.1} parent=1 // pred_check_branch
      %72 = sbr.rel (0) target = $region81
    $region80: #{observation_encoder.1} parent=1 // pred_region
      _
    $region81: #{observation_encoder.1} parent=1 // pred_fallthru
      _
    // Predicated region
    $region82: #{observation_encoder.1} parent=1 // pred_check
      _
    $region83: #{observation_encoder.1} parent=1 // pred_check_branch
      %74 = sbr.rel (0) target = $region85
    $region84: #{observation_encoder.1} parent=1 // pred_region
      _
    $region85: #{observation_encoder.1} parent=1 // pred_fallthru
      _
    // Predicated region
    $region86: #{observation_encoder.1} parent=1 // pred_check
      _
    $region87: #{observation_encoder.1} parent=1 // pred_check_branch
      %76 = sbr.rel (0) target = $region89
    $region88: #{observation_encoder.1} parent=1 // pred_region
      _
    $region89: #{observation_encoder.1} parent=1 // pred_fallthru
      _
    // Predicated region
    $region90: #{observation_encoder.1} parent=1 // pred_check
      _
    $region91: #{observation_encoder.1} parent=1 // pred_check_branch
      %78 = sbr.rel (0) target = $region93
    $region92: #{observation_encoder.1} parent=1 // pred_region
      _
    $region93: #{observation_encoder.1} parent=1 // pred_fallthru
      _
    // Predicated region
    $region94: #{observation_encoder.1} parent=1 // pred_check
      _
    $region95: #{observation_encoder.1} parent=1 // pred_check_branch
      %80 = sbr.rel (0) target = $region97
    $region96: #{observation_encoder.1} parent=1 // pred_region
      _
    $region97: #{observation_encoder.1} parent=1 // pred_fallthru
      _
    // Predicated region
    $region98: #{observation_encoder.1} parent=1 // pred_check
      _
    $region99: #{observation_encoder.1} parent=1 // pred_check_branch
      %82 = sbr.rel (0) target = $region101
    $region100: #{observation_encoder.1} parent=1 // pred_region
      _
    $region101: #{observation_encoder.1} parent=1 // pred_fallthru
      _
    // Predicated region
    $region102: #{observation_encoder.1} parent=1 // pred_check
      _
    $region103: #{observation_encoder.1} parent=1 // pred_check_branch
      %84 = sbr.rel (0) target = $region105
    $region104: #{observation_encoder.1} parent=1 // pred_region
      _
    $region105: #{observation_encoder.1} parent=1 // pred_fallthru
      _
    // Predicated region
    $region106: #{observation_encoder.1} parent=1 // pred_check
      _
    $region107: #{observation_encoder.1} parent=1 // pred_check_branch
      %86 = sbr.rel (0) target = $region109
    $region108: #{observation_encoder.1} parent=1 // pred_region
      _
    $region109: #{observation_encoder.1} parent=1 // pred_fallthru
      _
    %v87 = vld [vmem:[%s0] sm:$0xff]
    %v88 = vld [vmem:[%s0 + $0x8] sm:$0xff]
    %v89 = vld [vmem:[%s4] sm:$0xff]
    %v90 = vld [vmem:[%s4 + $0x8] sm:$0xff]
    %v91 = vld [vmem:[%s4 + $0x10] sm:$0xff]
    %v92 = vld [vmem:[%s4 + $0x18] sm:$0xff]
    %v93 = vld [vmem:[%s4 + $0x20] sm:$0xff]
    %v94 = vld [vmem:[%s4 + $0x28] sm:$0xff]
    %v95 = vld [vmem:[%s4 + $0x30] sm:$0xff]
    %v96 = vld [vmem:[%s4 + $0x38] sm:$0xff]
    %v97 = vld [vmem:[%s4 + $0x40] sm:$0xff]
    %v98 = vld [vmem:[%s4 + $0x48] sm:$0xff]
    %v99 = vld [vmem:[%s4 + $0x50] sm:$0xff]
    %v100 = vld [vmem:[%s4 + $0x58] sm:$0xff]
    %v101 = vld [vmem:[%s4 + $0x60] sm:$0xff]
    %v102 = vld [vmem:[%s4 + $0x68] sm:$0xff]
    %v103 = vld [vmem:[%s4 + $0x70] sm:$0xff]
    %v104 = vld [vmem:[%s4 + $0x78] sm:$0xff]
    %v105 = vld [vmem:[%s4 + $0x80] sm:$0xff]
    %v106 = vld [vmem:[%s4 + $0x88] sm:$0xff]
    %v107 = vld [vmem:[%s4 + $0x90] sm:$0xff]
    %v108 = vld [vmem:[%s4 + $0x98] sm:$0xff]
    %v109 = vld [vmem:[%s4 + $0xa0] sm:$0xff]
    %v110 = vld [vmem:[%s4 + $0xa8] sm:$0xff]
    %v111 = vld [vmem:[%s4 + $0xb0] sm:$0xff]
    %v112 = vld [vmem:[%s4 + $0xb8] sm:$0xff]
    %v113 = vld [vmem:[%s4 + $0xc0] sm:$0xf]
    %v114 = vld [vmem:[%s4 + $0xc8] sm:$0xf]
    %v115 = vld [vmem:[%s5] sm:$0x3]
    %v117 = vlaneseq
    %v118 = vshrl.u32 %v117, 7
    %v119 = vsub.s32 0, %v118
    %v120 = vrot.slane %v115, %v119
    %v121 = vlaneseq
    %v122 = vshrl.u32 %v121, 7
    %v123 = vsub.s32 1, %v122
    %v124 = vrot.slane %v115, %v123
    %vm127 = vcmask 818176
    %v129 = vsel %vm127, %v87, 0
    %v132 = vsel %vm127, %v88, 0
    %vm134 = vcmask 1043456
    %v136 = vsel %vm134, %v113, 0
    %v139 = vsel %vm134, %v114, 0
    %141 = vmatprep.subr.mxu0 0.0
    %142 = vmatpush1.msra.mxu0 0.0
    %143 = vmatprep.subr.mxu0 0.0
    %144 = vmatpush1.msra.mxu0 0.0
    %145 = vmatprep.subr.mxu0 0.0
    %146 = vmatpush1.msra.mxu0 0.0
    %147 = vmatprep.subr.mxu0 %v139
    %148 = vmatpush1.msra.mxu0 %v136
    %149 = vmatprep.subr.mxu0 %v112
    %150 = vmatpush1.msra.mxu0 %v111
    %151 = vmatprep.subr.mxu0 %v110
    %152 = vmatpush1.msra.mxu0 %v109
    %153 = vmatprep.subr.mxu0 %v108
    %154 = vmatpush1.msra.mxu0 %v107
    %155 = vmatprep.subr.mxu0 %v106
    %156 = vmatpush1.msra.mxu0 %v105
    %157 = vmatprep.subr.mxu0 %v104
    %158 = vmatpush1.msra.mxu0 %v103
    %159 = vmatprep.subr.mxu0 %v102
    %160 = vmatpush1.msra.mxu0 %v101
    %161 = vmatprep.subr.mxu0 %v100
    %162 = vmatpush1.msra.mxu0 %v99
    %163 = vmatprep.subr.mxu0 %v98
    %164 = vmatpush1.msra.mxu0 %v97
    %165 = vmatprep.subr.mxu0 %v96
    %166 = vmatpush1.msra.mxu0 %v95
    %167 = vmatprep.subr.mxu0 %v94
    %168 = vmatpush1.msra.mxu0 %v93
    %169 = vmatprep.subr.mxu0 %v92
    %170 = vmatpush1.msra.mxu0 %v91
    %171 = vmatprep.subr.mxu0 %v90
    %172 = vmatpush1.msra.mxu0 %v89
    %173 = vmatprep.subr.mxu0 0.0
    %174 = vmatpush2.msra.mxu0 0.0
    %175 = vmatprep.subr.mxu0 0.0
    %176 = vmatpush2.msra.mxu0 0.0
    %177 = vmatprep.subr.mxu0 0.0
    %178 = vmatpush2.msra.mxu0 0.0
    %179 = vmatprep.subr.mxu0 0.0
    %180 = vmatpush2.msra.mxu0 0.0
    %181 = vmatprep.subr.mxu0 0.0
    %182 = vmatpush2.msra.mxu0 0.0
    %183 = vmatprep.subr.mxu0 0.0
    %184 = vmatpush2.msra.mxu0 0.0
    %185 = vmatprep.subr.mxu0 0.0
    %186 = vmatpush2.msra.mxu0 0.0
    %187 = vmatprep.subr.mxu0 0.0
    %188 = vmatpush2.msra.mxu0 0.0
    %189 = vmatprep.subr.mxu0 0.0
    %190 = vmatpush2.msra.mxu0 0.0
    %191 = vmatprep.subr.mxu0 0.0
    %192 = vmatpush2.msra.mxu0 0.0
    %193 = vmatprep.subr.mxu0 0.0
    %194 = vmatpush2.msra.mxu0 0.0
    %195 = vmatprep.subr.mxu0 0.0
    %196 = vmatpush2.msra.mxu0 0.0
    %197 = vmatprep.subr.mxu0 0.0
    %198 = vmatpush2.msra.mxu0 0.0
    %199 = vmatprep.subr.mxu0 0.0
    %200 = vmatpush2.msra.mxu0 0.0
    %201 = vmatprep.subr.mxu0 0.0
    %202 = vmatpush2.msra.mxu0 0.0
    %203 = vmatprep.subr.mxu0 0.0
    %204 = vmatpush2.msra.mxu0 0.0
    %205 = vmatprep.mubr.f32.mxu0 0.0
    %206 = vmatmul.mubr.f32.gmra.mxu0 %v129
    %v207 = vpop.f32.mrf.mxu0
    %v208 = vadd.f32 %v120, %v207
    %v209 = vpop.f32.mrf.mxu0
    %v210 = vadd.f32 %v124, %v209
    %211 = vmatprep.mubr.f32.mxu0 0.0
    %212 = vmatmul.mubr.f32.gmra.mxu0 %v132
    %v213 = vpop.f32.mrf.mxu0
    %v214 = vadd.f32 %v120, %v213
    %v215 = vpop.f32.mrf.mxu0
    %v216 = vadd.f32 %v124, %v215
    %217 = vdwg.mxu0
    %v218 = vmax.f32 %v208, 0.0
    %v219 = vmax.f32 %v210, 0.0
    %v220 = vmax.f32 %v214, 0.0
    %v221 = vmax.f32 %v216, 0.0
    %s222 = scalar_lea.vmem %s4, 208
    %v223 = vld [vmem:[%s222] sm:$0xff]
    %v224 = vld [vmem:[%s222 + $0x8] sm:$0xff]
    %v225 = vld [vmem:[%s222 + $0x10] sm:$0xff]
    %v226 = vld [vmem:[%s222 + $0x18] sm:$0xff]
    %v227 = vld [vmem:[%s222 + $0x20] sm:$0xff]
    %v228 = vld [vmem:[%s222 + $0x28] sm:$0xff]
    %v229 = vld [vmem:[%s222 + $0x30] sm:$0xff]
    %v230 = vld [vmem:[%s222 + $0x38] sm:$0xff]
    %v231 = vld [vmem:[%s222 + $0x40] sm:$0xff]
    %v232 = vld [vmem:[%s222 + $0x48] sm:$0xff]
    %v233 = vld [vmem:[%s222 + $0x50] sm:$0xff]
    %v234 = vld [vmem:[%s222 + $0x58] sm:$0xff]
    %v235 = vld [vmem:[%s222 + $0x60] sm:$0xff]
    %v236 = vld [vmem:[%s222 + $0x68] sm:$0xff]
    %v237 = vld [vmem:[%s222 + $0x70] sm:$0xff]
    %v238 = vld [vmem:[%s222 + $0x78] sm:$0xff]
    %v239 = vld [vmem:[%s222 + $0x80] sm:$0xff]
    %v240 = vld [vmem:[%s222 + $0x88] sm:$0xff]
    %v241 = vld [vmem:[%s222 + $0x90] sm:$0xff]
    %v242 = vld [vmem:[%s222 + $0x98] sm:$0xff]
    %v243 = vld [vmem:[%s222 + $0xa0] sm:$0xff]
    %v244 = vld [vmem:[%s222 + $0xa8] sm:$0xff]
    %v245 = vld [vmem:[%s222 + $0xb0] sm:$0xff]
    %v246 = vld [vmem:[%s222 + $0xb8] sm:$0xff]
    %v247 = vld [vmem:[%s222 + $0xc0] sm:$0xf]
    %v248 = vld [vmem:[%s222 + $0xc8] sm:$0xf]
    %v250 = vsel %vm134, %v247, 0
    %v253 = vsel %vm134, %v248, 0
    %255 = vmatprep.subr.mxu0 0.0
    %256 = vmatpush1.msra.mxu0 0.0
    %257 = vmatprep.subr.mxu0 0.0
    %258 = vmatpush1.msra.mxu0 0.0
    %259 = vmatprep.subr.mxu0 0.0
    %260 = vmatpush1.msra.mxu0 0.0
    %261 = vmatprep.subr.mxu0 %v253
    %262 = vmatpush1.msra.mxu0 %v250
    %263 = vmatprep.subr.mxu0 %v246
    %264 = vmatpush1.msra.mxu0 %v245
    %265 = vmatprep.subr.mxu0 %v244
    %266 = vmatpush1.msra.mxu0 %v243
    %267 = vmatprep.subr.mxu0 %v242
    %268 = vmatpush1.msra.mxu0 %v241
    %269 = vmatprep.subr.mxu0 %v240
    %270 = vmatpush1.msra.mxu0 %v239
    %271 = vmatprep.subr.mxu0 %v238
    %272 = vmatpush1.msra.mxu0 %v237
    %273 = vmatprep.subr.mxu0 %v236
    %274 = vmatpush1.msra.mxu0 %v235
    %275 = vmatprep.subr.mxu0 %v234
    %276 = vmatpush1.msra.mxu0 %v233
    %277 = vmatprep.subr.mxu0 %v232
    %278 = vmatpush1.msra.mxu0 %v231
    %279 = vmatprep.subr.mxu0 %v230
    %280 = vmatpush1.msra.mxu0 %v229
    %281 = vmatprep.subr.mxu0 %v228
    %282 = vmatpush1.msra.mxu0 %v227
    %283 = vmatprep.subr.mxu0 %v226
    %284 = vmatpush1.msra.mxu0 %v225
    %285 = vmatprep.subr.mxu0 %v224
    %286 = vmatpush1.msra.mxu0 %v223
    %287 = vmatprep.subr.mxu0 0.0
    %288 = vmatpush2.msra.mxu0 0.0
    %289 = vmatprep.subr.mxu0 0.0
    %290 = vmatpush2.msra.mxu0 0.0
    %291 = vmatprep.subr.mxu0 0.0
    %292 = vmatpush2.msra.mxu0 0.0
    %293 = vmatprep.subr.mxu0 0.0
    %294 = vmatpush2.msra.mxu0 0.0
    %295 = vmatprep.subr.mxu0 0.0
    %296 = vmatpush2.msra.mxu0 0.0
    %297 = vmatprep.subr.mxu0 0.0
    %298 = vmatpush2.msra.mxu0 0.0
    %299 = vmatprep.subr.mxu0 0.0
    %300 = vmatpush2.msra.mxu0 0.0
    %301 = vmatprep.subr.mxu0 0.0
    %302 = vmatpush2.msra.mxu0 0.0
    %303 = vmatprep.subr.mxu0 0.0
    %304 = vmatpush2.msra.mxu0 0.0
    %305 = vmatprep.subr.mxu0 0.0
    %306 = vmatpush2.msra.mxu0 0.0
    %307 = vmatprep.subr.mxu0 0.0
    %308 = vmatpush2.msra.mxu0 0.0
    %309 = vmatprep.subr.mxu0 0.0
    %310 = vmatpush2.msra.mxu0 0.0
    %311 = vmatprep.subr.mxu0 0.0
    %312 = vmatpush2.msra.mxu0 0.0
    %313 = vmatprep.subr.mxu0 0.0
    %314 = vmatpush2.msra.mxu0 0.0
    %315 = vmatprep.subr.mxu0 0.0
    %316 = vmatpush2.msra.mxu0 0.0
    %317 = vmatprep.subr.mxu0 0.0
    %318 = vmatpush2.msra.mxu0 0.0
    %319 = vmatprep.mubr.f32.mxu0 0.0
    %320 = vmatmul.mubr.f32.gmra.mxu0 %v129
    %v321 = vpop.f32.mrf.mxu0
    %v322 = vadd.f32 %v120, %v321
    %v323 = vpop.f32.mrf.mxu0
    %v324 = vadd.f32 %v124, %v323
    %325 = vmatprep.mubr.f32.mxu0 0.0
    %326 = vmatmul.mubr.f32.gmra.mxu0 %v132
    %v327 = vpop.f32.mrf.mxu0
    %v328 = vadd.f32 %v120, %v327
    %v329 = vpop.f32.mrf.mxu0
    %v330 = vadd.f32 %v124, %v329
    %331 = vdwg.mxu0
    %v332 = vmax.f32 %v322, 0.0
    %v333 = vmax.f32 %v324, 0.0
    %v334 = vmax.f32 %v328, 0.0
    %v335 = vmax.f32 %v330, 0.0
    %v336 = vmax.f32 %v218, %v332
    %v337 = vmax.f32 %v219, %v333
    %v338 = vmax.f32 %v220, %v334
    %v339 = vmax.f32 %v221, %v335
    %s340 = scalar_lea.vmem %s4, 416
    %v341 = vld [vmem:[%s340] sm:$0xff]
    %v342 = vld [vmem:[%s340 + $0x8] sm:$0xff]
    %v343 = vld [vmem:[%s340 + $0x10] sm:$0xff]
    %v344 = vld [vmem:[%s340 + $0x18] sm:$0xff]
    %v345 = vld [vmem:[%s340 + $0x20] sm:$0xff]
    %v346 = vld [vmem:[%s340 + $0x28] sm:$0xff]
    %v347 = vld [vmem:[%s340 + $0x30] sm:$0xff]
    %v348 = vld [vmem:[%s340 + $0x38] sm:$0xff]
    %v349 = vld [vmem:[%s340 + $0x40] sm:$0xff]
    %v350 = vld [vmem:[%s340 + $0x48] sm:$0xff]
    %v351 = vld [vmem:[%s340 + $0x50] sm:$0xff]
    %v352 = vld [vmem:[%s340 + $0x58] sm:$0xff]
    %v353 = vld [vmem:[%s340 + $0x60] sm:$0xff]
    %v354 = vld [vmem:[%s340 + $0x68] sm:$0xff]
    %v355 = vld [vmem:[%s340 + $0x70] sm:$0xff]
    %v356 = vld [vmem:[%s340 + $0x78] sm:$0xff]
    %v357 = vld [vmem:[%s340 + $0x80] sm:$0xff]
    %v358 = vld [vmem:[%s340 + $0x88] sm:$0xff]
    %v359 = vld [vmem:[%s340 + $0x90] sm:$0xff]
    %v360 = vld [vmem:[%s340 + $0x98] sm:$0xff]
    %v361 = vld [vmem:[%s340 + $0xa0] sm:$0xff]
    %v362 = vld [vmem:[%s340 + $0xa8] sm:$0xff]
    %v363 = vld [vmem:[%s340 + $0xb0] sm:$0xff]
    %v364 = vld [vmem:[%s340 + $0xb8] sm:$0xff]
    %v365 = vld [vmem:[%s340 + $0xc0] sm:$0xf]
    %v366 = vld [vmem:[%s340 + $0xc8] sm:$0xf]
    %v368 = vsel %vm134, %v365, 0
    %v371 = vsel %vm134, %v366, 0
    %373 = vmatprep.subr.mxu0 0.0
    %374 = vmatpush1.msra.mxu0 0.0
    %375 = vmatprep.subr.mxu0 0.0
    %376 = vmatpush1.msra.mxu0 0.0
    %377 = vmatprep.subr.mxu0 0.0
    %378 = vmatpush1.msra.mxu0 0.0
    %379 = vmatprep.subr.mxu0 %v371
    %380 = vmatpush1.msra.mxu0 %v368
    %381 = vmatprep.subr.mxu0 %v364
    %382 = vmatpush1.msra.mxu0 %v363
    %383 = vmatprep.subr.mxu0 %v362
    %384 = vmatpush1.msra.mxu0 %v361
    %385 = vmatprep.subr.mxu0 %v360
    %386 = vmatpush1.msra.mxu0 %v359
    %387 = vmatprep.subr.mxu0 %v358
    %388 = vmatpush1.msra.mxu0 %v357
    %389 = vmatprep.subr.mxu0 %v356
    %390 = vmatpush1.msra.mxu0 %v355
    %391 = vmatprep.subr.mxu0 %v354
    %392 = vmatpush1.msra.mxu0 %v353
    %393 = vmatprep.subr.mxu0 %v352
    %394 = vmatpush1.msra.mxu0 %v351
    %395 = vmatprep.subr.mxu0 %v350
    %396 = vmatpush1.msra.mxu0 %v349
    %397 = vmatprep.subr.mxu0 %v348
    %398 = vmatpush1.msra.mxu0 %v347
    %399 = vmatprep.subr.mxu0 %v346
    %400 = vmatpush1.msra.mxu0 %v345
    %401 = vmatprep.subr.mxu0 %v344
    %402 = vmatpush1.msra.mxu0 %v343
    %403 = vmatprep.subr.mxu0 %v342
    %404 = vmatpush1.msra.mxu0 %v341
    %405 = vmatprep.subr.mxu0 0.0
    %406 = vmatpush2.msra.mxu0 0.0
    %407 = vmatprep.subr.mxu0 0.0
    %408 = vmatpush2.msra.mxu0 0.0
    %409 = vmatprep.subr.mxu0 0.0
    %410 = vmatpush2.msra.mxu0 0.0
    %411 = vmatprep.subr.mxu0 0.0
    %412 = vmatpush2.msra.mxu0 0.0
    %413 = vmatprep.subr.mxu0 0.0
    %414 = vmatpush2.msra.mxu0 0.0
    %415 = vmatprep.subr.mxu0 0.0
    %416 = vmatpush2.msra.mxu0 0.0
    %417 = vmatprep.subr.mxu0 0.0
    %418 = vmatpush2.msra.mxu0 0.0
    %419 = vmatprep.subr.mxu0 0.0
    %420 = vmatpush2.msra.mxu0 0.0
    %421 = vmatprep.subr.mxu0 0.0
    %422 = vmatpush2.msra.mxu0 0.0
    %423 = vmatprep.subr.mxu0 0.0
    %424 = vmatpush2.msra.mxu0 0.0
    %425 = vmatprep.subr.mxu0 0.0
    %426 = vmatpush2.msra.mxu0 0.0
    %427 = vmatprep.subr.mxu0 0.0
    %428 = vmatpush2.msra.mxu0 0.0
    %429 = vmatprep.subr.mxu0 0.0
    %430 = vmatpush2.msra.mxu0 0.0
    %431 = vmatprep.subr.mxu0 0.0
    %432 = vmatpush2.msra.mxu0 0.0
    %433 = vmatprep.subr.mxu0 0.0
    %434 = vmatpush2.msra.mxu0 0.0
    %435 = vmatprep.subr.mxu0 0.0
    %436 = vmatpush2.msra.mxu0 0.0
    %437 = vmatprep.mubr.f32.mxu0 0.0
    %438 = vmatmul.mubr.f32.gmra.mxu0 %v129
    %v439 = vpop.f32.mrf.mxu0
    %v440 = vadd.f32 %v120, %v439
    %v441 = vpop.f32.mrf.mxu0
    %v442 = vadd.f32 %v124, %v441
    %443 = vmatprep.mubr.f32.mxu0 0.0
    %444 = vmatmul.mubr.f32.gmra.mxu0 %v132
    %v445 = vpop.f32.mrf.mxu0
    %v446 = vadd.f32 %v120, %v445
    %v447 = vpop.f32.mrf.mxu0
    %v448 = vadd.f32 %v124, %v447
    %449 = vdwg.mxu0
    %v450 = vmax.f32 %v440, 0.0
    %v451 = vmax.f32 %v442, 0.0
    %v452 = vmax.f32 %v446, 0.0
    %v453 = vmax.f32 %v448, 0.0
    %v454 = vmax.f32 %v336, %v450
    %v455 = vmax.f32 %v337, %v451
    %v456 = vmax.f32 %v338, %v452
    %v457 = vmax.f32 %v339, %v453
    %s458 = scalar_lea.vmem %s4, 624
    %v459 = vld [vmem:[%s458] sm:$0xff]
    %v460 = vld [vmem:[%s458 + $0x8] sm:$0xff]
    %v461 = vld [vmem:[%s458 + $0x10] sm:$0xff]
    %v462 = vld [vmem:[%s458 + $0x18] sm:$0xff]
    %v463 = vld [vmem:[%s458 + $0x20] sm:$0xff]
    %v464 = vld [vmem:[%s458 + $0x28] sm:$0xff]
    %v465 = vld [vmem:[%s458 + $0x30] sm:$0xff]
    %v466 = vld [vmem:[%s458 + $0x38] sm:$0xff]
    %v467 = vld [vmem:[%s458 + $0x40] sm:$0xff]
    %v468 = vld [vmem:[%s458 + $0x48] sm:$0xff]
    %v469 = vld [vmem:[%s458 + $0x50] sm:$0xff]
    %v470 = vld [vmem:[%s458 + $0x58] sm:$0xff]
    %v471 = vld [vmem:[%s458 + $0x60] sm:$0xff]
    %v472 = vld [vmem:[%s458 + $0x68] sm:$0xff]
    %v473 = vld [vmem:[%s458 + $0x70] sm:$0xff]
    %v474 = vld [vmem:[%s458 + $0x78] sm:$0xff]
    %v475 = vld [vmem:[%s458 + $0x80] sm:$0xff]
    %v476 = vld [vmem:[%s458 + $0x88] sm:$0xff]
    %v477 = vld [vmem:[%s458 + $0x90] sm:$0xff]
    %v478 = vld [vmem:[%s458 + $0x98] sm:$0xff]
    %v479 = vld [vmem:[%s458 + $0xa0] sm:$0xff]
    %v480 = vld [vmem:[%s458 + $0xa8] sm:$0xff]
    %v481 = vld [vmem:[%s458 + $0xb0] sm:$0xff]
    %v482 = vld [vmem:[%s458 + $0xb8] sm:$0xff]
    %v483 = vld [vmem:[%s458 + $0xc0] sm:$0xf]
    %v484 = vld [vmem:[%s458 + $0xc8] sm:$0xf]
    %v486 = vsel %vm134, %v483, 0
    %v489 = vsel %vm134, %v484, 0
    %491 = vmatprep.subr.mxu0 0.0
    %492 = vmatpush1.msra.mxu0 0.0
    %493 = vmatprep.subr.mxu0 0.0
    %494 = vmatpush1.msra.mxu0 0.0
    %495 = vmatprep.subr.mxu0 0.0
    %496 = vmatpush1.msra.mxu0 0.0
    %497 = vmatprep.subr.mxu0 %v489
    %498 = vmatpush1.msra.mxu0 %v486
    %499 = vmatprep.subr.mxu0 %v482
    %500 = vmatpush1.msra.mxu0 %v481
    %501 = vmatprep.subr.mxu0 %v480
    %502 = vmatpush1.msra.mxu0 %v479
    %503 = vmatprep.subr.mxu0 %v478
    %504 = vmatpush1.msra.mxu0 %v477
    %505 = vmatprep.subr.mxu0 %v476
    %506 = vmatpush1.msra.mxu0 %v475
    %507 = vmatprep.subr.mxu0 %v474
    %508 = vmatpush1.msra.mxu0 %v473
    %509 = vmatprep.subr.mxu0 %v472
    %510 = vmatpush1.msra.mxu0 %v471
    %511 = vmatprep.subr.mxu0 %v470
    %512 = vmatpush1.msra.mxu0 %v469
    %513 = vmatprep.subr.mxu0 %v468
    %514 = vmatpush1.msra.mxu0 %v467
    %515 = vmatprep.subr.mxu0 %v466
    %516 = vmatpush1.msra.mxu0 %v465
    %517 = vmatprep.subr.mxu0 %v464
    %518 = vmatpush1.msra.mxu0 %v463
    %519 = vmatprep.subr.mxu0 %v462
    %520 = vmatpush1.msra.mxu0 %v461
    %521 = vmatprep.subr.mxu0 %v460
    %522 = vmatpush1.msra.mxu0 %v459
    %523 = vmatprep.subr.mxu0 0.0
    %524 = vmatpush2.msra.mxu0 0.0
    %525 = vmatprep.subr.mxu0 0.0
    %526 = vmatpush2.msra.mxu0 0.0
    %527 = vmatprep.subr.mxu0 0.0
    %528 = vmatpush2.msra.mxu0 0.0
    %529 = vmatprep.subr.mxu0 0.0
    %530 = vmatpush2.msra.mxu0 0.0
    %531 = vmatprep.subr.mxu0 0.0
    %532 = vmatpush2.msra.mxu0 0.0
    %533 = vmatprep.subr.mxu0 0.0
    %534 = vmatpush2.msra.mxu0 0.0
    %535 = vmatprep.subr.mxu0 0.0
    %536 = vmatpush2.msra.mxu0 0.0
    %537 = vmatprep.subr.mxu0 0.0
    %538 = vmatpush2.msra.mxu0 0.0
    %539 = vmatprep.subr.mxu0 0.0
    %540 = vmatpush2.msra.mxu0 0.0
    %541 = vmatprep.subr.mxu0 0.0
    %542 = vmatpush2.msra.mxu0 0.0
    %543 = vmatprep.subr.mxu0 0.0
    %544 = vmatpush2.msra.mxu0 0.0
    %545 = vmatprep.subr.mxu0 0.0
    %546 = vmatpush2.msra.mxu0 0.0
    %547 = vmatprep.subr.mxu0 0.0
    %548 = vmatpush2.msra.mxu0 0.0
    %549 = vmatprep.subr.mxu0 0.0
    %550 = vmatpush2.msra.mxu0 0.0
    %551 = vmatprep.subr.mxu0 0.0
    %552 = vmatpush2.msra.mxu0 0.0
    %553 = vmatprep.subr.mxu0 0.0
    %554 = vmatpush2.msra.mxu0 0.0
    %555 = vmatprep.mubr.f32.mxu0 0.0
    %556 = vmatmul.mubr.f32.gmra.mxu0 %v129
    %v557 = vpop.f32.mrf.mxu0
    %v558 = vadd.f32 %v120, %v557
    %v559 = vpop.f32.mrf.mxu0
    %v560 = vadd.f32 %v124, %v559
    %561 = vmatprep.mubr.f32.mxu0 0.0
    %562 = vmatmul.mubr.f32.gmra.mxu0 %v132
    %v563 = vpop.f32.mrf.mxu0
    %v564 = vadd.f32 %v120, %v563
    %v565 = vpop.f32.mrf.mxu0
    %v566 = vadd.f32 %v124, %v565
    %567 = vdwg.mxu0
    %v568 = vmax.f32 %v558, 0.0
    %v569 = vmax.f32 %v560, 0.0
    %v570 = vmax.f32 %v564, 0.0
    %v571 = vmax.f32 %v566, 0.0
    %v572 = vmax.f32 %v454, %v568
    %v573 = vmax.f32 %v455, %v569
    %v574 = vmax.f32 %v456, %v570
    %v575 = vmax.f32 %v457, %v571
    %v576 = vld [vmem:[%s6] sm:$0xff]
    %v577 = vld [vmem:[%s6 + $0x8] sm:$0xff]
    %v578 = vld [vmem:[%s6 + $0x10] sm:$0xff]
    %v579 = vld [vmem:[%s6 + $0x18] sm:$0xff]
    %v580 = vld [vmem:[%s6 + $0x20] sm:$0xff]
    %v581 = vld [vmem:[%s6 + $0x28] sm:$0xff]
    %v582 = vld [vmem:[%s6 + $0x30] sm:$0xff]
    %v583 = vld [vmem:[%s6 + $0x38] sm:$0xff]
    %v584 = vld [vmem:[%s6 + $0x40] sm:$0xff]
    %v585 = vld [vmem:[%s6 + $0x48] sm:$0xff]
    %v586 = vld [vmem:[%s6 + $0x50] sm:$0xff]
    %v587 = vld [vmem:[%s6 + $0x58] sm:$0xff]
    %v588 = vld [vmem:[%s6 + $0x60] sm:$0xff]
    %v589 = vld [vmem:[%s6 + $0x68] sm:$0xff]
    %v590 = vld [vmem:[%s6 + $0x70] sm:$0xff]
    %v591 = vld [vmem:[%s6 + $0x78] sm:$0xff]
    %v592 = vld [vmem:[%s6 + $0x80] sm:$0xff]
    %v593 = vld [vmem:[%s6 + $0x88] sm:$0xff]
    %v594 = vld [vmem:[%s6 + $0x90] sm:$0xff]
    %v595 = vld [vmem:[%s6 + $0x98] sm:$0xff]
    %v596 = vld [vmem:[%s6 + $0xa0] sm:$0xff]
    %v597 = vld [vmem:[%s6 + $0xa8] sm:$0xff]
    %v598 = vld [vmem:[%s6 + $0xb0] sm:$0xff]
    %v599 = vld [vmem:[%s6 + $0xb8] sm:$0xff]
    %v600 = vld [vmem:[%s6 + $0xc0] sm:$0xff]
    %v601 = vld [vmem:[%s7] sm:$0x1]
    %v603 = vlaneseq
    %v604 = vshrl.u32 %v603, 7
    %v605 = vsub.s32 0, %v604
    %v606 = vrot.slane %v601, %v605
    %vm608 = vcmask 588800
    %v610 = vsel %vm608, %v573, 0
    %v613 = vsel %vm608, %v575, 0
    %615 = vmatprep.subr.mxu0 0.0
    %616 = vmatpush1.msra.mxu0 %v591
    %617 = vmatprep.subr.mxu0 0.0
    %618 = vmatpush1.msra.mxu0 %v590
    %619 = vmatprep.subr.mxu0 0.0
    %620 = vmatpush1.msra.mxu0 %v589
    %621 = vmatprep.subr.mxu0 0.0
    %622 = vmatpush1.msra.mxu0 %v588
    %623 = vmatprep.subr.mxu0 0.0
    %624 = vmatpush1.msra.mxu0 %v587
    %625 = vmatprep.subr.mxu0 0.0
    %626 = vmatpush1.msra.mxu0 %v586
    %627 = vmatprep.subr.mxu0 0.0
    %628 = vmatpush1.msra.mxu0 %v585
    %629 = vmatprep.subr.mxu0 0.0
    %630 = vmatpush1.msra.mxu0 %v584
    %631 = vmatprep.subr.mxu0 0.0
    %632 = vmatpush1.msra.mxu0 %v583
    %633 = vmatprep.subr.mxu0 0.0
    %634 = vmatpush1.msra.mxu0 %v582
    %635 = vmatprep.subr.mxu0 0.0
    %636 = vmatpush1.msra.mxu0 %v581
    %637 = vmatprep.subr.mxu0 0.0
    %638 = vmatpush1.msra.mxu0 %v580
    %639 = vmatprep.subr.mxu0 0.0
    %640 = vmatpush1.msra.mxu0 %v579
    %641 = vmatprep.subr.mxu0 0.0
    %642 = vmatpush1.msra.mxu0 %v578
    %643 = vmatprep.subr.mxu0 0.0
    %644 = vmatpush1.msra.mxu0 %v577
    %645 = vmatprep.subr.mxu0 0.0
    %646 = vmatpush1.msra.mxu0 %v576
    %647 = vmatprep.subr.mxu0 0.0
    %648 = vmatpush2.msra.mxu0 0.0
    %649 = vmatprep.subr.mxu0 0.0
    %650 = vmatpush2.msra.mxu0 0.0
    %651 = vmatprep.subr.mxu0 0.0
    %652 = vmatpush2.msra.mxu0 0.0
    %653 = vmatprep.subr.mxu0 0.0
    %654 = vmatpush2.msra.mxu0 0.0
    %655 = vmatprep.subr.mxu0 0.0
    %656 = vmatpush2.msra.mxu0 0.0
    %657 = vmatprep.subr.mxu0 0.0
    %658 = vmatpush2.msra.mxu0 0.0
    %659 = vmatprep.subr.mxu0 0.0
    %660 = vmatpush2.msra.mxu0 0.0
    %661 = vmatprep.subr.mxu0 0.0
    %662 = vmatpush2.msra.mxu0 %v600
    %663 = vmatprep.subr.mxu0 0.0
    %664 = vmatpush2.msra.mxu0 %v599
    %665 = vmatprep.subr.mxu0 0.0
    %666 = vmatpush2.msra.mxu0 %v598
    %667 = vmatprep.subr.mxu0 0.0
    %668 = vmatpush2.msra.mxu0 %v597
    %669 = vmatprep.subr.mxu0 0.0
    %670 = vmatpush2.msra.mxu0 %v596
    %671 = vmatprep.subr.mxu0 0.0
    %672 = vmatpush2.msra.mxu0 %v595
    %673 = vmatprep.subr.mxu0 0.0
    %674 = vmatpush2.msra.mxu0 %v594
    %675 = vmatprep.subr.mxu0 0.0
    %676 = vmatpush2.msra.mxu0 %v593
    %677 = vmatprep.subr.mxu0 0.0
    %678 = vmatpush2.msra.mxu0 %v592
    %679 = vmatprep.mubr.f32.mxu0 %v610
    %680 = vmatmul.mubr.f32.gmra.mxu0 %v572
    %v681 = vpop.f32.mrf.mxu0
    %v682 = vadd.f32 %v606, %v681
    %v683 = vpop.f32.mrf.mxu0
    %684 = vmatprep.mubr.f32.mxu0 %v613
    %685 = vmatmul.mubr.f32.gmra.mxu0 %v574
    %v686 = vpop.f32.mrf.mxu0
    %v687 = vadd.f32 %v606, %v686
    %v688 = vpop.f32.mrf.mxu0
    %689 = vdwg.mxu0
    %v690 = vmax.f32 %v682, 0.0
    %v691 = vmax.f32 %v687, 0.0
    %s692 = scalar_lea.vmem %s6, 200
    %v693 = vld [vmem:[%s692] sm:$0xff]
    %v694 = vld [vmem:[%s692 + $0x8] sm:$0xff]
    %v695 = vld [vmem:[%s692 + $0x10] sm:$0xff]
    %v696 = vld [vmem:[%s692 + $0x18] sm:$0xff]
    %v697 = vld [vmem:[%s692 + $0x20] sm:$0xff]
    %v698 = vld [vmem:[%s692 + $0x28] sm:$0xff]
    %v699 = vld [vmem:[%s692 + $0x30] sm:$0xff]
    %v700 = vld [vmem:[%s692 + $0x38] sm:$0xff]
    %v701 = vld [vmem:[%s692 + $0x40] sm:$0xff]
    %v702 = vld [vmem:[%s692 + $0x48] sm:$0xff]
    %v703 = vld [vmem:[%s692 + $0x50] sm:$0xff]
    %v704 = vld [vmem:[%s692 + $0x58] sm:$0xff]
    %v705 = vld [vmem:[%s692 + $0x60] sm:$0xff]
    %v706 = vld [vmem:[%s692 + $0x68] sm:$0xff]
    %v707 = vld [vmem:[%s692 + $0x70] sm:$0xff]
    %v708 = vld [vmem:[%s692 + $0x78] sm:$0xff]
    %v709 = vld [vmem:[%s692 + $0x80] sm:$0xff]
    %v710 = vld [vmem:[%s692 + $0x88] sm:$0xff]
    %v711 = vld [vmem:[%s692 + $0x90] sm:$0xff]
    %v712 = vld [vmem:[%s692 + $0x98] sm:$0xff]
    %v713 = vld [vmem:[%s692 + $0xa0] sm:$0xff]
    %v714 = vld [vmem:[%s692 + $0xa8] sm:$0xff]
    %v715 = vld [vmem:[%s692 + $0xb0] sm:$0xff]
    %v716 = vld [vmem:[%s692 + $0xb8] sm:$0xff]
    %v717 = vld [vmem:[%s692 + $0xc0] sm:$0xff]
    %718 = vmatprep.subr.mxu0 0.0
    %719 = vmatpush1.msra.mxu0 %v708
    %720 = vmatprep.subr.mxu0 0.0
    %721 = vmatpush1.msra.mxu0 %v707
    %722 = vmatprep.subr.mxu0 0.0
    %723 = vmatpush1.msra.mxu0 %v706
    %724 = vmatprep.subr.mxu0 0.0
    %725 = vmatpush1.msra.mxu0 %v705
    %726 = vmatprep.subr.mxu0 0.0
    %727 = vmatpush1.msra.mxu0 %v704
    %728 = vmatprep.subr.mxu0 0.0
    %729 = vmatpush1.msra.mxu0 %v703
    %730 = vmatprep.subr.mxu0 0.0
    %731 = vmatpush1.msra.mxu0 %v702
    %732 = vmatprep.subr.mxu0 0.0
    %733 = vmatpush1.msra.mxu0 %v701
    %734 = vmatprep.subr.mxu0 0.0
    %735 = vmatpush1.msra.mxu0 %v700
    %736 = vmatprep.subr.mxu0 0.0
    %737 = vmatpush1.msra.mxu0 %v699
    %738 = vmatprep.subr.mxu0 0.0
    %739 = vmatpush1.msra.mxu0 %v698
    %740 = vmatprep.subr.mxu0 0.0
    %741 = vmatpush1.msra.mxu0 %v697
    %742 = vmatprep.subr.mxu0 0.0
    %743 = vmatpush1.msra.mxu0 %v696
    %744 = vmatprep.subr.mxu0 0.0
    %745 = vmatpush1.msra.mxu0 %v695
    %746 = vmatprep.subr.mxu0 0.0
    %747 = vmatpush1.msra.mxu0 %v694
    %748 = vmatprep.subr.mxu0 0.0
    %749 = vmatpush1.msra.mxu0 %v693
    %750 = vmatprep.subr.mxu0 0.0
    %751 = vmatpush2.msra.mxu0 0.0
    %752 = vmatprep.subr.mxu0 0.0
    %753 = vmatpush2.msra.mxu0 0.0
    %754 = vmatprep.subr.mxu0 0.0
    %755 = vmatpush2.msra.mxu0 0.0
    %756 = vmatprep.subr.mxu0 0.0
    %757 = vmatpush2.msra.mxu0 0.0
    %758 = vmatprep.subr.mxu0 0.0
    %759 = vmatpush2.msra.mxu0 0.0
    %760 = vmatprep.subr.mxu0 0.0
    %761 = vmatpush2.msra.mxu0 0.0
    %762 = vmatprep.subr.mxu0 0.0
    %763 = vmatpush2.msra.mxu0 0.0
    %764 = vmatprep.subr.mxu0 0.0
    %765 = vmatpush2.msra.mxu0 %v717
    %766 = vmatprep.subr.mxu0 0.0
    %767 = vmatpush2.msra.mxu0 %v716
    %768 = vmatprep.subr.mxu0 0.0
    %769 = vmatpush2.msra.mxu0 %v715
    %770 = vmatprep.subr.mxu0 0.0
    %771 = vmatpush2.msra.mxu0 %v714
    %772 = vmatprep.subr.mxu0 0.0
    %773 = vmatpush2.msra.mxu0 %v713
    %774 = vmatprep.subr.mxu0 0.0
    %775 = vmatpush2.msra.mxu0 %v712
    %776 = vmatprep.subr.mxu0 0.0
    %777 = vmatpush2.msra.mxu0 %v711
    %778 = vmatprep.subr.mxu0 0.0
    %779 = vmatpush2.msra.mxu0 %v710
    %780 = vmatprep.subr.mxu0 0.0
    %781 = vmatpush2.msra.mxu0 %v709
    %782 = vmatprep.mubr.f32.mxu0 %v610
    %783 = vmatmul.mubr.f32.gmra.mxu0 %v572
    %v784 = vpop.f32.mrf.mxu0
    %v785 = vadd.f32 %v606, %v784
    %v786 = vpop.f32.mrf.mxu0
    %787 = vmatprep.mubr.f32.mxu0 %v613
    %788 = vmatmul.mubr.f32.gmra.mxu0 %v574
    %v789 = vpop.f32.mrf.mxu0
    %v790 = vadd.f32 %v606, %v789
    %v791 = vpop.f32.mrf.mxu0
    %792 = vdwg.mxu0
    %v793 = vmax.f32 %v785, 0.0
    %v794 = vmax.f32 %v790, 0.0
    %v795 = vmax.f32 %v690, %v793
    %v796 = vmax.f32 %v691, %v794
    %s797 = scalar_lea.vmem %s6, 400
    %v798 = vld [vmem:[%s797] sm:$0xff]
    %v799 = vld [vmem:[%s797 + $0x8] sm:$0xff]
    %v800 = vld [vmem:[%s797 + $0x10] sm:$0xff]
    %v801 = vld [vmem:[%s797 + $0x18] sm:$0xff]
    %v802 = vld [vmem:[%s797 + $0x20] sm:$0xff]
    %v803 = vld [vmem:[%s797 + $0x28] sm:$0xff]
    %v804 = vld [vmem:[%s797 + $0x30] sm:$0xff]
    %v805 = vld [vmem:[%s797 + $0x38] sm:$0xff]
    %v806 = vld [vmem:[%s797 + $0x40] sm:$0xff]
    %v807 = vld [vmem:[%s797 + $0x48] sm:$0xff]
    %v808 = vld [vmem:[%s797 + $0x50] sm:$0xff]
    %v809 = vld [vmem:[%s797 + $0x58] sm:$0xff]
    %v810 = vld [vmem:[%s797 + $0x60] sm:$0xff]
    %v811 = vld [vmem:[%s797 + $0x68] sm:$0xff]
    %v812 = vld [vmem:[%s797 + $0x70] sm:$0xff]
    %v813 = vld [vmem:[%s797 + $0x78] sm:$0xff]
    %v814 = vld [vmem:[%s797 + $0x80] sm:$0xff]
    %v815 = vld [vmem:[%s797 + $0x88] sm:$0xff]
    %v816 = vld [vmem:[%s797 + $0x90] sm:$0xff]
    %v817 = vld [vmem:[%s797 + $0x98] sm:$0xff]
    %v818 = vld [vmem:[%s797 + $0xa0] sm:$0xff]
    %v819 = vld [vmem:[%s797 + $0xa8] sm:$0xff]
    %v820 = vld [vmem:[%s797 + $0xb0] sm:$0xff]
    %v821 = vld [vmem:[%s797 + $0xb8] sm:$0xff]
    %v822 = vld [vmem:[%s797 + $0xc0] sm:$0xff]
    %823 = vmatprep.subr.mxu0 0.0
    %824 = vmatpush1.msra.mxu0 %v813
    %825 = vmatprep.subr.mxu0 0.0
    %826 = vmatpush1.msra.mxu0 %v812
    %827 = vmatprep.subr.mxu0 0.0
    %828 = vmatpush1.msra.mxu0 %v811
    %829 = vmatprep.subr.mxu0 0.0
    %830 = vmatpush1.msra.mxu0 %v810
    %831 = vmatprep.subr.mxu0 0.0
    %832 = vmatpush1.msra.mxu0 %v809
    %833 = vmatprep.subr.mxu0 0.0
    %834 = vmatpush1.msra.mxu0 %v808
    %835 = vmatprep.subr.mxu0 0.0
    %836 = vmatpush1.msra.mxu0 %v807
    %837 = vmatprep.subr.mxu0 0.0
    %838 = vmatpush1.msra.mxu0 %v806
    %839 = vmatprep.subr.mxu0 0.0
    %840 = vmatpush1.msra.mxu0 %v805
    %841 = vmatprep.subr.mxu0 0.0
    %842 = vmatpush1.msra.mxu0 %v804
    %843 = vmatprep.subr.mxu0 0.0
    %844 = vmatpush1.msra.mxu0 %v803
    %845 = vmatprep.subr.mxu0 0.0
    %846 = vmatpush1.msra.mxu0 %v802
    %847 = vmatprep.subr.mxu0 0.0
    %848 = vmatpush1.msra.mxu0 %v801
    %849 = vmatprep.subr.mxu0 0.0
    %850 = vmatpush1.msra.mxu0 %v800
    %851 = vmatprep.subr.mxu0 0.0
    %852 = vmatpush1.msra.mxu0 %v799
    %853 = vmatprep.subr.mxu0 0.0
    %854 = vmatpush1.msra.mxu0 %v798
    %855 = vmatprep.subr.mxu0 0.0
    %856 = vmatpush2.msra.mxu0 0.0
    %857 = vmatprep.subr.mxu0 0.0
    %858 = vmatpush2.msra.mxu0 0.0
    %859 = vmatprep.subr.mxu0 0.0
    %860 = vmatpush2.msra.mxu0 0.0
    %861 = vmatprep.subr.mxu0 0.0
    %862 = vmatpush2.msra.mxu0 0.0
    %863 = vmatprep.subr.mxu0 0.0
    %864 = vmatpush2.msra.mxu0 0.0
    %865 = vmatprep.subr.mxu0 0.0
    %866 = vmatpush2.msra.mxu0 0.0
    %867 = vmatprep.subr.mxu0 0.0
    %868 = vmatpush2.msra.mxu0 0.0
    %869 = vmatprep.subr.mxu0 0.0
    %870 = vmatpush2.msra.mxu0 %v822
    %871 = vmatprep.subr.mxu0 0.0
    %872 = vmatpush2.msra.mxu0 %v821
    %873 = vmatprep.subr.mxu0 0.0
    %874 = vmatpush2.msra.mxu0 %v820
    %875 = vmatprep.subr.mxu0 0.0
    %876 = vmatpush2.msra.mxu0 %v819
    %877 = vmatprep.subr.mxu0 0.0
    %878 = vmatpush2.msra.mxu0 %v818
    %879 = vmatprep.subr.mxu0 0.0
    %880 = vmatpush2.msra.mxu0 %v817
    %881 = vmatprep.subr.mxu0 0.0
    %882 = vmatpush2.msra.mxu0 %v816
    %883 = vmatprep.subr.mxu0 0.0
    %884 = vmatpush2.msra.mxu0 %v815
    %885 = vmatprep.subr.mxu0 0.0
    %886 = vmatpush2.msra.mxu0 %v814
    %887 = vmatprep.mubr.f32.mxu0 %v610
    %888 = vmatmul.mubr.f32.gmra.mxu0 %v572
    %v889 = vpop.f32.mrf.mxu0
    %v890 = vadd.f32 %v606, %v889
    %v891 = vpop.f32.mrf.mxu0
    %892 = vmatprep.mubr.f32.mxu0 %v613
    %893 = vmatmul.mubr.f32.gmra.mxu0 %v574
    %v894 = vpop.f32.mrf.mxu0
    %v895 = vadd.f32 %v606, %v894
    %v896 = vpop.f32.mrf.mxu0
    %897 = vdwg.mxu0
    %v898 = vmax.f32 %v890, 0.0
    %v899 = vmax.f32 %v895, 0.0
    %v900 = vmax.f32 %v795, %v898
    %v901 = vmax.f32 %v796, %v899
    %s902 = scalar_lea.vmem %s6, 600
    %v903 = vld [vmem:[%s902] sm:$0xff]
    %v904 = vld [vmem:[%s902 + $0x8] sm:$0xff]
    %v905 = vld [vmem:[%s902 + $0x10] sm:$0xff]
    %v906 = vld [vmem:[%s902 + $0x18] sm:$0xff]
    %v907 = vld [vmem:[%s902 + $0x20] sm:$0xff]
    %v908 = vld [vmem:[%s902 + $0x28] sm:$0xff]
    %v909 = vld [vmem:[%s902 + $0x30] sm:$0xff]
    %v910 = vld [vmem:[%s902 + $0x38] sm:$0xff]
    %v911 = vld [vmem:[%s902 + $0x40] sm:$0xff]
    %v912 = vld [vmem:[%s902 + $0x48] sm:$0xff]
    %v913 = vld [vmem:[%s902 + $0x50] sm:$0xff]
    %v914 = vld [vmem:[%s902 + $0x58] sm:$0xff]
    %v915 = vld [vmem:[%s902 + $0x60] sm:$0xff]
    %v916 = vld [vmem:[%s902 + $0x68] sm:$0xff]
    %v917 = vld [vmem:[%s902 + $0x70] sm:$0xff]
    %v918 = vld [vmem:[%s902 + $0x78] sm:$0xff]
    %v919 = vld [vmem:[%s902 + $0x80] sm:$0xff]
    %v920 = vld [vmem:[%s902 + $0x88] sm:$0xff]
    %v921 = vld [vmem:[%s902 + $0x90] sm:$0xff]
    %v922 = vld [vmem:[%s902 + $0x98] sm:$0xff]
    %v923 = vld [vmem:[%s902 + $0xa0] sm:$0xff]
    %v924 = vld [vmem:[%s902 + $0xa8] sm:$0xff]
    %v925 = vld [vmem:[%s902 + $0xb0] sm:$0xff]
    %v926 = vld [vmem:[%s902 + $0xb8] sm:$0xff]
    %v927 = vld [vmem:[%s902 + $0xc0] sm:$0xff]
    %928 = vmatprep.subr.mxu0 0.0
    %929 = vmatpush1.msra.mxu0 %v918
    %930 = vmatprep.subr.mxu0 0.0
    %931 = vmatpush1.msra.mxu0 %v917
    %932 = vmatprep.subr.mxu0 0.0
    %933 = vmatpush1.msra.mxu0 %v916
    %934 = vmatprep.subr.mxu0 0.0
    %935 = vmatpush1.msra.mxu0 %v915
    %936 = vmatprep.subr.mxu0 0.0
    %937 = vmatpush1.msra.mxu0 %v914
    %938 = vmatprep.subr.mxu0 0.0
    %939 = vmatpush1.msra.mxu0 %v913
    %940 = vmatprep.subr.mxu0 0.0
    %941 = vmatpush1.msra.mxu0 %v912
    %942 = vmatprep.subr.mxu0 0.0
    %943 = vmatpush1.msra.mxu0 %v911
    %944 = vmatprep.subr.mxu0 0.0
    %945 = vmatpush1.msra.mxu0 %v910
    %946 = vmatprep.subr.mxu0 0.0
    %947 = vmatpush1.msra.mxu0 %v909
    %948 = vmatprep.subr.mxu0 0.0
    %949 = vmatpush1.msra.mxu0 %v908
    %950 = vmatprep.subr.mxu0 0.0
    %951 = vmatpush1.msra.mxu0 %v907
    %952 = vmatprep.subr.mxu0 0.0
    %953 = vmatpush1.msra.mxu0 %v906
    %954 = vmatprep.subr.mxu0 0.0
    %955 = vmatpush1.msra.mxu0 %v905
    %956 = vmatprep.subr.mxu0 0.0
    %957 = vmatpush1.msra.mxu0 %v904
    %958 = vmatprep.subr.mxu0 0.0
    %959 = vmatpush1.msra.mxu0 %v903
    %960 = vmatprep.subr.mxu0 0.0
    %961 = vmatpush2.msra.mxu0 0.0
    %962 = vmatprep.subr.mxu0 0.0
    %963 = vmatpush2.msra.mxu0 0.0
    %964 = vmatprep.subr.mxu0 0.0
    %965 = vmatpush2.msra.mxu0 0.0
    %966 = vmatprep.subr.mxu0 0.0
    %967 = vmatpush2.msra.mxu0 0.0
    %968 = vmatprep.subr.mxu0 0.0
    %969 = vmatpush2.msra.mxu0 0.0
    %970 = vmatprep.subr.mxu0 0.0
    %971 = vmatpush2.msra.mxu0 0.0
    %972 = vmatprep.subr.mxu0 0.0
    %973 = vmatpush2.msra.mxu0 0.0
    %974 = vmatprep.subr.mxu0 0.0
    %975 = vmatpush2.msra.mxu0 %v927
    %976 = vmatprep.subr.mxu0 0.0
    %977 = vmatpush2.msra.mxu0 %v926
    %978 = vmatprep.subr.mxu0 0.0
    %979 = vmatpush2.msra.mxu0 %v925
    %980 = vmatprep.subr.mxu0 0.0
    %981 = vmatpush2.msra.mxu0 %v924
    %982 = vmatprep.subr.mxu0 0.0
    %983 = vmatpush2.msra.mxu0 %v923
    %984 = vmatprep.subr.mxu0 0.0
    %985 = vmatpush2.msra.mxu0 %v922
    %986 = vmatprep.subr.mxu0 0.0
    %987 = vmatpush2.msra.mxu0 %v921
    %988 = vmatprep.subr.mxu0 0.0
    %989 = vmatpush2.msra.mxu0 %v920
    %990 = vmatprep.subr.mxu0 0.0
    %991 = vmatpush2.msra.mxu0 %v919
    %992 = vmatprep.mubr.f32.mxu0 %v610
    %993 = vmatmul.mubr.f32.gmra.mxu0 %v572
    %v994 = vpop.f32.mrf.mxu0
    %v995 = vadd.f32 %v606, %v994
    %v996 = vpop.f32.mrf.mxu0
    %997 = vmatprep.mubr.f32.mxu0 %v613
    %998 = vmatmul.mubr.f32.gmra.mxu0 %v574
    %v999 = vpop.f32.mrf.mxu0
    %v1000 = vadd.f32 %v606, %v999
    %v1001 = vpop.f32.mrf.mxu0
    %1002 = vdwg.mxu0
    %v1003 = vmax.f32 %v995, 0.0
    %v1004 = vmax.f32 %v1000, 0.0
    %v1005 = vmax.f32 %v900, %v1003
    %v1006 = vmax.f32 %v901, %v1004
    %v1007 = vld [vmem:[%s8] sm:$0xff]
    %v1008 = vld [vmem:[%s8 + $0x8] sm:$0xff]
    %v1009 = vld [vmem:[%s8 + $0x10] sm:$0xff]
    %v1010 = vld [vmem:[%s8 + $0x18] sm:$0xff]
    %v1011 = vld [vmem:[%s8 + $0x20] sm:$0xff]
    %v1012 = vld [vmem:[%s8 + $0x28] sm:$0xff]
    %v1013 = vld [vmem:[%s8 + $0x30] sm:$0xff]
    %v1014 = vld [vmem:[%s8 + $0x38] sm:$0xff]
    %v1015 = vld [vmem:[%s9] sm:$0x1]
    %v1017 = vlaneseq
    %v1018 = vshrl.u32 %v1017, 7
    %v1019 = vsub.s32 0, %v1018
    %v1020 = vrot.slane %v1015, %v1019
    %vm1022 = vcmask 523264
    %v1024 = vsel %vm1022, %v1005, 0
    %v1027 = vsel %vm1022, %v1006, 0
    %1029 = vmatprep.subr.mxu0 0.0
    %1030 = vmatpush1.msra.mxu0 0.0
    %1031 = vmatprep.subr.mxu0 0.0
    %1032 = vmatpush1.msra.mxu0 0.0
    %1033 = vmatprep.subr.mxu0 0.0
    %1034 = vmatpush1.msra.mxu0 0.0
    %1035 = vmatprep.subr.mxu0 0.0
    %1036 = vmatpush1.msra.mxu0 0.0
    %1037 = vmatprep.subr.mxu0 0.0
    %1038 = vmatpush1.msra.mxu0 0.0
    %1039 = vmatprep.subr.mxu0 0.0
    %1040 = vmatpush1.msra.mxu0 0.0
    %1041 = vmatprep.subr.mxu0 0.0
    %1042 = vmatpush1.msra.mxu0 0.0
    %1043 = vmatprep.subr.mxu0 0.0
    %1044 = vmatpush1.msra.mxu0 0.0
    %1045 = vmatprep.subr.mxu0 0.0
    %1046 = vmatpush1.msra.mxu0 %v1014
    %1047 = vmatprep.subr.mxu0 0.0
    %1048 = vmatpush1.msra.mxu0 %v1013
    %1049 = vmatprep.subr.mxu0 0.0
    %1050 = vmatpush1.msra.mxu0 %v1012
    %1051 = vmatprep.subr.mxu0 0.0
    %1052 = vmatpush1.msra.mxu0 %v1011
    %1053 = vmatprep.subr.mxu0 0.0
    %1054 = vmatpush1.msra.mxu0 %v1010
    %1055 = vmatprep.subr.mxu0 0.0
    %1056 = vmatpush1.msra.mxu0 %v1009
    %1057 = vmatprep.subr.mxu0 0.0
    %1058 = vmatpush1.msra.mxu0 %v1008
    %1059 = vmatprep.subr.mxu0 0.0
    %1060 = vmatpush1.msra.mxu0 %v1007
    %1061 = vmatprep.subr.mxu0 0.0
    %1062 = vmatpush2.msra.mxu0 0.0
    %1063 = vmatprep.subr.mxu0 0.0
    %1064 = vmatpush2.msra.mxu0 0.0
    %1065 = vmatprep.subr.mxu0 0.0
    %1066 = vmatpush2.msra.mxu0 0.0
    %1067 = vmatprep.subr.mxu0 0.0
    %1068 = vmatpush2.msra.mxu0 0.0
    %1069 = vmatprep.subr.mxu0 0.0
    %1070 = vmatpush2.msra.mxu0 0.0
    %1071 = vmatprep.subr.mxu0 0.0
    %1072 = vmatpush2.msra.mxu0 0.0
    %1073 = vmatprep.subr.mxu0 0.0
    %1074 = vmatpush2.msra.mxu0 0.0
    %1075 = vmatprep.subr.mxu0 0.0
    %1076 = vmatpush2.msra.mxu0 0.0
    %1077 = vmatprep.subr.mxu0 0.0
    %1078 = vmatpush2.msra.mxu0 0.0
    %1079 = vmatprep.subr.mxu0 0.0
    %1080 = vmatpush2.msra.mxu0 0.0
    %1081 = vmatprep.subr.mxu0 0.0
    %1082 = vmatpush2.msra.mxu0 0.0
    %1083 = vmatprep.subr.mxu0 0.0
    %1084 = vmatpush2.msra.mxu0 0.0
    %1085 = vmatprep.subr.mxu0 0.0
    %1086 = vmatpush2.msra.mxu0 0.0
    %1087 = vmatprep.subr.mxu0 0.0
    %1088 = vmatpush2.msra.mxu0 0.0
    %1089 = vmatprep.subr.mxu0 0.0
    %1090 = vmatpush2.msra.mxu0 0.0
    %1091 = vmatprep.subr.mxu0 0.0
    %1092 = vmatpush2.msra.mxu0 0.0
    %1093 = vmatprep.mubr.f32.mxu0 0.0
    %1094 = vmatmul.mubr.f32.gmra.mxu0 %v1024
    %v1095 = vpop.f32.mrf.mxu0
    %v1096 = vadd.f32 %v1020, %v1095
    %v1097 = vpop.f32.mrf.mxu0
    %1098 = vmatprep.mubr.f32.mxu0 0.0
    %1099 = vmatmul.mubr.f32.gmra.mxu0 %v1027
    %v1100 = vpop.f32.mrf.mxu0
    %v1101 = vadd.f32 %v1020, %v1100
    %v1102 = vpop.f32.mrf.mxu0
    %1103 = vdwg.mxu0
    %v1104 = vld [vmem:[%s1] sm:$0xff]
    %v1105 = vld [vmem:[%s1 + $0x8] sm:$0xff]
    %v1106 = vld [vmem:[%s10] sm:$0xff]
    %v1107 = vld [vmem:[%s10 + $0x8] sm:$0xff]
    %v1108 = vld [vmem:[%s10 + $0x10] sm:$0xff]
    %v1109 = vld [vmem:[%s10 + $0x18] sm:$0x1]
    %v1110 = vld [vmem:[%s11] sm:$0x1]
    %v1112 = vlaneseq
    %v1113 = vshrl.u32 %v1112, 7
    %v1114 = vsub.s32 0, %v1113
    %v1115 = vrot.slane %v1110, %v1114
    %vm1117 = vcmask 203776
    %v1119 = vsel %vm1117, %v1104, 0
    %v1122 = vsel %vm1117, %v1105, 0
    %vm1124 = vcmask 1040384
    %v1126 = vsel %vm1124, %v1109, 0
    %1128 = vmatprep.subr.mxu0 0.0
    %1129 = vmatpush1.msra.mxu0 0.0
    %1130 = vmatprep.subr.mxu0 0.0
    %1131 = vmatpush1.msra.mxu0 0.0
    %1132 = vmatprep.subr.mxu0 0.0
    %1133 = vmatpush1.msra.mxu0 0.0
    %1134 = vmatprep.subr.mxu0 0.0
    %1135 = vmatpush1.msra.mxu0 0.0
    %1136 = vmatprep.subr.mxu0 0.0
    %1137 = vmatpush1.msra.mxu0 0.0
    %1138 = vmatprep.subr.mxu0 0.0
    %1139 = vmatpush1.msra.mxu0 0.0
    %1140 = vmatprep.subr.mxu0 0.0
    %1141 = vmatpush1.msra.mxu0 0.0
    %1142 = vmatprep.subr.mxu0 0.0
    %1143 = vmatpush1.msra.mxu0 0.0
    %1144 = vmatprep.subr.mxu0 0.0
    %1145 = vmatpush1.msra.mxu0 0.0
    %1146 = vmatprep.subr.mxu0 0.0
    %1147 = vmatpush1.msra.mxu0 0.0
    %1148 = vmatprep.subr.mxu0 0.0
    %1149 = vmatpush1.msra.mxu0 0.0
    %1150 = vmatprep.subr.mxu0 0.0
    %1151 = vmatpush1.msra.mxu0 0.0
    %1152 = vmatprep.subr.mxu0 0.0
    %1153 = vmatpush1.msra.mxu0 %v1126
    %1154 = vmatprep.subr.mxu0 0.0
    %1155 = vmatpush1.msra.mxu0 %v1108
    %1156 = vmatprep.subr.mxu0 0.0
    %1157 = vmatpush1.msra.mxu0 %v1107
    %1158 = vmatprep.subr.mxu0 0.0
    %1159 = vmatpush1.msra.mxu0 %v1106
    %1160 = vmatprep.subr.mxu0 0.0
    %1161 = vmatpush2.msra.mxu0 0.0
    %1162 = vmatprep.subr.mxu0 0.0
    %1163 = vmatpush2.msra.mxu0 0.0
    %1164 = vmatprep.subr.mxu0 0.0
    %1165 = vmatpush2.msra.mxu0 0.0
    %1166 = vmatprep.subr.mxu0 0.0
    %1167 = vmatpush2.msra.mxu0 0.0
    %1168 = vmatprep.subr.mxu0 0.0
    %1169 = vmatpush2.msra.mxu0 0.0
    %1170 = vmatprep.subr.mxu0 0.0
    %1171 = vmatpush2.msra.mxu0 0.0
    %1172 = vmatprep.subr.mxu0 0.0
    %1173 = vmatpush2.msra.mxu0 0.0
    %1174 = vmatprep.subr.mxu0 0.0
    %1175 = vmatpush2.msra.mxu0 0.0
    %1176 = vmatprep.subr.mxu0 0.0
    %1177 = vmatpush2.msra.mxu0 0.0
    %1178 = vmatprep.subr.mxu0 0.0
    %1179 = vmatpush2.msra.mxu0 0.0
    %1180 = vmatprep.subr.mxu0 0.0
    %1181 = vmatpush2.msra.mxu0 0.0
    %1182 = vmatprep.subr.mxu0 0.0
    %1183 = vmatpush2.msra.mxu0 0.0
    %1184 = vmatprep.subr.mxu0 0.0
    %1185 = vmatpush2.msra.mxu0 0.0
    %1186 = vmatprep.subr.mxu0 0.0
    %1187 = vmatpush2.msra.mxu0 0.0
    %1188 = vmatprep.subr.mxu0 0.0
    %1189 = vmatpush2.msra.mxu0 0.0
    %1190 = vmatprep.subr.mxu0 0.0
    %1191 = vmatpush2.msra.mxu0 0.0
    %1192 = vmatprep.mubr.f32.mxu0 0.0
    %1193 = vmatmul.mubr.f32.gmra.mxu0 %v1119
    %v1194 = vpop.f32.mrf.mxu0
    %v1195 = vadd.f32 %v1115, %v1194
    %v1196 = vpop.f32.mrf.mxu0
    %1197 = vmatprep.mubr.f32.mxu0 0.0
    %1198 = vmatmul.mubr.f32.gmra.mxu0 %v1122
    %v1199 = vpop.f32.mrf.mxu0
    %v1200 = vadd.f32 %v1115, %v1199
    %v1201 = vpop.f32.mrf.mxu0
    %1202 = vdwg.mxu0
    %v1203 = vmax.f32 %v1195, 0.0
    %v1204 = vmax.f32 %v1200, 0.0
    %s1205 = scalar_lea.vmem %s10, 32
    %v1206 = vld [vmem:[%s1205] sm:$0xff]
    %v1207 = vld [vmem:[%s1205 + $0x8] sm:$0xff]
    %v1208 = vld [vmem:[%s1205 + $0x10] sm:$0xff]
    %v1209 = vld [vmem:[%s1205 + $0x18] sm:$0x1]
    %v1211 = vsel %vm1124, %v1209, 0
    %1213 = vmatprep.subr.mxu0 0.0
    %1214 = vmatpush1.msra.mxu0 0.0
    %1215 = vmatprep.subr.mxu0 0.0
    %1216 = vmatpush1.msra.mxu0 0.0
    %1217 = vmatprep.subr.mxu0 0.0
    %1218 = vmatpush1.msra.mxu0 0.0
    %1219 = vmatprep.subr.mxu0 0.0
    %1220 = vmatpush1.msra.mxu0 0.0
    %1221 = vmatprep.subr.mxu0 0.0
    %1222 = vmatpush1.msra.mxu0 0.0
    %1223 = vmatprep.subr.mxu0 0.0
    %1224 = vmatpush1.msra.mxu0 0.0
    %1225 = vmatprep.subr.mxu0 0.0
    %1226 = vmatpush1.msra.mxu0 0.0
    %1227 = vmatprep.subr.mxu0 0.0
    %1228 = vmatpush1.msra.mxu0 0.0
    %1229 = vmatprep.subr.mxu0 0.0
    %1230 = vmatpush1.msra.mxu0 0.0
    %1231 = vmatprep.subr.mxu0 0.0
    %1232 = vmatpush1.msra.mxu0 0.0
    %1233 = vmatprep.subr.mxu0 0.0
    %1234 = vmatpush1.msra.mxu0 0.0
    %1235 = vmatprep.subr.mxu0 0.0
    %1236 = vmatpush1.msra.mxu0 0.0
    %1237 = vmatprep.subr.mxu0 0.0
    %1238 = vmatpush1.msra.mxu0 %v1211
    %1239 = vmatprep.subr.mxu0 0.0
    %1240 = vmatpush1.msra.mxu0 %v1208
    %1241 = vmatprep.subr.mxu0 0.0
    %1242 = vmatpush1.msra.mxu0 %v1207
    %1243 = vmatprep.subr.mxu0 0.0
    %1244 = vmatpush1.msra.mxu0 %v1206
    %1245 = vmatprep.subr.mxu0 0.0
    %1246 = vmatpush2.msra.mxu0 0.0
    %1247 = vmatprep.subr.mxu0 0.0
    %1248 = vmatpush2.msra.mxu0 0.0
    %1249 = vmatprep.subr.mxu0 0.0
    %1250 = vmatpush2.msra.mxu0 0.0
    %1251 = vmatprep.subr.mxu0 0.0
    %1252 = vmatpush2.msra.mxu0 0.0
    %1253 = vmatprep.subr.mxu0 0.0
    %1254 = vmatpush2.msra.mxu0 0.0
    %1255 = vmatprep.subr.mxu0 0.0
    %1256 = vmatpush2.msra.mxu0 0.0
    %1257 = vmatprep.subr.mxu0 0.0
    %1258 = vmatpush2.msra.mxu0 0.0
    %1259 = vmatprep.subr.mxu0 0.0
    %1260 = vmatpush2.msra.mxu0 0.0
    %1261 = vmatprep.subr.mxu0 0.0
    %1262 = vmatpush2.msra.mxu0 0.0
    %1263 = vmatprep.subr.mxu0 0.0
    %1264 = vmatpush2.msra.mxu0 0.0
    %1265 = vmatprep.subr.mxu0 0.0
    %1266 = vmatpush2.msra.mxu0 0.0
    %1267 = vmatprep.subr.mxu0 0.0
    %1268 = vmatpush2.msra.mxu0 0.0
    %1269 = vmatprep.subr.mxu0 0.0
    %1270 = vmatpush2.msra.mxu0 0.0
    %1271 = vmatprep.subr.mxu0 0.0
    %1272 = vmatpush2.msra.mxu0 0.0
    %1273 = vmatprep.subr.mxu0 0.0
    %1274 = vmatpush2.msra.mxu0 0.0
    %1275 = vmatprep.subr.mxu0 0.0
    %1276 = vmatpush2.msra.mxu0 0.0
    %1277 = vmatprep.mubr.f32.mxu0 0.0
    %1278 = vmatmul.mubr.f32.gmra.mxu0 %v1119
    %v1279 = vpop.f32.mrf.mxu0
    %v1280 = vadd.f32 %v1115, %v1279
    %v1281 = vpop.f32.mrf.mxu0
    %1282 = vmatprep.mubr.f32.mxu0 0.0
    %1283 = vmatmul.mubr.f32.gmra.mxu0 %v1122
    %v1284 = vpop.f32.mrf.mxu0
    %v1285 = vadd.f32 %v1115, %v1284
    %v1286 = vpop.f32.mrf.mxu0
    %1287 = vdwg.mxu0
    %v1288 = vmax.f32 %v1280, 0.0
    %v1289 = vmax.f32 %v1285, 0.0
    %v1290 = vmax.f32 %v1203, %v1288
    %v1291 = vmax.f32 %v1204, %v1289
    %s1292 = scalar_lea.vmem %s10, 64
    %v1293 = vld [vmem:[%s1292] sm:$0xff]
    %v1294 = vld [vmem:[%s1292 + $0x8] sm:$0xff]
    %v1295 = vld [vmem:[%s1292 + $0x10] sm:$0xff]
    %v1296 = vld [vmem:[%s1292 + $0x18] sm:$0x1]
    %v1298 = vsel %vm1124, %v1296, 0
    %1300 = vmatprep.subr.mxu0 0.0
    %1301 = vmatpush1.msra.mxu0 0.0
    %1302 = vmatprep.subr.mxu0 0.0
    %1303 = vmatpush1.msra.mxu0 0.0
    %1304 = vmatprep.subr.mxu0 0.0
    %1305 = vmatpush1.msra.mxu0 0.0
    %1306 = vmatprep.subr.mxu0 0.0
    %1307 = vmatpush1.msra.mxu0 0.0
    %1308 = vmatprep.subr.mxu0 0.0
    %1309 = vmatpush1.msra.mxu0 0.0
    %1310 = vmatprep.subr.mxu0 0.0
    %1311 = vmatpush1.msra.mxu0 0.0
    %1312 = vmatprep.subr.mxu0 0.0
    %1313 = vmatpush1.msra.mxu0 0.0
    %1314 = vmatprep.subr.mxu0 0.0
    %1315 = vmatpush1.msra.mxu0 0.0
    %1316 = vmatprep.subr.mxu0 0.0
    %1317 = vmatpush1.msra.mxu0 0.0
    %1318 = vmatprep.subr.mxu0 0.0
    %1319 = vmatpush1.msra.mxu0 0.0
    %1320 = vmatprep.subr.mxu0 0.0
    %1321 = vmatpush1.msra.mxu0 0.0
    %1322 = vmatprep.subr.mxu0 0.0
    %1323 = vmatpush1.msra.mxu0 0.0
    %1324 = vmatprep.subr.mxu0 0.0
    %1325 = vmatpush1.msra.mxu0 %v1298
    %1326 = vmatprep.subr.mxu0 0.0
    %1327 = vmatpush1.msra.mxu0 %v1295
    %1328 = vmatprep.subr.mxu0 0.0
    %1329 = vmatpush1.msra.mxu0 %v1294
    %1330 = vmatprep.subr.mxu0 0.0
    %1331 = vmatpush1.msra.mxu0 %v1293
    %1332 = vmatprep.subr.mxu0 0.0
    %1333 = vmatpush2.msra.mxu0 0.0
    %1334 = vmatprep.subr.mxu0 0.0
    %1335 = vmatpush2.msra.mxu0 0.0
    %1336 = vmatprep.subr.mxu0 0.0
    %1337 = vmatpush2.msra.mxu0 0.0
    %1338 = vmatprep.subr.mxu0 0.0
    %1339 = vmatpush2.msra.mxu0 0.0
    %1340 = vmatprep.subr.mxu0 0.0
    %1341 = vmatpush2.msra.mxu0 0.0
    %1342 = vmatprep.subr.mxu0 0.0
    %1343 = vmatpush2.msra.mxu0 0.0
    %1344 = vmatprep.subr.mxu0 0.0
    %1345 = vmatpush2.msra.mxu0 0.0
    %1346 = vmatprep.subr.mxu0 0.0
    %1347 = vmatpush2.msra.mxu0 0.0
    %1348 = vmatprep.subr.mxu0 0.0
    %1349 = vmatpush2.msra.mxu0 0.0
    %1350 = vmatprep.subr.mxu0 0.0
    %1351 = vmatpush2.msra.mxu0 0.0
    %1352 = vmatprep.subr.mxu0 0.0
    %1353 = vmatpush2.msra.mxu0 0.0
    %1354 = vmatprep.subr.mxu0 0.0
    %1355 = vmatpush2.msra.mxu0 0.0
    %1356 = vmatprep.subr.mxu0 0.0
    %1357 = vmatpush2.msra.mxu0 0.0
    %1358 = vmatprep.subr.mxu0 0.0
    %1359 = vmatpush2.msra.mxu0 0.0
    %1360 = vmatprep.subr.mxu0 0.0
    %1361 = vmatpush2.msra.mxu0 0.0
    %1362 = vmatprep.subr.mxu0 0.0
    %1363 = vmatpush2.msra.mxu0 0.0
    %1364 = vmatprep.mubr.f32.mxu0 0.0
    %1365 = vmatmul.mubr.f32.gmra.mxu0 %v1119
    %v1366 = vpop.f32.mrf.mxu0
    %v1367 = vadd.f32 %v1115, %v1366
    %v1368 = vpop.f32.mrf.mxu0
    %1369 = vmatprep.mubr.f32.mxu0 0.0
    %1370 = vmatmul.mubr.f32.gmra.mxu0 %v1122
    %v1371 = vpop.f32.mrf.mxu0
    %v1372 = vadd.f32 %v1115, %v1371
    %v1373 = vpop.f32.mrf.mxu0
    %1374 = vdwg.mxu0
    %v1375 = vmax.f32 %v1367, 0.0
    %v1376 = vmax.f32 %v1372, 0.0
    %v1377 = vmax.f32 %v1290, %v1375
    %v1378 = vmax.f32 %v1291, %v1376
    %s1379 = scalar_lea.vmem %s10, 96
    %v1380 = vld [vmem:[%s1379] sm:$0xff]
    %v1381 = vld [vmem:[%s1379 + $0x8] sm:$0xff]
    %v1382 = vld [vmem:[%s1379 + $0x10] sm:$0xff]
    %v1383 = vld [vmem:[%s1379 + $0x18] sm:$0x1]
    %v1385 = vsel %vm1124, %v1383, 0
    %1387 = vmatprep.subr.mxu0 0.0
    %1388 = vmatpush1.msra.mxu0 0.0
    %1389 = vmatprep.subr.mxu0 0.0
    %1390 = vmatpush1.msra.mxu0 0.0
    %1391 = vmatprep.subr.mxu0 0.0
    %1392 = vmatpush1.msra.mxu0 0.0
    %1393 = vmatprep.subr.mxu0 0.0
    %1394 = vmatpush1.msra.mxu0 0.0
    %1395 = vmatprep.subr.mxu0 0.0
    %1396 = vmatpush1.msra.mxu0 0.0
    %1397 = vmatprep.subr.mxu0 0.0
    %1398 = vmatpush1.msra.mxu0 0.0
    %1399 = vmatprep.subr.mxu0 0.0
    %1400 = vmatpush1.msra.mxu0 0.0
    %1401 = vmatprep.subr.mxu0 0.0
    %1402 = vmatpush1.msra.mxu0 0.0
    %1403 = vmatprep.subr.mxu0 0.0
    %1404 = vmatpush1.msra.mxu0 0.0
    %1405 = vmatprep.subr.mxu0 0.0
    %1406 = vmatpush1.msra.mxu0 0.0
    %1407 = vmatprep.subr.mxu0 0.0
    %1408 = vmatpush1.msra.mxu0 0.0
    %1409 = vmatprep.subr.mxu0 0.0
    %1410 = vmatpush1.msra.mxu0 0.0
    %1411 = vmatprep.subr.mxu0 0.0
    %1412 = vmatpush1.msra.mxu0 %v1385
    %1413 = vmatprep.subr.mxu0 0.0
    %1414 = vmatpush1.msra.mxu0 %v1382
    %1415 = vmatprep.subr.mxu0 0.0
    %1416 = vmatpush1.msra.mxu0 %v1381
    %1417 = vmatprep.subr.mxu0 0.0
    %1418 = vmatpush1.msra.mxu0 %v1380
    %1419 = vmatprep.subr.mxu0 0.0
    %1420 = vmatpush2.msra.mxu0 0.0
    %1421 = vmatprep.subr.mxu0 0.0
    %1422 = vmatpush2.msra.mxu0 0.0
    %1423 = vmatprep.subr.mxu0 0.0
    %1424 = vmatpush2.msra.mxu0 0.0
    %1425 = vmatprep.subr.mxu0 0.0
    %1426 = vmatpush2.msra.mxu0 0.0
    %1427 = vmatprep.subr.mxu0 0.0
    %1428 = vmatpush2.msra.mxu0 0.0
    %1429 = vmatprep.subr.mxu0 0.0
    %1430 = vmatpush2.msra.mxu0 0.0
    %1431 = vmatprep.subr.mxu0 0.0
    %1432 = vmatpush2.msra.mxu0 0.0
    %1433 = vmatprep.subr.mxu0 0.0
    %1434 = vmatpush2.msra.mxu0 0.0
    %1435 = vmatprep.subr.mxu0 0.0
    %1436 = vmatpush2.msra.mxu0 0.0
    %1437 = vmatprep.subr.mxu0 0.0
    %1438 = vmatpush2.msra.mxu0 0.0
    %1439 = vmatprep.subr.mxu0 0.0
    %1440 = vmatpush2.msra.mxu0 0.0
    %1441 = vmatprep.subr.mxu0 0.0
    %1442 = vmatpush2.msra.mxu0 0.0
    %1443 = vmatprep.subr.mxu0 0.0
    %1444 = vmatpush2.msra.mxu0 0.0
    %1445 = vmatprep.subr.mxu0 0.0
    %1446 = vmatpush2.msra.mxu0 0.0
    %1447 = vmatprep.subr.mxu0 0.0
    %1448 = vmatpush2.msra.mxu0 0.0
    %1449 = vmatprep.subr.mxu0 0.0
    %1450 = vmatpush2.msra.mxu0 0.0
    %1451 = vmatprep.mubr.f32.mxu0 0.0
    %1452 = vmatmul.mubr.f32.gmra.mxu0 %v1119
    %v1453 = vpop.f32.mrf.mxu0
    %v1454 = vadd.f32 %v1115, %v1453
    %v1455 = vpop.f32.mrf.mxu0
    %1456 = vmatprep.mubr.f32.mxu0 0.0
    %1457 = vmatmul.mubr.f32.gmra.mxu0 %v1122
    %v1458 = vpop.f32.mrf.mxu0
    %v1459 = vadd.f32 %v1115, %v1458
    %v1460 = vpop.f32.mrf.mxu0
    %1461 = vdwg.mxu0
    %v1462 = vmax.f32 %v1454, 0.0
    %v1463 = vmax.f32 %v1459, 0.0
    %v1464 = vmax.f32 %v1377, %v1462
    %v1465 = vmax.f32 %v1378, %v1463
    %v1466 = vld [vmem:[%s12] sm:$0xff]
    %v1467 = vld [vmem:[%s12 + $0x8] sm:$0xff]
    %v1468 = vld [vmem:[%s12 + $0x10] sm:$0xff]
    %v1469 = vld [vmem:[%s12 + $0x18] sm:$0xff]
    %v1470 = vld [vmem:[%s13] sm:$0x1]
    %v1472 = vlaneseq
    %v1473 = vshrl.u32 %v1472, 7
    %v1474 = vsub.s32 0, %v1473
    %v1475 = vrot.slane %v1470, %v1474
    %vm1477 = vcmask 261120
    %v1479 = vsel %vm1477, %v1464, 0
    %v1482 = vsel %vm1477, %v1465, 0
    %1484 = vmatprep.subr.mxu0 0.0
    %1485 = vmatpush1.msra.mxu0 0.0
    %1486 = vmatprep.subr.mxu0 0.0
    %1487 = vmatpush1.msra.mxu0 0.0
    %1488 = vmatprep.subr.mxu0 0.0
    %1489 = vmatpush1.msra.mxu0 0.0
    %1490 = vmatprep.subr.mxu0 0.0
    %1491 = vmatpush1.msra.mxu0 0.0
    %1492 = vmatprep.subr.mxu0 0.0
    %1493 = vmatpush1.msra.mxu0 0.0
    %1494 = vmatprep.subr.mxu0 0.0
    %1495 = vmatpush1.msra.mxu0 0.0
    %1496 = vmatprep.subr.mxu0 0.0
    %1497 = vmatpush1.msra.mxu0 0.0
    %1498 = vmatprep.subr.mxu0 0.0
    %1499 = vmatpush1.msra.mxu0 0.0
    %1500 = vmatprep.subr.mxu0 0.0
    %1501 = vmatpush1.msra.mxu0 0.0
    %1502 = vmatprep.subr.mxu0 0.0
    %1503 = vmatpush1.msra.mxu0 0.0
    %1504 = vmatprep.subr.mxu0 0.0
    %1505 = vmatpush1.msra.mxu0 0.0
    %1506 = vmatprep.subr.mxu0 0.0
    %1507 = vmatpush1.msra.mxu0 0.0
    %1508 = vmatprep.subr.mxu0 0.0
    %1509 = vmatpush1.msra.mxu0 %v1469
    %1510 = vmatprep.subr.mxu0 0.0
    %1511 = vmatpush1.msra.mxu0 %v1468
    %1512 = vmatprep.subr.mxu0 0.0
    %1513 = vmatpush1.msra.mxu0 %v1467
    %1514 = vmatprep.subr.mxu0 0.0
    %1515 = vmatpush1.msra.mxu0 %v1466
    %1516 = vmatprep.subr.mxu0 0.0
    %1517 = vmatpush2.msra.mxu0 0.0
    %1518 = vmatprep.subr.mxu0 0.0
    %1519 = vmatpush2.msra.mxu0 0.0
    %1520 = vmatprep.subr.mxu0 0.0
    %1521 = vmatpush2.msra.mxu0 0.0
    %1522 = vmatprep.subr.mxu0 0.0
    %1523 = vmatpush2.msra.mxu0 0.0
    %1524 = vmatprep.subr.mxu0 0.0
    %1525 = vmatpush2.msra.mxu0 0.0
    %1526 = vmatprep.subr.mxu0 0.0
    %1527 = vmatpush2.msra.mxu0 0.0
    %1528 = vmatprep.subr.mxu0 0.0
    %1529 = vmatpush2.msra.mxu0 0.0
    %1530 = vmatprep.subr.mxu0 0.0
    %1531 = vmatpush2.msra.mxu0 0.0
    %1532 = vmatprep.subr.mxu0 0.0
    %1533 = vmatpush2.msra.mxu0 0.0
    %1534 = vmatprep.subr.mxu0 0.0
    %1535 = vmatpush2.msra.mxu0 0.0
    %1536 = vmatprep.subr.mxu0 0.0
    %1537 = vmatpush2.msra.mxu0 0.0
    %1538 = vmatprep.subr.mxu0 0.0
    %1539 = vmatpush2.msra.mxu0 0.0
    %1540 = vmatprep.subr.mxu0 0.0
    %1541 = vmatpush2.msra.mxu0 0.0
    %1542 = vmatprep.subr.mxu0 0.0
    %1543 = vmatpush2.msra.mxu0 0.0
    %1544 = vmatprep.subr.mxu0 0.0
    %1545 = vmatpush2.msra.mxu0 0.0
    %1546 = vmatprep.subr.mxu0 0.0
    %1547 = vmatpush2.msra.mxu0 0.0
    %1548 = vmatprep.mubr.f32.mxu0 0.0
    %1549 = vmatmul.mubr.f32.gmra.mxu0 %v1479
    %v1550 = vpop.f32.mrf.mxu0
    %v1551 = vadd.f32 %v1475, %v1550
    %v1552 = vpop.f32.mrf.mxu0
    %1553 = vmatprep.mubr.f32.mxu0 0.0
    %1554 = vmatmul.mubr.f32.gmra.mxu0 %v1482
    %v1555 = vpop.f32.mrf.mxu0
    %v1556 = vadd.f32 %v1475, %v1555
    %v1557 = vpop.f32.mrf.mxu0
    %1558 = vdwg.mxu0
    %v1559 = vmax.f32 %v1551, 0.0
    %v1560 = vmax.f32 %v1556, 0.0
    %s1561 = scalar_lea.vmem %s12, 32
    %v1562 = vld [vmem:[%s1561] sm:$0xff]
    %v1563 = vld [vmem:[%s1561 + $0x8] sm:$0xff]
    %v1564 = vld [vmem:[%s1561 + $0x10] sm:$0xff]
    %v1565 = vld [vmem:[%s1561 + $0x18] sm:$0xff]
    %1566 = vmatprep.subr.mxu0 0.0
    %1567 = vmatpush1.msra.mxu0 0.0
    %1568 = vmatprep.subr.mxu0 0.0
    %1569 = vmatpush1.msra.mxu0 0.0
    %1570 = vmatprep.subr.mxu0 0.0
    %1571 = vmatpush1.msra.mxu0 0.0
    %1572 = vmatprep.subr.mxu0 0.0
    %1573 = vmatpush1.msra.mxu0 0.0
    %1574 = vmatprep.subr.mxu0 0.0
    %1575 = vmatpush1.msra.mxu0 0.0
    %1576 = vmatprep.subr.mxu0 0.0
    %1577 = vmatpush1.msra.mxu0 0.0
    %1578 = vmatprep.subr.mxu0 0.0
    %1579 = vmatpush1.msra.mxu0 0.0
    %1580 = vmatprep.subr.mxu0 0.0
    %1581 = vmatpush1.msra.mxu0 0.0
    %1582 = vmatprep.subr.mxu0 0.0
    %1583 = vmatpush1.msra.mxu0 0.0
    %1584 = vmatprep.subr.mxu0 0.0
    %1585 = vmatpush1.msra.mxu0 0.0
    %1586 = vmatprep.subr.mxu0 0.0
    %1587 = vmatpush1.msra.mxu0 0.0
    %1588 = vmatprep.subr.mxu0 0.0
    %1589 = vmatpush1.msra.mxu0 0.0
    %1590 = vmatprep.subr.mxu0 0.0
    %1591 = vmatpush1.msra.mxu0 %v1565
    %1592 = vmatprep.subr.mxu0 0.0
    %1593 = vmatpush1.msra.mxu0 %v1564
    %1594 = vmatprep.subr.mxu0 0.0
    %1595 = vmatpush1.msra.mxu0 %v1563
    %1596 = vmatprep.subr.mxu0 0.0
    %1597 = vmatpush1.msra.mxu0 %v1562
    %1598 = vmatprep.subr.mxu0 0.0
    %1599 = vmatpush2.msra.mxu0 0.0
    %1600 = vmatprep.subr.mxu0 0.0
    %1601 = vmatpush2.msra.mxu0 0.0
    %1602 = vmatprep.subr.mxu0 0.0
    %1603 = vmatpush2.msra.mxu0 0.0
    %1604 = vmatprep.subr.mxu0 0.0
    %1605 = vmatpush2.msra.mxu0 0.0
    %1606 = vmatprep.subr.mxu0 0.0
    %1607 = vmatpush2.msra.mxu0 0.0
    %1608 = vmatprep.subr.mxu0 0.0
    %1609 = vmatpush2.msra.mxu0 0.0
    %1610 = vmatprep.subr.mxu0 0.0
    %1611 = vmatpush2.msra.mxu0 0.0
    %1612 = vmatprep.subr.mxu0 0.0
    %1613 = vmatpush2.msra.mxu0 0.0
    %1614 = vmatprep.subr.mxu0 0.0
    %1615 = vmatpush2.msra.mxu0 0.0
    %1616 = vmatprep.subr.mxu0 0.0
    %1617 = vmatpush2.msra.mxu0 0.0
    %1618 = vmatprep.subr.mxu0 0.0
    %1619 = vmatpush2.msra.mxu0 0.0
    %1620 = vmatprep.subr.mxu0 0.0
    %1621 = vmatpush2.msra.mxu0 0.0
    %1622 = vmatprep.subr.mxu0 0.0
    %1623 = vmatpush2.msra.mxu0 0.0
    %1624 = vmatprep.subr.mxu0 0.0
    %1625 = vmatpush2.msra.mxu0 0.0
    %1626 = vmatprep.subr.mxu0 0.0
    %1627 = vmatpush2.msra.mxu0 0.0
    %1628 = vmatprep.subr.mxu0 0.0
    %1629 = vmatpush2.msra.mxu0 0.0
    %1630 = vmatprep.mubr.f32.mxu0 0.0
    %1631 = vmatmul.mubr.f32.gmra.mxu0 %v1479
    %v1632 = vpop.f32.mrf.mxu0
    %v1633 = vadd.f32 %v1475, %v1632
    %v1634 = vpop.f32.mrf.mxu0
    %1635 = vmatprep.mubr.f32.mxu0 0.0
    %1636 = vmatmul.mubr.f32.gmra.mxu0 %v1482
    %v1637 = vpop.f32.mrf.mxu0
    %v1638 = vadd.f32 %v1475, %v1637
    %v1639 = vpop.f32.mrf.mxu0
    %1640 = vdwg.mxu0
    %v1641 = vmax.f32 %v1633, 0.0
    %v1642 = vmax.f32 %v1638, 0.0
    %v1643 = vmax.f32 %v1559, %v1641
    %v1644 = vmax.f32 %v1560, %v1642
    %s1645 = scalar_lea.vmem %s12, 64
    %v1646 = vld [vmem:[%s1645] sm:$0xff]
    %v1647 = vld [vmem:[%s1645 + $0x8] sm:$0xff]
    %v1648 = vld [vmem:[%s1645 + $0x10] sm:$0xff]
    %v1649 = vld [vmem:[%s1645 + $0x18] sm:$0xff]
    %1650 = vmatprep.subr.mxu0 0.0
    %1651 = vmatpush1.msra.mxu0 0.0
    %1652 = vmatprep.subr.mxu0 0.0
    %1653 = vmatpush1.msra.mxu0 0.0
    %1654 = vmatprep.subr.mxu0 0.0
    %1655 = vmatpush1.msra.mxu0 0.0
    %1656 = vmatprep.subr.mxu0 0.0
    %1657 = vmatpush1.msra.mxu0 0.0
    %1658 = vmatprep.subr.mxu0 0.0
    %1659 = vmatpush1.msra.mxu0 0.0
    %1660 = vmatprep.subr.mxu0 0.0
    %1661 = vmatpush1.msra.mxu0 0.0
    %1662 = vmatprep.subr.mxu0 0.0
    %1663 = vmatpush1.msra.mxu0 0.0
    %1664 = vmatprep.subr.mxu0 0.0
    %1665 = vmatpush1.msra.mxu0 0.0
    %1666 = vmatprep.subr.mxu0 0.0
    %1667 = vmatpush1.msra.mxu0 0.0
    %1668 = vmatprep.subr.mxu0 0.0
    %1669 = vmatpush1.msra.mxu0 0.0
    %1670 = vmatprep.subr.mxu0 0.0
    %1671 = vmatpush1.msra.mxu0 0.0
    %1672 = vmatprep.subr.mxu0 0.0
    %1673 = vmatpush1.msra.mxu0 0.0
    %1674 = vmatprep.subr.mxu0 0.0
    %1675 = vmatpush1.msra.mxu0 %v1649
    %1676 = vmatprep.subr.mxu0 0.0
    %1677 = vmatpush1.msra.mxu0 %v1648
    %1678 = vmatprep.subr.mxu0 0.0
    %1679 = vmatpush1.msra.mxu0 %v1647
    %1680 = vmatprep.subr.mxu0 0.0
    %1681 = vmatpush1.msra.mxu0 %v1646
    %1682 = vmatprep.subr.mxu0 0.0
    %1683 = vmatpush2.msra.mxu0 0.0
    %1684 = vmatprep.subr.mxu0 0.0
    %1685 = vmatpush2.msra.mxu0 0.0
    %1686 = vmatprep.subr.mxu0 0.0
    %1687 = vmatpush2.msra.mxu0 0.0
    %1688 = vmatprep.subr.mxu0 0.0
    %1689 = vmatpush2.msra.mxu0 0.0
    %1690 = vmatprep.subr.mxu0 0.0
    %1691 = vmatpush2.msra.mxu0 0.0
    %1692 = vmatprep.subr.mxu0 0.0
    %1693 = vmatpush2.msra.mxu0 0.0
    %1694 = vmatprep.subr.mxu0 0.0
    %1695 = vmatpush2.msra.mxu0 0.0
    %1696 = vmatprep.subr.mxu0 0.0
    %1697 = vmatpush2.msra.mxu0 0.0
    %1698 = vmatprep.subr.mxu0 0.0
    %1699 = vmatpush2.msra.mxu0 0.0
    %1700 = vmatprep.subr.mxu0 0.0
    %1701 = vmatpush2.msra.mxu0 0.0
    %1702 = vmatprep.subr.mxu0 0.0
    %1703 = vmatpush2.msra.mxu0 0.0
    %1704 = vmatprep.subr.mxu0 0.0
    %1705 = vmatpush2.msra.mxu0 0.0
    %1706 = vmatprep.subr.mxu0 0.0
    %1707 = vmatpush2.msra.mxu0 0.0
    %1708 = vmatprep.subr.mxu0 0.0
    %1709 = vmatpush2.msra.mxu0 0.0
    %1710 = vmatprep.subr.mxu0 0.0
    %1711 = vmatpush2.msra.mxu0 0.0
    %1712 = vmatprep.subr.mxu0 0.0
    %1713 = vmatpush2.msra.mxu0 0.0
    %1714 = vmatprep.mubr.f32.mxu0 0.0
    %1715 = vmatmul.mubr.f32.gmra.mxu0 %v1479
    %v1716 = vpop.f32.mrf.mxu0
    %v1717 = vadd.f32 %v1475, %v1716
    %v1718 = vpop.f32.mrf.mxu0
    %1719 = vmatprep.mubr.f32.mxu0 0.0
    %1720 = vmatmul.mubr.f32.gmra.mxu0 %v1482
    %v1721 = vpop.f32.mrf.mxu0
    %v1722 = vadd.f32 %v1475, %v1721
    %v1723 = vpop.f32.mrf.mxu0
    %1724 = vdwg.mxu0
    %v1725 = vmax.f32 %v1717, 0.0
    %v1726 = vmax.f32 %v1722, 0.0
    %v1727 = vmax.f32 %v1643, %v1725
    %v1728 = vmax.f32 %v1644, %v1726
    %s1729 = scalar_lea.vmem %s12, 96
    %v1730 = vld [vmem:[%s1729] sm:$0xff]
    %v1731 = vld [vmem:[%s1729 + $0x8] sm:$0xff]
    %v1732 = vld [vmem:[%s1729 + $0x10] sm:$0xff]
    %v1733 = vld [vmem:[%s1729 + $0x18] sm:$0xff]
    %1734 = vmatprep.subr.mxu0 0.0
    %1735 = vmatpush1.msra.mxu0 0.0
    %1736 = vmatprep.subr.mxu0 0.0
    %1737 = vmatpush1.msra.mxu0 0.0
    %1738 = vmatprep.subr.mxu0 0.0
    %1739 = vmatpush1.msra.mxu0 0.0
    %1740 = vmatprep.subr.mxu0 0.0
    %1741 = vmatpush1.msra.mxu0 0.0
    %1742 = vmatprep.subr.mxu0 0.0
    %1743 = vmatpush1.msra.mxu0 0.0
    %1744 = vmatprep.subr.mxu0 0.0
    %1745 = vmatpush1.msra.mxu0 0.0
    %1746 = vmatprep.subr.mxu0 0.0
    %1747 = vmatpush1.msra.mxu0 0.0
    %1748 = vmatprep.subr.mxu0 0.0
    %1749 = vmatpush1.msra.mxu0 0.0
    %1750 = vmatprep.subr.mxu0 0.0
    %1751 = vmatpush1.msra.mxu0 0.0
    %1752 = vmatprep.subr.mxu0 0.0
    %1753 = vmatpush1.msra.mxu0 0.0
    %1754 = vmatprep.subr.mxu0 0.0
    %1755 = vmatpush1.msra.mxu0 0.0
    %1756 = vmatprep.subr.mxu0 0.0
    %1757 = vmatpush1.msra.mxu0 0.0
    %1758 = vmatprep.subr.mxu0 0.0
    %1759 = vmatpush1.msra.mxu0 %v1733
    %1760 = vmatprep.subr.mxu0 0.0
    %1761 = vmatpush1.msra.mxu0 %v1732
    %1762 = vmatprep.subr.mxu0 0.0
    %1763 = vmatpush1.msra.mxu0 %v1731
    %1764 = vmatprep.subr.mxu0 0.0
    %1765 = vmatpush1.msra.mxu0 %v1730
    %1766 = vmatprep.subr.mxu0 0.0
    %1767 = vmatpush2.msra.mxu0 0.0
    %1768 = vmatprep.subr.mxu0 0.0
    %1769 = vmatpush2.msra.mxu0 0.0
    %1770 = vmatprep.subr.mxu0 0.0
    %1771 = vmatpush2.msra.mxu0 0.0
    %1772 = vmatprep.subr.mxu0 0.0
    %1773 = vmatpush2.msra.mxu0 0.0
    %1774 = vmatprep.subr.mxu0 0.0
    %1775 = vmatpush2.msra.mxu0 0.0
    %1776 = vmatprep.subr.mxu0 0.0
    %1777 = vmatpush2.msra.mxu0 0.0
    %1778 = vmatprep.subr.mxu0 0.0
    %1779 = vmatpush2.msra.mxu0 0.0
    %1780 = vmatprep.subr.mxu0 0.0
    %1781 = vmatpush2.msra.mxu0 0.0
    %1782 = vmatprep.subr.mxu0 0.0
    %1783 = vmatpush2.msra.mxu0 0.0
    %1784 = vmatprep.subr.mxu0 0.0
    %1785 = vmatpush2.msra.mxu0 0.0
    %1786 = vmatprep.subr.mxu0 0.0
    %1787 = vmatpush2.msra.mxu0 0.0
    %1788 = vmatprep.subr.mxu0 0.0
    %1789 = vmatpush2.msra.mxu0 0.0
    %1790 = vmatprep.subr.mxu0 0.0
    %1791 = vmatpush2.msra.mxu0 0.0
    %1792 = vmatprep.subr.mxu0 0.0
    %1793 = vmatpush2.msra.mxu0 0.0
    %1794 = vmatprep.subr.mxu0 0.0
    %1795 = vmatpush2.msra.mxu0 0.0
    %1796 = vmatprep.subr.mxu0 0.0
    %1797 = vmatpush2.msra.mxu0 0.0
    %1798 = vmatprep.mubr.f32.mxu0 0.0
    %1799 = vmatmul.mubr.f32.gmra.mxu0 %v1479
    %v1800 = vpop.f32.mrf.mxu0
    %v1801 = vadd.f32 %v1475, %v1800
    %v1802 = vpop.f32.mrf.mxu0
    %1803 = vmatprep.mubr.f32.mxu0 0.0
    %1804 = vmatmul.mubr.f32.gmra.mxu0 %v1482
    %v1805 = vpop.f32.mrf.mxu0
    %v1806 = vadd.f32 %v1475, %v1805
    %v1807 = vpop.f32.mrf.mxu0
    %1808 = vdwg.mxu0
    %v1809 = vmax.f32 %v1801, 0.0
    %v1810 = vmax.f32 %v1806, 0.0
    %v1811 = vmax.f32 %v1727, %v1809
    %v1812 = vmax.f32 %v1728, %v1810
    %v1813 = vld [vmem:[%s14] sm:$0xff]
    %v1814 = vld [vmem:[%s14 + $0x8] sm:$0xff]
    %v1815 = vld [vmem:[%s15] sm:$0x1]
    %v1817 = vlaneseq
    %v1818 = vshrl.u32 %v1817, 7
    %v1819 = vsub.s32 0, %v1818
    %v1820 = vrot.slane %v1815, %v1819
    %vm1822 = vcmask 130048
    %v1824 = vsel %vm1822, %v1811, 0
    %v1827 = vsel %vm1822, %v1812, 0
    %1829 = vmatprep.subr.mxu0 0.0
    %1830 = vmatpush1.msra.mxu0 0.0
    %1831 = vmatprep.subr.mxu0 0.0
    %1832 = vmatpush1.msra.mxu0 0.0
    %1833 = vmatprep.subr.mxu0 0.0
    %1834 = vmatpush1.msra.mxu0 0.0
    %1835 = vmatprep.subr.mxu0 0.0
    %1836 = vmatpush1.msra.mxu0 0.0
    %1837 = vmatprep.subr.mxu0 0.0
    %1838 = vmatpush1.msra.mxu0 0.0
    %1839 = vmatprep.subr.mxu0 0.0
    %1840 = vmatpush1.msra.mxu0 0.0
    %1841 = vmatprep.subr.mxu0 0.0
    %1842 = vmatpush1.msra.mxu0 0.0
    %1843 = vmatprep.subr.mxu0 0.0
    %1844 = vmatpush1.msra.mxu0 0.0
    %1845 = vmatprep.subr.mxu0 0.0
    %1846 = vmatpush1.msra.mxu0 0.0
    %1847 = vmatprep.subr.mxu0 0.0
    %1848 = vmatpush1.msra.mxu0 0.0
    %1849 = vmatprep.subr.mxu0 0.0
    %1850 = vmatpush1.msra.mxu0 0.0
    %1851 = vmatprep.subr.mxu0 0.0
    %1852 = vmatpush1.msra.mxu0 0.0
    %1853 = vmatprep.subr.mxu0 0.0
    %1854 = vmatpush1.msra.mxu0 0.0
    %1855 = vmatprep.subr.mxu0 0.0
    %1856 = vmatpush1.msra.mxu0 0.0
    %1857 = vmatprep.subr.mxu0 0.0
    %1858 = vmatpush1.msra.mxu0 %v1814
    %1859 = vmatprep.subr.mxu0 0.0
    %1860 = vmatpush1.msra.mxu0 %v1813
    %1861 = vmatprep.subr.mxu0 0.0
    %1862 = vmatpush2.msra.mxu0 0.0
    %1863 = vmatprep.subr.mxu0 0.0
    %1864 = vmatpush2.msra.mxu0 0.0
    %1865 = vmatprep.subr.mxu0 0.0
    %1866 = vmatpush2.msra.mxu0 0.0
    %1867 = vmatprep.subr.mxu0 0.0
    %1868 = vmatpush2.msra.mxu0 0.0
    %1869 = vmatprep.subr.mxu0 0.0
    %1870 = vmatpush2.msra.mxu0 0.0
    %1871 = vmatprep.subr.mxu0 0.0
    %1872 = vmatpush2.msra.mxu0 0.0
    %1873 = vmatprep.subr.mxu0 0.0
    %1874 = vmatpush2.msra.mxu0 0.0
    %1875 = vmatprep.subr.mxu0 0.0
    %1876 = vmatpush2.msra.mxu0 0.0
    %1877 = vmatprep.subr.mxu0 0.0
    %1878 = vmatpush2.msra.mxu0 0.0
    %1879 = vmatprep.subr.mxu0 0.0
    %1880 = vmatpush2.msra.mxu0 0.0
    %1881 = vmatprep.subr.mxu0 0.0
    %1882 = vmatpush2.msra.mxu0 0.0
    %1883 = vmatprep.subr.mxu0 0.0
    %1884 = vmatpush2.msra.mxu0 0.0
    %1885 = vmatprep.subr.mxu0 0.0
    %1886 = vmatpush2.msra.mxu0 0.0
    %1887 = vmatprep.subr.mxu0 0.0
    %1888 = vmatpush2.msra.mxu0 0.0
    %1889 = vmatprep.subr.mxu0 0.0
    %1890 = vmatpush2.msra.mxu0 0.0
    %1891 = vmatprep.subr.mxu0 0.0
    %1892 = vmatpush2.msra.mxu0 0.0
    %1893 = vmatprep.mubr.f32.mxu0 0.0
    %1894 = vmatmul.mubr.f32.gmra.mxu0 %v1824
    %v1895 = vpop.f32.mrf.mxu0
    %v1896 = vadd.f32 %v1820, %v1895
    %v1897 = vpop.f32.mrf.mxu0
    %1898 = vmatprep.mubr.f32.mxu0 0.0
    %1899 = vmatmul.mubr.f32.gmra.mxu0 %v1827
    %v1900 = vpop.f32.mrf.mxu0
    %v1901 = vadd.f32 %v1820, %v1900
    %v1902 = vpop.f32.mrf.mxu0
    %1903 = vdwg.mxu0
    %v1904 = vld [vmem:[%s2] sm:$0xff]
    %v1905 = vld [vmem:[%s2 + $0x8] sm:$0xff]
    %v1907 = vsel %vm1117, %v1904, 0
    %v1910 = vsel %vm1117, %v1905, 0
    %1912 = vmatprep.subr.mxu0 0.0
    %1913 = vmatpush1.msra.mxu0 0.0
    %1914 = vmatprep.subr.mxu0 0.0
    %1915 = vmatpush1.msra.mxu0 0.0
    %1916 = vmatprep.subr.mxu0 0.0
    %1917 = vmatpush1.msra.mxu0 0.0
    %1918 = vmatprep.subr.mxu0 0.0
    %1919 = vmatpush1.msra.mxu0 0.0
    %1920 = vmatprep.subr.mxu0 0.0
    %1921 = vmatpush1.msra.mxu0 0.0
    %1922 = vmatprep.subr.mxu0 0.0
    %1923 = vmatpush1.msra.mxu0 0.0
    %1924 = vmatprep.subr.mxu0 0.0
    %1925 = vmatpush1.msra.mxu0 0.0
    %1926 = vmatprep.subr.mxu0 0.0
    %1927 = vmatpush1.msra.mxu0 0.0
    %1928 = vmatprep.subr.mxu0 0.0
    %1929 = vmatpush1.msra.mxu0 0.0
    %1930 = vmatprep.subr.mxu0 0.0
    %1931 = vmatpush1.msra.mxu0 0.0
    %1932 = vmatprep.subr.mxu0 0.0
    %1933 = vmatpush1.msra.mxu0 0.0
    %1934 = vmatprep.subr.mxu0 0.0
    %1935 = vmatpush1.msra.mxu0 0.0
    %1936 = vmatprep.subr.mxu0 0.0
    %1937 = vmatpush1.msra.mxu0 %v1126
    %1938 = vmatprep.subr.mxu0 0.0
    %1939 = vmatpush1.msra.mxu0 %v1108
    %1940 = vmatprep.subr.mxu0 0.0
    %1941 = vmatpush1.msra.mxu0 %v1107
    %1942 = vmatprep.subr.mxu0 0.0
    %1943 = vmatpush1.msra.mxu0 %v1106
    %1944 = vmatprep.subr.mxu0 0.0
    %1945 = vmatpush2.msra.mxu0 0.0
    %1946 = vmatprep.subr.mxu0 0.0
    %1947 = vmatpush2.msra.mxu0 0.0
    %1948 = vmatprep.subr.mxu0 0.0
    %1949 = vmatpush2.msra.mxu0 0.0
    %1950 = vmatprep.subr.mxu0 0.0
    %1951 = vmatpush2.msra.mxu0 0.0
    %1952 = vmatprep.subr.mxu0 0.0
    %1953 = vmatpush2.msra.mxu0 0.0
    %1954 = vmatprep.subr.mxu0 0.0
    %1955 = vmatpush2.msra.mxu0 0.0
    %1956 = vmatprep.subr.mxu0 0.0
    %1957 = vmatpush2.msra.mxu0 0.0
    %1958 = vmatprep.subr.mxu0 0.0
    %1959 = vmatpush2.msra.mxu0 0.0
    %1960 = vmatprep.subr.mxu0 0.0
    %1961 = vmatpush2.msra.mxu0 0.0
    %1962 = vmatprep.subr.mxu0 0.0
    %1963 = vmatpush2.msra.mxu0 0.0
    %1964 = vmatprep.subr.mxu0 0.0
    %1965 = vmatpush2.msra.mxu0 0.0
    %1966 = vmatprep.subr.mxu0 0.0
    %1967 = vmatpush2.msra.mxu0 0.0
    %1968 = vmatprep.subr.mxu0 0.0
    %1969 = vmatpush2.msra.mxu0 0.0
    %1970 = vmatprep.subr.mxu0 0.0
    %1971 = vmatpush2.msra.mxu0 0.0
    %1972 = vmatprep.subr.mxu0 0.0
    %1973 = vmatpush2.msra.mxu0 0.0
    %1974 = vmatprep.subr.mxu0 0.0
    %1975 = vmatpush2.msra.mxu0 0.0
    %1976 = vmatprep.mubr.f32.mxu0 0.0
    %1977 = vmatmul.mubr.f32.gmra.mxu0 %v1907
    %v1978 = vpop.f32.mrf.mxu0
    %v1979 = vadd.f32 %v1115, %v1978
    %v1980 = vpop.f32.mrf.mxu0
    %1981 = vmatprep.mubr.f32.mxu0 0.0
    %1982 = vmatmul.mubr.f32.gmra.mxu0 %v1910
    %v1983 = vpop.f32.mrf.mxu0
    %v1984 = vadd.f32 %v1115, %v1983
    %v1985 = vpop.f32.mrf.mxu0
    %1986 = vdwg.mxu0
    %v1987 = vmax.f32 %v1979, 0.0
    %v1988 = vmax.f32 %v1984, 0.0
    %1989 = vmatprep.subr.mxu0 0.0
    %1990 = vmatpush1.msra.mxu0 0.0
    %1991 = vmatprep.subr.mxu0 0.0
    %1992 = vmatpush1.msra.mxu0 0.0
    %1993 = vmatprep.subr.mxu0 0.0
    %1994 = vmatpush1.msra.mxu0 0.0
    %1995 = vmatprep.subr.mxu0 0.0
    %1996 = vmatpush1.msra.mxu0 0.0
    %1997 = vmatprep.subr.mxu0 0.0
    %1998 = vmatpush1.msra.mxu0 0.0
    %1999 = vmatprep.subr.mxu0 0.0
    %2000 = vmatpush1.msra.mxu0 0.0
    %2001 = vmatprep.subr.mxu0 0.0
    %2002 = vmatpush1.msra.mxu0 0.0
    %2003 = vmatprep.subr.mxu0 0.0
    %2004 = vmatpush1.msra.mxu0 0.0
    %2005 = vmatprep.subr.mxu0 0.0
    %2006 = vmatpush1.msra.mxu0 0.0
    %2007 = vmatprep.subr.mxu0 0.0
    %2008 = vmatpush1.msra.mxu0 0.0
    %2009 = vmatprep.subr.mxu0 0.0
    %2010 = vmatpush1.msra.mxu0 0.0
    %2011 = vmatprep.subr.mxu0 0.0
    %2012 = vmatpush1.msra.mxu0 0.0
    %2013 = vmatprep.subr.mxu0 0.0
    %2014 = vmatpush1.msra.mxu0 %v1211
    %2015 = vmatprep.subr.mxu0 0.0
    %2016 = vmatpush1.msra.mxu0 %v1208
    %2017 = vmatprep.subr.mxu0 0.0
    %2018 = vmatpush1.msra.mxu0 %v1207
    %2019 = vmatprep.subr.mxu0 0.0
    %2020 = vmatpush1.msra.mxu0 %v1206
    %2021 = vmatprep.subr.mxu0 0.0
    %2022 = vmatpush2.msra.mxu0 0.0
    %2023 = vmatprep.subr.mxu0 0.0
    %2024 = vmatpush2.msra.mxu0 0.0
    %2025 = vmatprep.subr.mxu0 0.0
    %2026 = vmatpush2.msra.mxu0 0.0
    %2027 = vmatprep.subr.mxu0 0.0
    %2028 = vmatpush2.msra.mxu0 0.0
    %2029 = vmatprep.subr.mxu0 0.0
    %2030 = vmatpush2.msra.mxu0 0.0
    %2031 = vmatprep.subr.mxu0 0.0
    %2032 = vmatpush2.msra.mxu0 0.0
    %2033 = vmatprep.subr.mxu0 0.0
    %2034 = vmatpush2.msra.mxu0 0.0
    %2035 = vmatprep.subr.mxu0 0.0
    %2036 = vmatpush2.msra.mxu0 0.0
    %2037 = vmatprep.subr.mxu0 0.0
    %2038 = vmatpush2.msra.mxu0 0.0
    %2039 = vmatprep.subr.mxu0 0.0
    %2040 = vmatpush2.msra.mxu0 0.0
    %2041 = vmatprep.subr.mxu0 0.0
    %2042 = vmatpush2.msra.mxu0 0.0
    %2043 = vmatprep.subr.mxu0 0.0
    %2044 = vmatpush2.msra.mxu0 0.0
    %2045 = vmatprep.subr.mxu0 0.0
    %2046 = vmatpush2.msra.mxu0 0.0
    %2047 = vmatprep.subr.mxu0 0.0
    %2048 = vmatpush2.msra.mxu0 0.0
    %2049 = vmatprep.subr.mxu0 0.0
    %2050 = vmatpush2.msra.mxu0 0.0
    %2051 = vmatprep.subr.mxu0 0.0
    %2052 = vmatpush2.msra.mxu0 0.0
    %2053 = vmatprep.mubr.f32.mxu0 0.0
    %2054 = vmatmul.mubr.f32.gmra.mxu0 %v1907
    %v2055 = vpop.f32.mrf.mxu0
    %v2056 = vadd.f32 %v1115, %v2055
    %v2057 = vpop.f32.mrf.mxu0
    %2058 = vmatprep.mubr.f32.mxu0 0.0
    %2059 = vmatmul.mubr.f32.gmra.mxu0 %v1910
    %v2060 = vpop.f32.mrf.mxu0
    %v2061 = vadd.f32 %v1115, %v2060
    %v2062 = vpop.f32.mrf.mxu0
    %2063 = vdwg.mxu0
    %v2064 = vmax.f32 %v2056, 0.0
    %v2065 = vmax.f32 %v2061, 0.0
    %v2066 = vmax.f32 %v1987, %v2064
    %v2067 = vmax.f32 %v1988, %v2065
    %2068 = vmatprep.subr.mxu0 0.0
    %2069 = vmatpush1.msra.mxu0 0.0
    %2070 = vmatprep.subr.mxu0 0.0
    %2071 = vmatpush1.msra.mxu0 0.0
    %2072 = vmatprep.subr.mxu0 0.0
    %2073 = vmatpush1.msra.mxu0 0.0
    %2074 = vmatprep.subr.mxu0 0.0
    %2075 = vmatpush1.msra.mxu0 0.0
    %2076 = vmatprep.subr.mxu0 0.0
    %2077 = vmatpush1.msra.mxu0 0.0
    %2078 = vmatprep.subr.mxu0 0.0
    %2079 = vmatpush1.msra.mxu0 0.0
    %2080 = vmatprep.subr.mxu0 0.0
    %2081 = vmatpush1.msra.mxu0 0.0
    %2082 = vmatprep.subr.mxu0 0.0
    %2083 = vmatpush1.msra.mxu0 0.0
    %2084 = vmatprep.subr.mxu0 0.0
    %2085 = vmatpush1.msra.mxu0 0.0
    %2086 = vmatprep.subr.mxu0 0.0
    %2087 = vmatpush1.msra.mxu0 0.0
    %2088 = vmatprep.subr.mxu0 0.0
    %2089 = vmatpush1.msra.mxu0 0.0
    %2090 = vmatprep.subr.mxu0 0.0
    %2091 = vmatpush1.msra.mxu0 0.0
    %2092 = vmatprep.subr.mxu0 0.0
    %2093 = vmatpush1.msra.mxu0 %v1298
    %2094 = vmatprep.subr.mxu0 0.0
    %2095 = vmatpush1.msra.mxu0 %v1295
    %2096 = vmatprep.subr.mxu0 0.0
    %2097 = vmatpush1.msra.mxu0 %v1294
    %2098 = vmatprep.subr.mxu0 0.0
    %2099 = vmatpush1.msra.mxu0 %v1293
    %2100 = vmatprep.subr.mxu0 0.0
    %2101 = vmatpush2.msra.mxu0 0.0
    %2102 = vmatprep.subr.mxu0 0.0
    %2103 = vmatpush2.msra.mxu0 0.0
    %2104 = vmatprep.subr.mxu0 0.0
    %2105 = vmatpush2.msra.mxu0 0.0
    %2106 = vmatprep.subr.mxu0 0.0
    %2107 = vmatpush2.msra.mxu0 0.0
    %2108 = vmatprep.subr.mxu0 0.0
    %2109 = vmatpush2.msra.mxu0 0.0
    %2110 = vmatprep.subr.mxu0 0.0
    %2111 = vmatpush2.msra.mxu0 0.0
    %2112 = vmatprep.subr.mxu0 0.0
    %2113 = vmatpush2.msra.mxu0 0.0
    %2114 = vmatprep.subr.mxu0 0.0
    %2115 = vmatpush2.msra.mxu0 0.0
    %2116 = vmatprep.subr.mxu0 0.0
    %2117 = vmatpush2.msra.mxu0 0.0
    %2118 = vmatprep.subr.mxu0 0.0
    %2119 = vmatpush2.msra.mxu0 0.0
    %2120 = vmatprep.subr.mxu0 0.0
    %2121 = vmatpush2.msra.mxu0 0.0
    %2122 = vmatprep.subr.mxu0 0.0
    %2123 = vmatpush2.msra.mxu0 0.0
    %2124 = vmatprep.subr.mxu0 0.0
    %2125 = vmatpush2.msra.mxu0 0.0
    %2126 = vmatprep.subr.mxu0 0.0
    %2127 = vmatpush2.msra.mxu0 0.0
    %2128 = vmatprep.subr.mxu0 0.0
    %2129 = vmatpush2.msra.mxu0 0.0
    %2130 = vmatprep.subr.mxu0 0.0
    %2131 = vmatpush2.msra.mxu0 0.0
    %2132 = vmatprep.mubr.f32.mxu0 0.0
    %2133 = vmatmul.mubr.f32.gmra.mxu0 %v1907
    %v2134 = vpop.f32.mrf.mxu0
    %v2135 = vadd.f32 %v1115, %v2134
    %v2136 = vpop.f32.mrf.mxu0
    %2137 = vmatprep.mubr.f32.mxu0 0.0
    %2138 = vmatmul.mubr.f32.gmra.mxu0 %v1910
    %v2139 = vpop.f32.mrf.mxu0
    %v2140 = vadd.f32 %v1115, %v2139
    %v2141 = vpop.f32.mrf.mxu0
    %2142 = vdwg.mxu0
    %v2143 = vmax.f32 %v2135, 0.0
    %v2144 = vmax.f32 %v2140, 0.0
    %v2145 = vmax.f32 %v2066, %v2143
    %v2146 = vmax.f32 %v2067, %v2144
    %2147 = vmatprep.subr.mxu0 0.0
    %2148 = vmatpush1.msra.mxu0 0.0
    %2149 = vmatprep.subr.mxu0 0.0
    %2150 = vmatpush1.msra.mxu0 0.0
    %2151 = vmatprep.subr.mxu0 0.0
    %2152 = vmatpush1.msra.mxu0 0.0
    %2153 = vmatprep.subr.mxu0 0.0
    %2154 = vmatpush1.msra.mxu0 0.0
    %2155 = vmatprep.subr.mxu0 0.0
    %2156 = vmatpush1.msra.mxu0 0.0
    %2157 = vmatprep.subr.mxu0 0.0
    %2158 = vmatpush1.msra.mxu0 0.0
    %2159 = vmatprep.subr.mxu0 0.0
    %2160 = vmatpush1.msra.mxu0 0.0
    %2161 = vmatprep.subr.mxu0 0.0
    %2162 = vmatpush1.msra.mxu0 0.0
    %2163 = vmatprep.subr.mxu0 0.0
    %2164 = vmatpush1.msra.mxu0 0.0
    %2165 = vmatprep.subr.mxu0 0.0
    %2166 = vmatpush1.msra.mxu0 0.0
    %2167 = vmatprep.subr.mxu0 0.0
    %2168 = vmatpush1.msra.mxu0 0.0
    %2169 = vmatprep.subr.mxu0 0.0
    %2170 = vmatpush1.msra.mxu0 0.0
    %2171 = vmatprep.subr.mxu0 0.0
    %2172 = vmatpush1.msra.mxu0 %v1385
    %2173 = vmatprep.subr.mxu0 0.0
    %2174 = vmatpush1.msra.mxu0 %v1382
    %2175 = vmatprep.subr.mxu0 0.0
    %2176 = vmatpush1.msra.mxu0 %v1381
    %2177 = vmatprep.subr.mxu0 0.0
    %2178 = vmatpush1.msra.mxu0 %v1380
    %2179 = vmatprep.subr.mxu0 0.0
    %2180 = vmatpush2.msra.mxu0 0.0
    %2181 = vmatprep.subr.mxu0 0.0
    %2182 = vmatpush2.msra.mxu0 0.0
    %2183 = vmatprep.subr.mxu0 0.0
    %2184 = vmatpush2.msra.mxu0 0.0
    %2185 = vmatprep.subr.mxu0 0.0
    %2186 = vmatpush2.msra.mxu0 0.0
    %2187 = vmatprep.subr.mxu0 0.0
    %2188 = vmatpush2.msra.mxu0 0.0
    %2189 = vmatprep.subr.mxu0 0.0
    %2190 = vmatpush2.msra.mxu0 0.0
    %2191 = vmatprep.subr.mxu0 0.0
    %2192 = vmatpush2.msra.mxu0 0.0
    %2193 = vmatprep.subr.mxu0 0.0
    %2194 = vmatpush2.msra.mxu0 0.0
    %2195 = vmatprep.subr.mxu0 0.0
    %2196 = vmatpush2.msra.mxu0 0.0
    %2197 = vmatprep.subr.mxu0 0.0
    %2198 = vmatpush2.msra.mxu0 0.0
    %2199 = vmatprep.subr.mxu0 0.0
    %2200 = vmatpush2.msra.mxu0 0.0
    %2201 = vmatprep.subr.mxu0 0.0
    %2202 = vmatpush2.msra.mxu0 0.0
    %2203 = vmatprep.subr.mxu0 0.0
    %2204 = vmatpush2.msra.mxu0 0.0
    %2205 = vmatprep.subr.mxu0 0.0
    %2206 = vmatpush2.msra.mxu0 0.0
    %2207 = vmatprep.subr.mxu0 0.0
    %2208 = vmatpush2.msra.mxu0 0.0
    %2209 = vmatprep.subr.mxu0 0.0
    %2210 = vmatpush2.msra.mxu0 0.0
    %2211 = vmatprep.mubr.f32.mxu0 0.0
    %2212 = vmatmul.mubr.f32.gmra.mxu0 %v1907
    %v2213 = vpop.f32.mrf.mxu0
    %v2214 = vadd.f32 %v1115, %v2213
    %v2215 = vpop.f32.mrf.mxu0
    %2216 = vmatprep.mubr.f32.mxu0 0.0
    %2217 = vmatmul.mubr.f32.gmra.mxu0 %v1910
    %v2218 = vpop.f32.mrf.mxu0
    %v2219 = vadd.f32 %v1115, %v2218
    %v2220 = vpop.f32.mrf.mxu0
    %2221 = vdwg.mxu0
    %v2222 = vmax.f32 %v2214, 0.0
    %v2223 = vmax.f32 %v2219, 0.0
    %v2224 = vmax.f32 %v2145, %v2222
    %v2225 = vmax.f32 %v2146, %v2223
    %v2227 = vsel %vm1477, %v2224, 0
    %v2230 = vsel %vm1477, %v2225, 0
    %2232 = vmatprep.subr.mxu0 0.0
    %2233 = vmatpush1.msra.mxu0 0.0
    %2234 = vmatprep.subr.mxu0 0.0
    %2235 = vmatpush1.msra.mxu0 0.0
    %2236 = vmatprep.subr.mxu0 0.0
    %2237 = vmatpush1.msra.mxu0 0.0
    %2238 = vmatprep.subr.mxu0 0.0
    %2239 = vmatpush1.msra.mxu0 0.0
    %2240 = vmatprep.subr.mxu0 0.0
    %2241 = vmatpush1.msra.mxu0 0.0
    %2242 = vmatprep.subr.mxu0 0.0
    %2243 = vmatpush1.msra.mxu0 0.0
    %2244 = vmatprep.subr.mxu0 0.0
    %2245 = vmatpush1.msra.mxu0 0.0
    %2246 = vmatprep.subr.mxu0 0.0
    %2247 = vmatpush1.msra.mxu0 0.0
    %2248 = vmatprep.subr.mxu0 0.0
    %2249 = vmatpush1.msra.mxu0 0.0
    %2250 = vmatprep.subr.mxu0 0.0
    %2251 = vmatpush1.msra.mxu0 0.0
    %2252 = vmatprep.subr.mxu0 0.0
    %2253 = vmatpush1.msra.mxu0 0.0
    %2254 = vmatprep.subr.mxu0 0.0
    %2255 = vmatpush1.msra.mxu0 0.0
    %2256 = vmatprep.subr.mxu0 0.0
    %2257 = vmatpush1.msra.mxu0 %v1469
    %2258 = vmatprep.subr.mxu0 0.0
    %2259 = vmatpush1.msra.mxu0 %v1468
    %2260 = vmatprep.subr.mxu0 0.0
    %2261 = vmatpush1.msra.mxu0 %v1467
    %2262 = vmatprep.subr.mxu0 0.0
    %2263 = vmatpush1.msra.mxu0 %v1466
    %2264 = vmatprep.subr.mxu0 0.0
    %2265 = vmatpush2.msra.mxu0 0.0
    %2266 = vmatprep.subr.mxu0 0.0
    %2267 = vmatpush2.msra.mxu0 0.0
    %2268 = vmatprep.subr.mxu0 0.0
    %2269 = vmatpush2.msra.mxu0 0.0
    %2270 = vmatprep.subr.mxu0 0.0
    %2271 = vmatpush2.msra.mxu0 0.0
    %2272 = vmatprep.subr.mxu0 0.0
    %2273 = vmatpush2.msra.mxu0 0.0
    %2274 = vmatprep.subr.mxu0 0.0
    %2275 = vmatpush2.msra.mxu0 0.0
    %2276 = vmatprep.subr.mxu0 0.0
    %2277 = vmatpush2.msra.mxu0 0.0
    %2278 = vmatprep.subr.mxu0 0.0
    %2279 = vmatpush2.msra.mxu0 0.0
    %2280 = vmatprep.subr.mxu0 0.0
    %2281 = vmatpush2.msra.mxu0 0.0
    %2282 = vmatprep.subr.mxu0 0.0
    %2283 = vmatpush2.msra.mxu0 0.0
    %2284 = vmatprep.subr.mxu0 0.0
    %2285 = vmatpush2.msra.mxu0 0.0
    %2286 = vmatprep.subr.mxu0 0.0
    %2287 = vmatpush2.msra.mxu0 0.0
    %2288 = vmatprep.subr.mxu0 0.0
    %2289 = vmatpush2.msra.mxu0 0.0
    %2290 = vmatprep.subr.mxu0 0.0
    %2291 = vmatpush2.msra.mxu0 0.0
    %2292 = vmatprep.subr.mxu0 0.0
    %2293 = vmatpush2.msra.mxu0 0.0
    %2294 = vmatprep.subr.mxu0 0.0
    %2295 = vmatpush2.msra.mxu0 0.0
    %2296 = vmatprep.mubr.f32.mxu0 0.0
    %2297 = vmatmul.mubr.f32.gmra.mxu0 %v2227
    %v2298 = vpop.f32.mrf.mxu0
    %v2299 = vadd.f32 %v1475, %v2298
    %v2300 = vpop.f32.mrf.mxu0
    %2301 = vmatprep.mubr.f32.mxu0 0.0
    %2302 = vmatmul.mubr.f32.gmra.mxu0 %v2230
    %v2303 = vpop.f32.mrf.mxu0
    %v2304 = vadd.f32 %v1475, %v2303
    %v2305 = vpop.f32.mrf.mxu0
    %2306 = vdwg.mxu0
    %v2307 = vmax.f32 %v2299, 0.0
    %v2308 = vmax.f32 %v2304, 0.0
    %2309 = vmatprep.subr.mxu0 0.0
    %2310 = vmatpush1.msra.mxu0 0.0
    %2311 = vmatprep.subr.mxu0 0.0
    %2312 = vmatpush1.msra.mxu0 0.0
    %2313 = vmatprep.subr.mxu0 0.0
    %2314 = vmatpush1.msra.mxu0 0.0
    %2315 = vmatprep.subr.mxu0 0.0
    %2316 = vmatpush1.msra.mxu0 0.0
    %2317 = vmatprep.subr.mxu0 0.0
    %2318 = vmatpush1.msra.mxu0 0.0
    %2319 = vmatprep.subr.mxu0 0.0
    %2320 = vmatpush1.msra.mxu0 0.0
    %2321 = vmatprep.subr.mxu0 0.0
    %2322 = vmatpush1.msra.mxu0 0.0
    %2323 = vmatprep.subr.mxu0 0.0
    %2324 = vmatpush1.msra.mxu0 0.0
    %2325 = vmatprep.subr.mxu0 0.0
    %2326 = vmatpush1.msra.mxu0 0.0
    %2327 = vmatprep.subr.mxu0 0.0
    %2328 = vmatpush1.msra.mxu0 0.0
    %2329 = vmatprep.subr.mxu0 0.0
    %2330 = vmatpush1.msra.mxu0 0.0
    %2331 = vmatprep.subr.mxu0 0.0
    %2332 = vmatpush1.msra.mxu0 0.0
    %2333 = vmatprep.subr.mxu0 0.0
    %2334 = vmatpush1.msra.mxu0 %v1565
    %2335 = vmatprep.subr.mxu0 0.0
    %2336 = vmatpush1.msra.mxu0 %v1564
    %2337 = vmatprep.subr.mxu0 0.0
    %2338 = vmatpush1.msra.mxu0 %v1563
    %2339 = vmatprep.subr.mxu0 0.0
    %2340 = vmatpush1.msra.mxu0 %v1562
    %2341 = vmatprep.subr.mxu0 0.0
    %2342 = vmatpush2.msra.mxu0 0.0
    %2343 = vmatprep.subr.mxu0 0.0
    %2344 = vmatpush2.msra.mxu0 0.0
    %2345 = vmatprep.subr.mxu0 0.0
    %2346 = vmatpush2.msra.mxu0 0.0
    %2347 = vmatprep.subr.mxu0 0.0
    %2348 = vmatpush2.msra.mxu0 0.0
    %2349 = vmatprep.subr.mxu0 0.0
    %2350 = vmatpush2.msra.mxu0 0.0
    %2351 = vmatprep.subr.mxu0 0.0
    %2352 = vmatpush2.msra.mxu0 0.0
    %2353 = vmatprep.subr.mxu0 0.0
    %2354 = vmatpush2.msra.mxu0 0.0
    %2355 = vmatprep.subr.mxu0 0.0
    %2356 = vmatpush2.msra.mxu0 0.0
    %2357 = vmatprep.subr.mxu0 0.0
    %2358 = vmatpush2.msra.mxu0 0.0
    %2359 = vmatprep.subr.mxu0 0.0
    %2360 = vmatpush2.msra.mxu0 0.0
    %2361 = vmatprep.subr.mxu0 0.0
    %2362 = vmatpush2.msra.mxu0 0.0
    %2363 = vmatprep.subr.mxu0 0.0
    %2364 = vmatpush2.msra.mxu0 0.0
    %2365 = vmatprep.subr.mxu0 0.0
    %2366 = vmatpush2.msra.mxu0 0.0
    %2367 = vmatprep.subr.mxu0 0.0
    %2368 = vmatpush2.msra.mxu0 0.0
    %2369 = vmatprep.subr.mxu0 0.0
    %2370 = vmatpush2.msra.mxu0 0.0
    %2371 = vmatprep.subr.mxu0 0.0
    %2372 = vmatpush2.msra.mxu0 0.0
    %2373 = vmatprep.mubr.f32.mxu0 0.0
    %2374 = vmatmul.mubr.f32.gmra.mxu0 %v2227
    %v2375 = vpop.f32.mrf.mxu0
    %v2376 = vadd.f32 %v1475, %v2375
    %v2377 = vpop.f32.mrf.mxu0
    %2378 = vmatprep.mubr.f32.mxu0 0.0
    %2379 = vmatmul.mubr.f32.gmra.mxu0 %v2230
    %v2380 = vpop.f32.mrf.mxu0
    %v2381 = vadd.f32 %v1475, %v2380
    %v2382 = vpop.f32.mrf.mxu0
    %2383 = vdwg.mxu0
    %v2384 = vmax.f32 %v2376, 0.0
    %v2385 = vmax.f32 %v2381, 0.0
    %v2386 = vmax.f32 %v2307, %v2384
    %v2387 = vmax.f32 %v2308, %v2385
    %2388 = vmatprep.subr.mxu0 0.0
    %2389 = vmatpush1.msra.mxu0 0.0
    %2390 = vmatprep.subr.mxu0 0.0
    %2391 = vmatpush1.msra.mxu0 0.0
    %2392 = vmatprep.subr.mxu0 0.0
    %2393 = vmatpush1.msra.mxu0 0.0
    %2394 = vmatprep.subr.mxu0 0.0
    %2395 = vmatpush1.msra.mxu0 0.0
    %2396 = vmatprep.subr.mxu0 0.0
    %2397 = vmatpush1.msra.mxu0 0.0
    %2398 = vmatprep.subr.mxu0 0.0
    %2399 = vmatpush1.msra.mxu0 0.0
    %2400 = vmatprep.subr.mxu0 0.0
    %2401 = vmatpush1.msra.mxu0 0.0
    %2402 = vmatprep.subr.mxu0 0.0
    %2403 = vmatpush1.msra.mxu0 0.0
    %2404 = vmatprep.subr.mxu0 0.0
    %2405 = vmatpush1.msra.mxu0 0.0
    %2406 = vmatprep.subr.mxu0 0.0
    %2407 = vmatpush1.msra.mxu0 0.0
    %2408 = vmatprep.subr.mxu0 0.0
    %2409 = vmatpush1.msra.mxu0 0.0
    %2410 = vmatprep.subr.mxu0 0.0
    %2411 = vmatpush1.msra.mxu0 0.0
    %2412 = vmatprep.subr.mxu0 0.0
    %2413 = vmatpush1.msra.mxu0 %v1649
    %2414 = vmatprep.subr.mxu0 0.0
    %2415 = vmatpush1.msra.mxu0 %v1648
    %2416 = vmatprep.subr.mxu0 0.0
    %2417 = vmatpush1.msra.mxu0 %v1647
    %2418 = vmatprep.subr.mxu0 0.0
    %2419 = vmatpush1.msra.mxu0 %v1646
    %2420 = vmatprep.subr.mxu0 0.0
    %2421 = vmatpush2.msra.mxu0 0.0
    %2422 = vmatprep.subr.mxu0 0.0
    %2423 = vmatpush2.msra.mxu0 0.0
    %2424 = vmatprep.subr.mxu0 0.0
    %2425 = vmatpush2.msra.mxu0 0.0
    %2426 = vmatprep.subr.mxu0 0.0
    %2427 = vmatpush2.msra.mxu0 0.0
    %2428 = vmatprep.subr.mxu0 0.0
    %2429 = vmatpush2.msra.mxu0 0.0
    %2430 = vmatprep.subr.mxu0 0.0
    %2431 = vmatpush2.msra.mxu0 0.0
    %2432 = vmatprep.subr.mxu0 0.0
    %2433 = vmatpush2.msra.mxu0 0.0
    %2434 = vmatprep.subr.mxu0 0.0
    %2435 = vmatpush2.msra.mxu0 0.0
    %2436 = vmatprep.subr.mxu0 0.0
    %2437 = vmatpush2.msra.mxu0 0.0
    %2438 = vmatprep.subr.mxu0 0.0
    %2439 = vmatpush2.msra.mxu0 0.0
    %2440 = vmatprep.subr.mxu0 0.0
    %2441 = vmatpush2.msra.mxu0 0.0
    %2442 = vmatprep.subr.mxu0 0.0
    %2443 = vmatpush2.msra.mxu0 0.0
    %2444 = vmatprep.subr.mxu0 0.0
    %2445 = vmatpush2.msra.mxu0 0.0
    %2446 = vmatprep.subr.mxu0 0.0
    %2447 = vmatpush2.msra.mxu0 0.0
    %2448 = vmatprep.subr.mxu0 0.0
    %2449 = vmatpush2.msra.mxu0 0.0
    %2450 = vmatprep.subr.mxu0 0.0
    %2451 = vmatpush2.msra.mxu0 0.0
    %2452 = vmatprep.mubr.f32.mxu0 0.0
    %2453 = vmatmul.mubr.f32.gmra.mxu0 %v2227
    %v2454 = vpop.f32.mrf.mxu0
    %v2455 = vadd.f32 %v1475, %v2454
    %v2456 = vpop.f32.mrf.mxu0
    %2457 = vmatprep.mubr.f32.mxu0 0.0
    %2458 = vmatmul.mubr.f32.gmra.mxu0 %v2230
    %v2459 = vpop.f32.mrf.mxu0
    %v2460 = vadd.f32 %v1475, %v2459
    %v2461 = vpop.f32.mrf.mxu0
    %2462 = vdwg.mxu0
    %v2463 = vmax.f32 %v2455, 0.0
    %v2464 = vmax.f32 %v2460, 0.0
    %v2465 = vmax.f32 %v2386, %v2463
    %v2466 = vmax.f32 %v2387, %v2464
    %2467 = vmatprep.subr.mxu0 0.0
    %2468 = vmatpush1.msra.mxu0 0.0
    %2469 = vmatprep.subr.mxu0 0.0
    %2470 = vmatpush1.msra.mxu0 0.0
    %2471 = vmatprep.subr.mxu0 0.0
    %2472 = vmatpush1.msra.mxu0 0.0
    %2473 = vmatprep.subr.mxu0 0.0
    %2474 = vmatpush1.msra.mxu0 0.0
    %2475 = vmatprep.subr.mxu0 0.0
    %2476 = vmatpush1.msra.mxu0 0.0
    %2477 = vmatprep.subr.mxu0 0.0
    %2478 = vmatpush1.msra.mxu0 0.0
    %2479 = vmatprep.subr.mxu0 0.0
    %2480 = vmatpush1.msra.mxu0 0.0
    %2481 = vmatprep.subr.mxu0 0.0
    %2482 = vmatpush1.msra.mxu0 0.0
    %2483 = vmatprep.subr.mxu0 0.0
    %2484 = vmatpush1.msra.mxu0 0.0
    %2485 = vmatprep.subr.mxu0 0.0
    %2486 = vmatpush1.msra.mxu0 0.0
    %2487 = vmatprep.subr.mxu0 0.0
    %2488 = vmatpush1.msra.mxu0 0.0
    %2489 = vmatprep.subr.mxu0 0.0
    %2490 = vmatpush1.msra.mxu0 0.0
    %2491 = vmatprep.subr.mxu0 0.0
    %2492 = vmatpush1.msra.mxu0 %v1733
    %2493 = vmatprep.subr.mxu0 0.0
    %2494 = vmatpush1.msra.mxu0 %v1732
    %2495 = vmatprep.subr.mxu0 0.0
    %2496 = vmatpush1.msra.mxu0 %v1731
    %2497 = vmatprep.subr.mxu0 0.0
    %2498 = vmatpush1.msra.mxu0 %v1730
    %2499 = vmatprep.subr.mxu0 0.0
    %2500 = vmatpush2.msra.mxu0 0.0
    %2501 = vmatprep.subr.mxu0 0.0
    %2502 = vmatpush2.msra.mxu0 0.0
    %2503 = vmatprep.subr.mxu0 0.0
    %2504 = vmatpush2.msra.mxu0 0.0
    %2505 = vmatprep.subr.mxu0 0.0
    %2506 = vmatpush2.msra.mxu0 0.0
    %2507 = vmatprep.subr.mxu0 0.0
    %2508 = vmatpush2.msra.mxu0 0.0
    %2509 = vmatprep.subr.mxu0 0.0
    %2510 = vmatpush2.msra.mxu0 0.0
    %2511 = vmatprep.subr.mxu0 0.0
    %2512 = vmatpush2.msra.mxu0 0.0
    %2513 = vmatprep.subr.mxu0 0.0
    %2514 = vmatpush2.msra.mxu0 0.0
    %2515 = vmatprep.subr.mxu0 0.0
    %2516 = vmatpush2.msra.mxu0 0.0
    %2517 = vmatprep.subr.mxu0 0.0
    %2518 = vmatpush2.msra.mxu0 0.0
    %2519 = vmatprep.subr.mxu0 0.0
    %2520 = vmatpush2.msra.mxu0 0.0
    %2521 = vmatprep.subr.mxu0 0.0
    %2522 = vmatpush2.msra.mxu0 0.0
    %2523 = vmatprep.subr.mxu0 0.0
    %2524 = vmatpush2.msra.mxu0 0.0
    %2525 = vmatprep.subr.mxu0 0.0
    %2526 = vmatpush2.msra.mxu0 0.0
    %2527 = vmatprep.subr.mxu0 0.0
    %2528 = vmatpush2.msra.mxu0 0.0
    %2529 = vmatprep.subr.mxu0 0.0
    %2530 = vmatpush2.msra.mxu0 0.0
    %2531 = vmatprep.mubr.f32.mxu0 0.0
    %2532 = vmatmul.mubr.f32.gmra.mxu0 %v2227
    %v2533 = vpop.f32.mrf.mxu0
    %v2534 = vadd.f32 %v1475, %v2533
    %v2535 = vpop.f32.mrf.mxu0
    %2536 = vmatprep.mubr.f32.mxu0 0.0
    %2537 = vmatmul.mubr.f32.gmra.mxu0 %v2230
    %v2538 = vpop.f32.mrf.mxu0
    %v2539 = vadd.f32 %v1475, %v2538
    %v2540 = vpop.f32.mrf.mxu0
    %2541 = vdwg.mxu0
    %v2542 = vmax.f32 %v2534, 0.0
    %v2543 = vmax.f32 %v2539, 0.0
    %v2544 = vmax.f32 %v2465, %v2542
    %v2545 = vmax.f32 %v2466, %v2543
    %v2547 = vsel %vm1822, %v2544, 0
    %v2550 = vsel %vm1822, %v2545, 0
    %2552 = vmatprep.subr.mxu0 0.0
    %2553 = vmatpush1.msra.mxu0 0.0
    %2554 = vmatprep.subr.mxu0 0.0
    %2555 = vmatpush1.msra.mxu0 0.0
    %2556 = vmatprep.subr.mxu0 0.0
    %2557 = vmatpush1.msra.mxu0 0.0
    %2558 = vmatprep.subr.mxu0 0.0
    %2559 = vmatpush1.msra.mxu0 0.0
    %2560 = vmatprep.subr.mxu0 0.0
    %2561 = vmatpush1.msra.mxu0 0.0
    %2562 = vmatprep.subr.mxu0 0.0
    %2563 = vmatpush1.msra.mxu0 0.0
    %2564 = vmatprep.subr.mxu0 0.0
    %2565 = vmatpush1.msra.mxu0 0.0
    %2566 = vmatprep.subr.mxu0 0.0
    %2567 = vmatpush1.msra.mxu0 0.0
    %2568 = vmatprep.subr.mxu0 0.0
    %2569 = vmatpush1.msra.mxu0 0.0
    %2570 = vmatprep.subr.mxu0 0.0
    %2571 = vmatpush1.msra.mxu0 0.0
    %2572 = vmatprep.subr.mxu0 0.0
    %2573 = vmatpush1.msra.mxu0 0.0
    %2574 = vmatprep.subr.mxu0 0.0
    %2575 = vmatpush1.msra.mxu0 0.0
    %2576 = vmatprep.subr.mxu0 0.0
    %2577 = vmatpush1.msra.mxu0 0.0
    %2578 = vmatprep.subr.mxu0 0.0
    %2579 = vmatpush1.msra.mxu0 0.0
    %2580 = vmatprep.subr.mxu0 0.0
    %2581 = vmatpush1.msra.mxu0 %v1814
    %2582 = vmatprep.subr.mxu0 0.0
    %2583 = vmatpush1.msra.mxu0 %v1813
    %2584 = vmatprep.subr.mxu0 0.0
    %2585 = vmatpush2.msra.mxu0 0.0
    %2586 = vmatprep.subr.mxu0 0.0
    %2587 = vmatpush2.msra.mxu0 0.0
    %2588 = vmatprep.subr.mxu0 0.0
    %2589 = vmatpush2.msra.mxu0 0.0
    %2590 = vmatprep.subr.mxu0 0.0
    %2591 = vmatpush2.msra.mxu0 0.0
    %2592 = vmatprep.subr.mxu0 0.0
    %2593 = vmatpush2.msra.mxu0 0.0
    %2594 = vmatprep.subr.mxu0 0.0
    %2595 = vmatpush2.msra.mxu0 0.0
    %2596 = vmatprep.subr.mxu0 0.0
    %2597 = vmatpush2.msra.mxu0 0.0
    %2598 = vmatprep.subr.mxu0 0.0
    %2599 = vmatpush2.msra.mxu0 0.0
    %2600 = vmatprep.subr.mxu0 0.0
    %2601 = vmatpush2.msra.mxu0 0.0
    %2602 = vmatprep.subr.mxu0 0.0
    %2603 = vmatpush2.msra.mxu0 0.0
    %2604 = vmatprep.subr.mxu0 0.0
    %2605 = vmatpush2.msra.mxu0 0.0
    %2606 = vmatprep.subr.mxu0 0.0
    %2607 = vmatpush2.msra.mxu0 0.0
    %2608 = vmatprep.subr.mxu0 0.0
    %2609 = vmatpush2.msra.mxu0 0.0
    %2610 = vmatprep.subr.mxu0 0.0
    %2611 = vmatpush2.msra.mxu0 0.0
    %2612 = vmatprep.subr.mxu0 0.0
    %2613 = vmatpush2.msra.mxu0 0.0
    %2614 = vmatprep.subr.mxu0 0.0
    %2615 = vmatpush2.msra.mxu0 0.0
    %2616 = vmatprep.mubr.f32.mxu0 0.0
    %2617 = vmatmul.mubr.f32.gmra.mxu0 %v2547
    %v2618 = vpop.f32.mrf.mxu0
    %v2619 = vadd.f32 %v1820, %v2618
    %v2620 = vpop.f32.mrf.mxu0
    %2621 = vmatprep.mubr.f32.mxu0 0.0
    %2622 = vmatmul.mubr.f32.gmra.mxu0 %v2550
    %v2623 = vpop.f32.mrf.mxu0
    %v2624 = vadd.f32 %v1820, %v2623
    %v2625 = vpop.f32.mrf.mxu0
    %2626 = vdwg.mxu0
    %v2627 = vld [vmem:[%s3] sm:$0xff]
    %v2628 = vld [vmem:[%s3 + $0x8] sm:$0xff]
    %v2630 = vsel %vm1117, %v2627, 0
    %v2633 = vsel %vm1117, %v2628, 0
    %2635 = vmatprep.subr.mxu0 0.0
    %2636 = vmatpush1.msra.mxu0 0.0
    %2637 = vmatprep.subr.mxu0 0.0
    %2638 = vmatpush1.msra.mxu0 0.0
    %2639 = vmatprep.subr.mxu0 0.0
    %2640 = vmatpush1.msra.mxu0 0.0
    %2641 = vmatprep.subr.mxu0 0.0
    %2642 = vmatpush1.msra.mxu0 0.0
    %2643 = vmatprep.subr.mxu0 0.0
    %2644 = vmatpush1.msra.mxu0 0.0
    %2645 = vmatprep.subr.mxu0 0.0
    %2646 = vmatpush1.msra.mxu0 0.0
    %2647 = vmatprep.subr.mxu0 0.0
    %2648 = vmatpush1.msra.mxu0 0.0
    %2649 = vmatprep.subr.mxu0 0.0
    %2650 = vmatpush1.msra.mxu0 0.0
    %2651 = vmatprep.subr.mxu0 0.0
    %2652 = vmatpush1.msra.mxu0 0.0
    %2653 = vmatprep.subr.mxu0 0.0
    %2654 = vmatpush1.msra.mxu0 0.0
    %2655 = vmatprep.subr.mxu0 0.0
    %2656 = vmatpush1.msra.mxu0 0.0
    %2657 = vmatprep.subr.mxu0 0.0
    %2658 = vmatpush1.msra.mxu0 0.0
    %2659 = vmatprep.subr.mxu0 0.0
    %2660 = vmatpush1.msra.mxu0 %v1126
    %2661 = vmatprep.subr.mxu0 0.0
    %2662 = vmatpush1.msra.mxu0 %v1108
    %2663 = vmatprep.subr.mxu0 0.0
    %2664 = vmatpush1.msra.mxu0 %v1107
    %2665 = vmatprep.subr.mxu0 0.0
    %2666 = vmatpush1.msra.mxu0 %v1106
    %2667 = vmatprep.subr.mxu0 0.0
    %2668 = vmatpush2.msra.mxu0 0.0
    %2669 = vmatprep.subr.mxu0 0.0
    %2670 = vmatpush2.msra.mxu0 0.0
    %2671 = vmatprep.subr.mxu0 0.0
    %2672 = vmatpush2.msra.mxu0 0.0
    %2673 = vmatprep.subr.mxu0 0.0
    %2674 = vmatpush2.msra.mxu0 0.0
    %2675 = vmatprep.subr.mxu0 0.0
    %2676 = vmatpush2.msra.mxu0 0.0
    %2677 = vmatprep.subr.mxu0 0.0
    %2678 = vmatpush2.msra.mxu0 0.0
    %2679 = vmatprep.subr.mxu0 0.0
    %2680 = vmatpush2.msra.mxu0 0.0
    %2681 = vmatprep.subr.mxu0 0.0
    %2682 = vmatpush2.msra.mxu0 0.0
    %2683 = vmatprep.subr.mxu0 0.0
    %2684 = vmatpush2.msra.mxu0 0.0
    %2685 = vmatprep.subr.mxu0 0.0
    %2686 = vmatpush2.msra.mxu0 0.0
    %2687 = vmatprep.subr.mxu0 0.0
    %2688 = vmatpush2.msra.mxu0 0.0
    %2689 = vmatprep.subr.mxu0 0.0
    %2690 = vmatpush2.msra.mxu0 0.0
    %2691 = vmatprep.subr.mxu0 0.0
    %2692 = vmatpush2.msra.mxu0 0.0
    %2693 = vmatprep.subr.mxu0 0.0
    %2694 = vmatpush2.msra.mxu0 0.0
    %2695 = vmatprep.subr.mxu0 0.0
    %2696 = vmatpush2.msra.mxu0 0.0
    %2697 = vmatprep.subr.mxu0 0.0
    %2698 = vmatpush2.msra.mxu0 0.0
    %2699 = vmatprep.mubr.f32.mxu0 0.0
    %2700 = vmatmul.mubr.f32.gmra.mxu0 %v2630
    %v2701 = vpop.f32.mrf.mxu0
    %v2702 = vadd.f32 %v1115, %v2701
    %v2703 = vpop.f32.mrf.mxu0
    %2704 = vmatprep.mubr.f32.mxu0 0.0
    %2705 = vmatmul.mubr.f32.gmra.mxu0 %v2633
    %v2706 = vpop.f32.mrf.mxu0
    %v2707 = vadd.f32 %v1115, %v2706
    %v2708 = vpop.f32.mrf.mxu0
    %2709 = vdwg.mxu0
    %v2710 = vmax.f32 %v2702, 0.0
    %v2711 = vmax.f32 %v2707, 0.0
    %2712 = vmatprep.subr.mxu0 0.0
    %2713 = vmatpush1.msra.mxu0 0.0
    %2714 = vmatprep.subr.mxu0 0.0
    %2715 = vmatpush1.msra.mxu0 0.0
    %2716 = vmatprep.subr.mxu0 0.0
    %2717 = vmatpush1.msra.mxu0 0.0
    %2718 = vmatprep.subr.mxu0 0.0
    %2719 = vmatpush1.msra.mxu0 0.0
    %2720 = vmatprep.subr.mxu0 0.0
    %2721 = vmatpush1.msra.mxu0 0.0
    %2722 = vmatprep.subr.mxu0 0.0
    %2723 = vmatpush1.msra.mxu0 0.0
    %2724 = vmatprep.subr.mxu0 0.0
    %2725 = vmatpush1.msra.mxu0 0.0
    %2726 = vmatprep.subr.mxu0 0.0
    %2727 = vmatpush1.msra.mxu0 0.0
    %2728 = vmatprep.subr.mxu0 0.0
    %2729 = vmatpush1.msra.mxu0 0.0
    %2730 = vmatprep.subr.mxu0 0.0
    %2731 = vmatpush1.msra.mxu0 0.0
    %2732 = vmatprep.subr.mxu0 0.0
    %2733 = vmatpush1.msra.mxu0 0.0
    %2734 = vmatprep.subr.mxu0 0.0
    %2735 = vmatpush1.msra.mxu0 0.0
    %2736 = vmatprep.subr.mxu0 0.0
    %2737 = vmatpush1.msra.mxu0 %v1211
    %2738 = vmatprep.subr.mxu0 0.0
    %2739 = vmatpush1.msra.mxu0 %v1208
    %2740 = vmatprep.subr.mxu0 0.0
    %2741 = vmatpush1.msra.mxu0 %v1207
    %2742 = vmatprep.subr.mxu0 0.0
    %2743 = vmatpush1.msra.mxu0 %v1206
    %2744 = vmatprep.subr.mxu0 0.0
    %2745 = vmatpush2.msra.mxu0 0.0
    %2746 = vmatprep.subr.mxu0 0.0
    %2747 = vmatpush2.msra.mxu0 0.0
    %2748 = vmatprep.subr.mxu0 0.0
    %2749 = vmatpush2.msra.mxu0 0.0
    %2750 = vmatprep.subr.mxu0 0.0
    %2751 = vmatpush2.msra.mxu0 0.0
    %2752 = vmatprep.subr.mxu0 0.0
    %2753 = vmatpush2.msra.mxu0 0.0
    %2754 = vmatprep.subr.mxu0 0.0
    %2755 = vmatpush2.msra.mxu0 0.0
    %2756 = vmatprep.subr.mxu0 0.0
    %2757 = vmatpush2.msra.mxu0 0.0
    %2758 = vmatprep.subr.mxu0 0.0
    %2759 = vmatpush2.msra.mxu0 0.0
    %2760 = vmatprep.subr.mxu0 0.0
    %2761 = vmatpush2.msra.mxu0 0.0
    %2762 = vmatprep.subr.mxu0 0.0
    %2763 = vmatpush2.msra.mxu0 0.0
    %2764 = vmatprep.subr.mxu0 0.0
    %2765 = vmatpush2.msra.mxu0 0.0
    %2766 = vmatprep.subr.mxu0 0.0
    %2767 = vmatpush2.msra.mxu0 0.0
    %2768 = vmatprep.subr.mxu0 0.0
    %2769 = vmatpush2.msra.mxu0 0.0
    %2770 = vmatprep.subr.mxu0 0.0
    %2771 = vmatpush2.msra.mxu0 0.0
    %2772 = vmatprep.subr.mxu0 0.0
    %2773 = vmatpush2.msra.mxu0 0.0
    %2774 = vmatprep.subr.mxu0 0.0
    %2775 = vmatpush2.msra.mxu0 0.0
    %2776 = vmatprep.mubr.f32.mxu0 0.0
    %2777 = vmatmul.mubr.f32.gmra.mxu0 %v2630
    %v2778 = vpop.f32.mrf.mxu0
    %v2779 = vadd.f32 %v1115, %v2778
    %v2780 = vpop.f32.mrf.mxu0
    %2781 = vmatprep.mubr.f32.mxu0 0.0
    %2782 = vmatmul.mubr.f32.gmra.mxu0 %v2633
    %v2783 = vpop.f32.mrf.mxu0
    %v2784 = vadd.f32 %v1115, %v2783
    %v2785 = vpop.f32.mrf.mxu0
    %2786 = vdwg.mxu0
    %v2787 = vmax.f32 %v2779, 0.0
    %v2788 = vmax.f32 %v2784, 0.0
    %v2789 = vmax.f32 %v2710, %v2787
    %v2790 = vmax.f32 %v2711, %v2788
    %2791 = vmatprep.subr.mxu0 0.0
    %2792 = vmatpush1.msra.mxu0 0.0
    %2793 = vmatprep.subr.mxu0 0.0
    %2794 = vmatpush1.msra.mxu0 0.0
    %2795 = vmatprep.subr.mxu0 0.0
    %2796 = vmatpush1.msra.mxu0 0.0
    %2797 = vmatprep.subr.mxu0 0.0
    %2798 = vmatpush1.msra.mxu0 0.0
    %2799 = vmatprep.subr.mxu0 0.0
    %2800 = vmatpush1.msra.mxu0 0.0
    %2801 = vmatprep.subr.mxu0 0.0
    %2802 = vmatpush1.msra.mxu0 0.0
    %2803 = vmatprep.subr.mxu0 0.0
    %2804 = vmatpush1.msra.mxu0 0.0
    %2805 = vmatprep.subr.mxu0 0.0
    %2806 = vmatpush1.msra.mxu0 0.0
    %2807 = vmatprep.subr.mxu0 0.0
    %2808 = vmatpush1.msra.mxu0 0.0
    %2809 = vmatprep.subr.mxu0 0.0
    %2810 = vmatpush1.msra.mxu0 0.0
    %2811 = vmatprep.subr.mxu0 0.0
    %2812 = vmatpush1.msra.mxu0 0.0
    %2813 = vmatprep.subr.mxu0 0.0
    %2814 = vmatpush1.msra.mxu0 0.0
    %2815 = vmatprep.subr.mxu0 0.0
    %2816 = vmatpush1.msra.mxu0 %v1298
    %2817 = vmatprep.subr.mxu0 0.0
    %2818 = vmatpush1.msra.mxu0 %v1295
    %2819 = vmatprep.subr.mxu0 0.0
    %2820 = vmatpush1.msra.mxu0 %v1294
    %2821 = vmatprep.subr.mxu0 0.0
    %2822 = vmatpush1.msra.mxu0 %v1293
    %2823 = vmatprep.subr.mxu0 0.0
    %2824 = vmatpush2.msra.mxu0 0.0
    %2825 = vmatprep.subr.mxu0 0.0
    %2826 = vmatpush2.msra.mxu0 0.0
    %2827 = vmatprep.subr.mxu0 0.0
    %2828 = vmatpush2.msra.mxu0 0.0
    %2829 = vmatprep.subr.mxu0 0.0
    %2830 = vmatpush2.msra.mxu0 0.0
    %2831 = vmatprep.subr.mxu0 0.0
    %2832 = vmatpush2.msra.mxu0 0.0
    %2833 = vmatprep.subr.mxu0 0.0
    %2834 = vmatpush2.msra.mxu0 0.0
    %2835 = vmatprep.subr.mxu0 0.0
    %2836 = vmatpush2.msra.mxu0 0.0
    %2837 = vmatprep.subr.mxu0 0.0
    %2838 = vmatpush2.msra.mxu0 0.0
    %2839 = vmatprep.subr.mxu0 0.0
    %2840 = vmatpush2.msra.mxu0 0.0
    %2841 = vmatprep.subr.mxu0 0.0
    %2842 = vmatpush2.msra.mxu0 0.0
    %2843 = vmatprep.subr.mxu0 0.0
    %2844 = vmatpush2.msra.mxu0 0.0
    %2845 = vmatprep.subr.mxu0 0.0
    %2846 = vmatpush2.msra.mxu0 0.0
    %2847 = vmatprep.subr.mxu0 0.0
    %2848 = vmatpush2.msra.mxu0 0.0
    %2849 = vmatprep.subr.mxu0 0.0
    %2850 = vmatpush2.msra.mxu0 0.0
    %2851 = vmatprep.subr.mxu0 0.0
    %2852 = vmatpush2.msra.mxu0 0.0
    %2853 = vmatprep.subr.mxu0 0.0
    %2854 = vmatpush2.msra.mxu0 0.0
    %2855 = vmatprep.mubr.f32.mxu0 0.0
    %2856 = vmatmul.mubr.f32.gmra.mxu0 %v2630
    %v2857 = vpop.f32.mrf.mxu0
    %v2858 = vadd.f32 %v1115, %v2857
    %v2859 = vpop.f32.mrf.mxu0
    %2860 = vmatprep.mubr.f32.mxu0 0.0
    %2861 = vmatmul.mubr.f32.gmra.mxu0 %v2633
    %v2862 = vpop.f32.mrf.mxu0
    %v2863 = vadd.f32 %v1115, %v2862
    %v2864 = vpop.f32.mrf.mxu0
    %2865 = vdwg.mxu0
    %v2866 = vmax.f32 %v2858, 0.0
    %v2867 = vmax.f32 %v2863, 0.0
    %v2868 = vmax.f32 %v2789, %v2866
    %v2869 = vmax.f32 %v2790, %v2867
    %2870 = vmatprep.subr.mxu0 0.0
    %2871 = vmatpush1.msra.mxu0 0.0
    %2872 = vmatprep.subr.mxu0 0.0
    %2873 = vmatpush1.msra.mxu0 0.0
    %2874 = vmatprep.subr.mxu0 0.0
    %2875 = vmatpush1.msra.mxu0 0.0
    %2876 = vmatprep.subr.mxu0 0.0
    %2877 = vmatpush1.msra.mxu0 0.0
    %2878 = vmatprep.subr.mxu0 0.0
    %2879 = vmatpush1.msra.mxu0 0.0
    %2880 = vmatprep.subr.mxu0 0.0
    %2881 = vmatpush1.msra.mxu0 0.0
    %2882 = vmatprep.subr.mxu0 0.0
    %2883 = vmatpush1.msra.mxu0 0.0
    %2884 = vmatprep.subr.mxu0 0.0
    %2885 = vmatpush1.msra.mxu0 0.0
    %2886 = vmatprep.subr.mxu0 0.0
    %2887 = vmatpush1.msra.mxu0 0.0
    %2888 = vmatprep.subr.mxu0 0.0
    %2889 = vmatpush1.msra.mxu0 0.0
    %2890 = vmatprep.subr.mxu0 0.0
    %2891 = vmatpush1.msra.mxu0 0.0
    %2892 = vmatprep.subr.mxu0 0.0
    %2893 = vmatpush1.msra.mxu0 0.0
    %2894 = vmatprep.subr.mxu0 0.0
    %2895 = vmatpush1.msra.mxu0 %v1385
    %2896 = vmatprep.subr.mxu0 0.0
    %2897 = vmatpush1.msra.mxu0 %v1382
    %2898 = vmatprep.subr.mxu0 0.0
    %2899 = vmatpush1.msra.mxu0 %v1381
    %2900 = vmatprep.subr.mxu0 0.0
    %2901 = vmatpush1.msra.mxu0 %v1380
    %2902 = vmatprep.subr.mxu0 0.0
    %2903 = vmatpush2.msra.mxu0 0.0
    %2904 = vmatprep.subr.mxu0 0.0
    %2905 = vmatpush2.msra.mxu0 0.0
    %2906 = vmatprep.subr.mxu0 0.0
    %2907 = vmatpush2.msra.mxu0 0.0
    %2908 = vmatprep.subr.mxu0 0.0
    %2909 = vmatpush2.msra.mxu0 0.0
    %2910 = vmatprep.subr.mxu0 0.0
    %2911 = vmatpush2.msra.mxu0 0.0
    %2912 = vmatprep.subr.mxu0 0.0
    %2913 = vmatpush2.msra.mxu0 0.0
    %2914 = vmatprep.subr.mxu0 0.0
    %2915 = vmatpush2.msra.mxu0 0.0
    %2916 = vmatprep.subr.mxu0 0.0
    %2917 = vmatpush2.msra.mxu0 0.0
    %2918 = vmatprep.subr.mxu0 0.0
    %2919 = vmatpush2.msra.mxu0 0.0
    %2920 = vmatprep.subr.mxu0 0.0
    %2921 = vmatpush2.msra.mxu0 0.0
    %2922 = vmatprep.subr.mxu0 0.0
    %2923 = vmatpush2.msra.mxu0 0.0
    %2924 = vmatprep.subr.mxu0 0.0
    %2925 = vmatpush2.msra.mxu0 0.0
    %2926 = vmatprep.subr.mxu0 0.0
    %2927 = vmatpush2.msra.mxu0 0.0
    %2928 = vmatprep.subr.mxu0 0.0
    %2929 = vmatpush2.msra.mxu0 0.0
    %2930 = vmatprep.subr.mxu0 0.0
    %2931 = vmatpush2.msra.mxu0 0.0
    %2932 = vmatprep.subr.mxu0 0.0
    %2933 = vmatpush2.msra.mxu0 0.0
    %2934 = vmatprep.mubr.f32.mxu0 0.0
    %2935 = vmatmul.mubr.f32.gmra.mxu0 %v2630
    %v2936 = vpop.f32.mrf.mxu0
    %v2937 = vadd.f32 %v1115, %v2936
    %v2938 = vpop.f32.mrf.mxu0
    %2939 = vmatprep.mubr.f32.mxu0 0.0
    %2940 = vmatmul.mubr.f32.gmra.mxu0 %v2633
    %v2941 = vpop.f32.mrf.mxu0
    %v2942 = vadd.f32 %v1115, %v2941
    %v2943 = vpop.f32.mrf.mxu0
    %2944 = vdwg.mxu0
    %v2945 = vmax.f32 %v2937, 0.0
    %v2946 = vmax.f32 %v2942, 0.0
    %v2947 = vmax.f32 %v2868, %v2945
    %v2948 = vmax.f32 %v2869, %v2946
    %v2950 = vsel %vm1477, %v2947, 0
    %v2953 = vsel %vm1477, %v2948, 0
    %2955 = vmatprep.subr.mxu0 0.0
    %2956 = vmatpush1.msra.mxu0 0.0
    %2957 = vmatprep.subr.mxu0 0.0
    %2958 = vmatpush1.msra.mxu0 0.0
    %2959 = vmatprep.subr.mxu0 0.0
    %2960 = vmatpush1.msra.mxu0 0.0
    %2961 = vmatprep.subr.mxu0 0.0
    %2962 = vmatpush1.msra.mxu0 0.0
    %2963 = vmatprep.subr.mxu0 0.0
    %2964 = vmatpush1.msra.mxu0 0.0
    %2965 = vmatprep.subr.mxu0 0.0
    %2966 = vmatpush1.msra.mxu0 0.0
    %2967 = vmatprep.subr.mxu0 0.0
    %2968 = vmatpush1.msra.mxu0 0.0
    %2969 = vmatprep.subr.mxu0 0.0
    %2970 = vmatpush1.msra.mxu0 0.0
    %2971 = vmatprep.subr.mxu0 0.0
    %2972 = vmatpush1.msra.mxu0 0.0
    %2973 = vmatprep.subr.mxu0 0.0
    %2974 = vmatpush1.msra.mxu0 0.0
    %2975 = vmatprep.subr.mxu0 0.0
    %2976 = vmatpush1.msra.mxu0 0.0
    %2977 = vmatprep.subr.mxu0 0.0
    %2978 = vmatpush1.msra.mxu0 0.0
    %2979 = vmatprep.subr.mxu0 0.0
    %2980 = vmatpush1.msra.mxu0 %v1469
    %2981 = vmatprep.subr.mxu0 0.0
    %2982 = vmatpush1.msra.mxu0 %v1468
    %2983 = vmatprep.subr.mxu0 0.0
    %2984 = vmatpush1.msra.mxu0 %v1467
    %2985 = vmatprep.subr.mxu0 0.0
    %2986 = vmatpush1.msra.mxu0 %v1466
    %2987 = vmatprep.subr.mxu0 0.0
    %2988 = vmatpush2.msra.mxu0 0.0
    %2989 = vmatprep.subr.mxu0 0.0
    %2990 = vmatpush2.msra.mxu0 0.0
    %2991 = vmatprep.subr.mxu0 0.0
    %2992 = vmatpush2.msra.mxu0 0.0
    %2993 = vmatprep.subr.mxu0 0.0
    %2994 = vmatpush2.msra.mxu0 0.0
    %2995 = vmatprep.subr.mxu0 0.0
    %2996 = vmatpush2.msra.mxu0 0.0
    %2997 = vmatprep.subr.mxu0 0.0
    %2998 = vmatpush2.msra.mxu0 0.0
    %2999 = vmatprep.subr.mxu0 0.0
    %3000 = vmatpush2.msra.mxu0 0.0
    %3001 = vmatprep.subr.mxu0 0.0
    %3002 = vmatpush2.msra.mxu0 0.0
    %3003 = vmatprep.subr.mxu0 0.0
    %3004 = vmatpush2.msra.mxu0 0.0
    %3005 = vmatprep.subr.mxu0 0.0
    %3006 = vmatpush2.msra.mxu0 0.0
    %3007 = vmatprep.subr.mxu0 0.0
    %3008 = vmatpush2.msra.mxu0 0.0
    %3009 = vmatprep.subr.mxu0 0.0
    %3010 = vmatpush2.msra.mxu0 0.0
    %3011 = vmatprep.subr.mxu0 0.0
    %3012 = vmatpush2.msra.mxu0 0.0
    %3013 = vmatprep.subr.mxu0 0.0
    %3014 = vmatpush2.msra.mxu0 0.0
    %3015 = vmatprep.subr.mxu0 0.0
    %3016 = vmatpush2.msra.mxu0 0.0
    %3017 = vmatprep.subr.mxu0 0.0
    %3018 = vmatpush2.msra.mxu0 0.0
    %3019 = vmatprep.mubr.f32.mxu0 0.0
    %3020 = vmatmul.mubr.f32.gmra.mxu0 %v2950
    %v3021 = vpop.f32.mrf.mxu0
    %v3022 = vadd.f32 %v1475, %v3021
    %v3023 = vpop.f32.mrf.mxu0
    %3024 = vmatprep.mubr.f32.mxu0 0.0
    %3025 = vmatmul.mubr.f32.gmra.mxu0 %v2953
    %v3026 = vpop.f32.mrf.mxu0
    %v3027 = vadd.f32 %v1475, %v3026
    %v3028 = vpop.f32.mrf.mxu0
    %3029 = vdwg.mxu0
    %v3030 = vmax.f32 %v3022, 0.0
    %v3031 = vmax.f32 %v3027, 0.0
    %3032 = vmatprep.subr.mxu0 0.0
    %3033 = vmatpush1.msra.mxu0 0.0
    %3034 = vmatprep.subr.mxu0 0.0
    %3035 = vmatpush1.msra.mxu0 0.0
    %3036 = vmatprep.subr.mxu0 0.0
    %3037 = vmatpush1.msra.mxu0 0.0
    %3038 = vmatprep.subr.mxu0 0.0
    %3039 = vmatpush1.msra.mxu0 0.0
    %3040 = vmatprep.subr.mxu0 0.0
    %3041 = vmatpush1.msra.mxu0 0.0
    %3042 = vmatprep.subr.mxu0 0.0
    %3043 = vmatpush1.msra.mxu0 0.0
    %3044 = vmatprep.subr.mxu0 0.0
    %3045 = vmatpush1.msra.mxu0 0.0
    %3046 = vmatprep.subr.mxu0 0.0
    %3047 = vmatpush1.msra.mxu0 0.0
    %3048 = vmatprep.subr.mxu0 0.0
    %3049 = vmatpush1.msra.mxu0 0.0
    %3050 = vmatprep.subr.mxu0 0.0
    %3051 = vmatpush1.msra.mxu0 0.0
    %3052 = vmatprep.subr.mxu0 0.0
    %3053 = vmatpush1.msra.mxu0 0.0
    %3054 = vmatprep.subr.mxu0 0.0
    %3055 = vmatpush1.msra.mxu0 0.0
    %3056 = vmatprep.subr.mxu0 0.0
    %3057 = vmatpush1.msra.mxu0 %v1565
    %3058 = vmatprep.subr.mxu0 0.0
    %3059 = vmatpush1.msra.mxu0 %v1564
    %3060 = vmatprep.subr.mxu0 0.0
    %3061 = vmatpush1.msra.mxu0 %v1563
    %3062 = vmatprep.subr.mxu0 0.0
    %3063 = vmatpush1.msra.mxu0 %v1562
    %3064 = vmatprep.subr.mxu0 0.0
    %3065 = vmatpush2.msra.mxu0 0.0
    %3066 = vmatprep.subr.mxu0 0.0
    %3067 = vmatpush2.msra.mxu0 0.0
    %3068 = vmatprep.subr.mxu0 0.0
    %3069 = vmatpush2.msra.mxu0 0.0
    %3070 = vmatprep.subr.mxu0 0.0
    %3071 = vmatpush2.msra.mxu0 0.0
    %3072 = vmatprep.subr.mxu0 0.0
    %3073 = vmatpush2.msra.mxu0 0.0
    %3074 = vmatprep.subr.mxu0 0.0
    %3075 = vmatpush2.msra.mxu0 0.0
    %3076 = vmatprep.subr.mxu0 0.0
    %3077 = vmatpush2.msra.mxu0 0.0
    %3078 = vmatprep.subr.mxu0 0.0
    %3079 = vmatpush2.msra.mxu0 0.0
    %3080 = vmatprep.subr.mxu0 0.0
    %3081 = vmatpush2.msra.mxu0 0.0
    %3082 = vmatprep.subr.mxu0 0.0
    %3083 = vmatpush2.msra.mxu0 0.0
    %3084 = vmatprep.subr.mxu0 0.0
    %3085 = vmatpush2.msra.mxu0 0.0
    %3086 = vmatprep.subr.mxu0 0.0
    %3087 = vmatpush2.msra.mxu0 0.0
    %3088 = vmatprep.subr.mxu0 0.0
    %3089 = vmatpush2.msra.mxu0 0.0
    %3090 = vmatprep.subr.mxu0 0.0
    %3091 = vmatpush2.msra.mxu0 0.0
    %3092 = vmatprep.subr.mxu0 0.0
    %3093 = vmatpush2.msra.mxu0 0.0
    %3094 = vmatprep.subr.mxu0 0.0
    %3095 = vmatpush2.msra.mxu0 0.0
    %3096 = vmatprep.mubr.f32.mxu0 0.0
    %3097 = vmatmul.mubr.f32.gmra.mxu0 %v2950
    %v3098 = vpop.f32.mrf.mxu0
    %v3099 = vadd.f32 %v1475, %v3098
    %v3100 = vpop.f32.mrf.mxu0
    %3101 = vmatprep.mubr.f32.mxu0 0.0
    %3102 = vmatmul.mubr.f32.gmra.mxu0 %v2953
    %v3103 = vpop.f32.mrf.mxu0
    %v3104 = vadd.f32 %v1475, %v3103
    %v3105 = vpop.f32.mrf.mxu0
    %3106 = vdwg.mxu0
    %v3107 = vmax.f32 %v3099, 0.0
    %v3108 = vmax.f32 %v3104, 0.0
    %v3109 = vmax.f32 %v3030, %v3107
    %v3110 = vmax.f32 %v3031, %v3108
    %3111 = vmatprep.subr.mxu0 0.0
    %3112 = vmatpush1.msra.mxu0 0.0
    %3113 = vmatprep.subr.mxu0 0.0
    %3114 = vmatpush1.msra.mxu0 0.0
    %3115 = vmatprep.subr.mxu0 0.0
    %3116 = vmatpush1.msra.mxu0 0.0
    %3117 = vmatprep.subr.mxu0 0.0
    %3118 = vmatpush1.msra.mxu0 0.0
    %3119 = vmatprep.subr.mxu0 0.0
    %3120 = vmatpush1.msra.mxu0 0.0
    %3121 = vmatprep.subr.mxu0 0.0
    %3122 = vmatpush1.msra.mxu0 0.0
    %3123 = vmatprep.subr.mxu0 0.0
    %3124 = vmatpush1.msra.mxu0 0.0
    %3125 = vmatprep.subr.mxu0 0.0
    %3126 = vmatpush1.msra.mxu0 0.0
    %3127 = vmatprep.subr.mxu0 0.0
    %3128 = vmatpush1.msra.mxu0 0.0
    %3129 = vmatprep.subr.mxu0 0.0
    %3130 = vmatpush1.msra.mxu0 0.0
    %3131 = vmatprep.subr.mxu0 0.0
    %3132 = vmatpush1.msra.mxu0 0.0
    %3133 = vmatprep.subr.mxu0 0.0
    %3134 = vmatpush1.msra.mxu0 0.0
    %3135 = vmatprep.subr.mxu0 0.0
    %3136 = vmatpush1.msra.mxu0 %v1649
    %3137 = vmatprep.subr.mxu0 0.0
    %3138 = vmatpush1.msra.mxu0 %v1648
    %3139 = vmatprep.subr.mxu0 0.0
    %3140 = vmatpush1.msra.mxu0 %v1647
    %3141 = vmatprep.subr.mxu0 0.0
    %3142 = vmatpush1.msra.mxu0 %v1646
    %3143 = vmatprep.subr.mxu0 0.0
    %3144 = vmatpush2.msra.mxu0 0.0
    %3145 = vmatprep.subr.mxu0 0.0
    %3146 = vmatpush2.msra.mxu0 0.0
    %3147 = vmatprep.subr.mxu0 0.0
    %3148 = vmatpush2.msra.mxu0 0.0
    %3149 = vmatprep.subr.mxu0 0.0
    %3150 = vmatpush2.msra.mxu0 0.0
    %3151 = vmatprep.subr.mxu0 0.0
    %3152 = vmatpush2.msra.mxu0 0.0
    %3153 = vmatprep.subr.mxu0 0.0
    %3154 = vmatpush2.msra.mxu0 0.0
    %3155 = vmatprep.subr.mxu0 0.0
    %3156 = vmatpush2.msra.mxu0 0.0
    %3157 = vmatprep.subr.mxu0 0.0
    %3158 = vmatpush2.msra.mxu0 0.0
    %3159 = vmatprep.subr.mxu0 0.0
    %3160 = vmatpush2.msra.mxu0 0.0
    %3161 = vmatprep.subr.mxu0 0.0
    %3162 = vmatpush2.msra.mxu0 0.0
    %3163 = vmatprep.subr.mxu0 0.0
    %3164 = vmatpush2.msra.mxu0 0.0
    %3165 = vmatprep.subr.mxu0 0.0
    %3166 = vmatpush2.msra.mxu0 0.0
    %3167 = vmatprep.subr.mxu0 0.0
    %3168 = vmatpush2.msra.mxu0 0.0
    %3169 = vmatprep.subr.mxu0 0.0
    %3170 = vmatpush2.msra.mxu0 0.0
    %3171 = vmatprep.subr.mxu0 0.0
    %3172 = vmatpush2.msra.mxu0 0.0
    %3173 = vmatprep.subr.mxu0 0.0
    %3174 = vmatpush2.msra.mxu0 0.0
    %3175 = vmatprep.mubr.f32.mxu0 0.0
    %3176 = vmatmul.mubr.f32.gmra.mxu0 %v2950
    %v3177 = vpop.f32.mrf.mxu0
    %v3178 = vadd.f32 %v1475, %v3177
    %v3179 = vpop.f32.mrf.mxu0
    %3180 = vmatprep.mubr.f32.mxu0 0.0
    %3181 = vmatmul.mubr.f32.gmra.mxu0 %v2953
    %v3182 = vpop.f32.mrf.mxu0
    %v3183 = vadd.f32 %v1475, %v3182
    %v3184 = vpop.f32.mrf.mxu0
    %3185 = vdwg.mxu0
    %v3186 = vmax.f32 %v3178, 0.0
    %v3187 = vmax.f32 %v3183, 0.0
    %v3188 = vmax.f32 %v3109, %v3186
    %v3189 = vmax.f32 %v3110, %v3187
    %3190 = vmatprep.subr.mxu0 0.0
    %3191 = vmatpush1.msra.mxu0 0.0
    %3192 = vmatprep.subr.mxu0 0.0
    %3193 = vmatpush1.msra.mxu0 0.0
    %3194 = vmatprep.subr.mxu0 0.0
    %3195 = vmatpush1.msra.mxu0 0.0
    %3196 = vmatprep.subr.mxu0 0.0
    %3197 = vmatpush1.msra.mxu0 0.0
    %3198 = vmatprep.subr.mxu0 0.0
    %3199 = vmatpush1.msra.mxu0 0.0
    %3200 = vmatprep.subr.mxu0 0.0
    %3201 = vmatpush1.msra.mxu0 0.0
    %3202 = vmatprep.subr.mxu0 0.0
    %3203 = vmatpush1.msra.mxu0 0.0
    %3204 = vmatprep.subr.mxu0 0.0
    %3205 = vmatpush1.msra.mxu0 0.0
    %3206 = vmatprep.subr.mxu0 0.0
    %3207 = vmatpush1.msra.mxu0 0.0
    %3208 = vmatprep.subr.mxu0 0.0
    %3209 = vmatpush1.msra.mxu0 0.0
    %3210 = vmatprep.subr.mxu0 0.0
    %3211 = vmatpush1.msra.mxu0 0.0
    %3212 = vmatprep.subr.mxu0 0.0
    %3213 = vmatpush1.msra.mxu0 0.0
    %3214 = vmatprep.subr.mxu0 0.0
    %3215 = vmatpush1.msra.mxu0 %v1733
    %3216 = vmatprep.subr.mxu0 0.0
    %3217 = vmatpush1.msra.mxu0 %v1732
    %3218 = vmatprep.subr.mxu0 0.0
    %3219 = vmatpush1.msra.mxu0 %v1731
    %3220 = vmatprep.subr.mxu0 0.0
    %3221 = vmatpush1.msra.mxu0 %v1730
    %3222 = vmatprep.subr.mxu0 0.0
    %3223 = vmatpush2.msra.mxu0 0.0
    %3224 = vmatprep.subr.mxu0 0.0
    %3225 = vmatpush2.msra.mxu0 0.0
    %3226 = vmatprep.subr.mxu0 0.0
    %3227 = vmatpush2.msra.mxu0 0.0
    %3228 = vmatprep.subr.mxu0 0.0
    %3229 = vmatpush2.msra.mxu0 0.0
    %3230 = vmatprep.subr.mxu0 0.0
    %3231 = vmatpush2.msra.mxu0 0.0
    %3232 = vmatprep.subr.mxu0 0.0
    %3233 = vmatpush2.msra.mxu0 0.0
    %3234 = vmatprep.subr.mxu0 0.0
    %3235 = vmatpush2.msra.mxu0 0.0
    %3236 = vmatprep.subr.mxu0 0.0
    %3237 = vmatpush2.msra.mxu0 0.0
    %3238 = vmatprep.subr.mxu0 0.0
    %3239 = vmatpush2.msra.mxu0 0.0
    %3240 = vmatprep.subr.mxu0 0.0
    %3241 = vmatpush2.msra.mxu0 0.0
    %3242 = vmatprep.subr.mxu0 0.0
    %3243 = vmatpush2.msra.mxu0 0.0
    %3244 = vmatprep.subr.mxu0 0.0
    %3245 = vmatpush2.msra.mxu0 0.0
    %3246 = vmatprep.subr.mxu0 0.0
    %3247 = vmatpush2.msra.mxu0 0.0
    %3248 = vmatprep.subr.mxu0 0.0
    %3249 = vmatpush2.msra.mxu0 0.0
    %3250 = vmatprep.subr.mxu0 0.0
    %3251 = vmatpush2.msra.mxu0 0.0
    %3252 = vmatprep.subr.mxu0 0.0
    %3253 = vmatpush2.msra.mxu0 0.0
    %3254 = vmatprep.mubr.f32.mxu0 0.0
    %3255 = vmatmul.mubr.f32.gmra.mxu0 %v2950
    %v3256 = vpop.f32.mrf.mxu0
    %v3257 = vadd.f32 %v1475, %v3256
    %v3258 = vpop.f32.mrf.mxu0
    %3259 = vmatprep.mubr.f32.mxu0 0.0
    %3260 = vmatmul.mubr.f32.gmra.mxu0 %v2953
    %v3261 = vpop.f32.mrf.mxu0
    %v3262 = vadd.f32 %v1475, %v3261
    %v3263 = vpop.f32.mrf.mxu0
    %3264 = vdwg.mxu0
    %v3265 = vmax.f32 %v3257, 0.0
    %v3266 = vmax.f32 %v3262, 0.0
    %v3267 = vmax.f32 %v3188, %v3265
    %v3268 = vmax.f32 %v3189, %v3266
    %v3270 = vsel %vm1822, %v3267, 0
    %v3273 = vsel %vm1822, %v3268, 0
    %3275 = vmatprep.subr.mxu0 0.0
    %3276 = vmatpush1.msra.mxu0 0.0
    %3277 = vmatprep.subr.mxu0 0.0
    %3278 = vmatpush1.msra.mxu0 0.0
    %3279 = vmatprep.subr.mxu0 0.0
    %3280 = vmatpush1.msra.mxu0 0.0
    %3281 = vmatprep.subr.mxu0 0.0
    %3282 = vmatpush1.msra.mxu0 0.0
    %3283 = vmatprep.subr.mxu0 0.0
    %3284 = vmatpush1.msra.mxu0 0.0
    %3285 = vmatprep.subr.mxu0 0.0
    %3286 = vmatpush1.msra.mxu0 0.0
    %3287 = vmatprep.subr.mxu0 0.0
    %3288 = vmatpush1.msra.mxu0 0.0
    %3289 = vmatprep.subr.mxu0 0.0
    %3290 = vmatpush1.msra.mxu0 0.0
    %3291 = vmatprep.subr.mxu0 0.0
    %3292 = vmatpush1.msra.mxu0 0.0
    %3293 = vmatprep.subr.mxu0 0.0
    %3294 = vmatpush1.msra.mxu0 0.0
    %3295 = vmatprep.subr.mxu0 0.0
    %3296 = vmatpush1.msra.mxu0 0.0
    %3297 = vmatprep.subr.mxu0 0.0
    %3298 = vmatpush1.msra.mxu0 0.0
    %3299 = vmatprep.subr.mxu0 0.0
    %3300 = vmatpush1.msra.mxu0 0.0
    %3301 = vmatprep.subr.mxu0 0.0
    %3302 = vmatpush1.msra.mxu0 0.0
    %3303 = vmatprep.subr.mxu0 0.0
    %3304 = vmatpush1.msra.mxu0 %v1814
    %3305 = vmatprep.subr.mxu0 0.0
    %3306 = vmatpush1.msra.mxu0 %v1813
    %3307 = vmatprep.subr.mxu0 0.0
    %3308 = vmatpush2.msra.mxu0 0.0
    %3309 = vmatprep.subr.mxu0 0.0
    %3310 = vmatpush2.msra.mxu0 0.0
    %3311 = vmatprep.subr.mxu0 0.0
    %3312 = vmatpush2.msra.mxu0 0.0
    %3313 = vmatprep.subr.mxu0 0.0
    %3314 = vmatpush2.msra.mxu0 0.0
    %3315 = vmatprep.subr.mxu0 0.0
    %3316 = vmatpush2.msra.mxu0 0.0
    %3317 = vmatprep.subr.mxu0 0.0
    %3318 = vmatpush2.msra.mxu0 0.0
    %3319 = vmatprep.subr.mxu0 0.0
    %3320 = vmatpush2.msra.mxu0 0.0
    %3321 = vmatprep.subr.mxu0 0.0
    %3322 = vmatpush2.msra.mxu0 0.0
    %3323 = vmatprep.subr.mxu0 0.0
    %3324 = vmatpush2.msra.mxu0 0.0
    %3325 = vmatprep.subr.mxu0 0.0
    %3326 = vmatpush2.msra.mxu0 0.0
    %3327 = vmatprep.subr.mxu0 0.0
    %3328 = vmatpush2.msra.mxu0 0.0
    %3329 = vmatprep.subr.mxu0 0.0
    %3330 = vmatpush2.msra.mxu0 0.0
    %3331 = vmatprep.subr.mxu0 0.0
    %3332 = vmatpush2.msra.mxu0 0.0
    %3333 = vmatprep.subr.mxu0 0.0
    %3334 = vmatpush2.msra.mxu0 0.0
    %3335 = vmatprep.subr.mxu0 0.0
    %3336 = vmatpush2.msra.mxu0 0.0
    %3337 = vmatprep.subr.mxu0 0.0
    %3338 = vmatpush2.msra.mxu0 0.0
    %3339 = vmatprep.mubr.f32.mxu0 0.0
    %3340 = vmatmul.mubr.f32.gmra.mxu0 %v3270
    %v3341 = vpop.f32.mrf.mxu0
    %v3342 = vadd.f32 %v1820, %v3341
    %v3343 = vpop.f32.mrf.mxu0
    %3344 = vmatprep.mubr.f32.mxu0 0.0
    %3345 = vmatmul.mubr.f32.gmra.mxu0 %v3273
    %v3346 = vpop.f32.mrf.mxu0
    %v3347 = vadd.f32 %v1820, %v3346
    %v3348 = vpop.f32.mrf.mxu0
    %3349 = vdwg.mxu0
    %v3350 = vld [vmem:[%s16] sm:$0xff]
    %v3351 = vld [vmem:[%s16 + $0x8] sm:$0xff]
    %v3352 = vld [vmem:[%s16 + $0x10] sm:$0xff]
    %v3353 = vld [vmem:[%s16 + $0x18] sm:$0xff]
    %v3354 = vld [vmem:[%s16 + $0x20] sm:$0xff]
    %v3355 = vld [vmem:[%s16 + $0x28] sm:$0xff]
    %v3356 = vld [vmem:[%s16 + $0x30] sm:$0xff]
    %v3357 = vld [vmem:[%s16 + $0x38] sm:$0xff]
    %v3358 = vld [vmem:[%s16 + $0x40] sm:$0xff]
    %v3359 = vld [vmem:[%s16 + $0x48] sm:$0xff]
    %v3360 = vld [vmem:[%s16 + $0x50] sm:$0xff]
    %v3361 = vld [vmem:[%s16 + $0x58] sm:$0xff]
    %v3362 = vld [vmem:[%s16 + $0x60] sm:$0xff]
    %v3363 = vld [vmem:[%s16 + $0x68] sm:$0xff]
    %v3364 = vld [vmem:[%s16 + $0x70] sm:$0xff]
    %v3365 = vld [vmem:[%s16 + $0x78] sm:$0xff]
    %v3366 = vld [vmem:[%s16 + $0x80] sm:$0xff]
    %v3367 = vld [vmem:[%s16 + $0x88] sm:$0xff]
    %v3368 = vld [vmem:[%s16 + $0x90] sm:$0xff]
    %v3369 = vld [vmem:[%s16 + $0x98] sm:$0xff]
    %v3370 = vld [vmem:[%s17] sm:$0xff]
    %v3371 = vld [vmem:[%s17 + $0x8] sm:$0xff]
    %v3372 = vld [vmem:[%s17 + $0x10] sm:$0xff]
    %v3373 = vld [vmem:[%s17 + $0x18] sm:$0xff]
    %v3375 = vsel %vm1822, %v1896, 0
    %v3378 = vsel %vm1822, %v1901, 0
    %3380 = vmatprep.subr.mxu0 0.0
    %3381 = vmatpush1.msra.mxu0 0.0
    %3382 = vmatprep.subr.mxu0 0.0
    %3383 = vmatpush1.msra.mxu0 0.0
    %3384 = vmatprep.subr.mxu0 0.0
    %3385 = vmatpush1.msra.mxu0 0.0
    %3386 = vmatprep.subr.mxu0 0.0
    %3387 = vmatpush1.msra.mxu0 0.0
    %3388 = vmatprep.subr.mxu0 0.0
    %3389 = vmatpush1.msra.mxu0 0.0
    %3390 = vmatprep.subr.mxu0 0.0
    %3391 = vmatpush1.msra.mxu0 0.0
    %3392 = vmatprep.subr.mxu0 0.0
    %3393 = vmatpush1.msra.mxu0 0.0
    %3394 = vmatprep.subr.mxu0 0.0
    %3395 = vmatpush1.msra.mxu0 0.0
    %3396 = vmatprep.subr.mxu0 0.0
    %3397 = vmatpush1.msra.mxu0 0.0
    %3398 = vmatprep.subr.mxu0 0.0
    %3399 = vmatpush1.msra.mxu0 0.0
    %3400 = vmatprep.subr.mxu0 0.0
    %3401 = vmatpush1.msra.mxu0 0.0
    %3402 = vmatprep.subr.mxu0 0.0
    %3403 = vmatpush1.msra.mxu0 0.0
    %3404 = vmatprep.subr.mxu0 0.0
    %3405 = vmatpush1.msra.mxu0 0.0
    %3406 = vmatprep.subr.mxu0 0.0
    %3407 = vmatpush1.msra.mxu0 0.0
    %3408 = vmatprep.subr.mxu0 %v3373
    %3409 = vmatpush1.msra.mxu0 %v3372
    %3410 = vmatprep.subr.mxu0 %v3371
    %3411 = vmatpush1.msra.mxu0 %v3370
    %3412 = vmatprep.subr.mxu0 0.0
    %3413 = vmatpush2.msra.mxu0 0.0
    %3414 = vmatprep.subr.mxu0 0.0
    %3415 = vmatpush2.msra.mxu0 0.0
    %3416 = vmatprep.subr.mxu0 0.0
    %3417 = vmatpush2.msra.mxu0 0.0
    %3418 = vmatprep.subr.mxu0 0.0
    %3419 = vmatpush2.msra.mxu0 0.0
    %3420 = vmatprep.subr.mxu0 0.0
    %3421 = vmatpush2.msra.mxu0 0.0
    %3422 = vmatprep.subr.mxu0 0.0
    %3423 = vmatpush2.msra.mxu0 0.0
    %3424 = vmatprep.subr.mxu0 0.0
    %3425 = vmatpush2.msra.mxu0 0.0
    %3426 = vmatprep.subr.mxu0 0.0
    %3427 = vmatpush2.msra.mxu0 0.0
    %3428 = vmatprep.subr.mxu0 0.0
    %3429 = vmatpush2.msra.mxu0 0.0
    %3430 = vmatprep.subr.mxu0 0.0
    %3431 = vmatpush2.msra.mxu0 0.0
    %3432 = vmatprep.subr.mxu0 0.0
    %3433 = vmatpush2.msra.mxu0 0.0
    %3434 = vmatprep.subr.mxu0 0.0
    %3435 = vmatpush2.msra.mxu0 0.0
    %3436 = vmatprep.subr.mxu0 0.0
    %3437 = vmatpush2.msra.mxu0 0.0
    %3438 = vmatprep.subr.mxu0 0.0
    %3439 = vmatpush2.msra.mxu0 0.0
    %3440 = vmatprep.subr.mxu0 0.0
    %3441 = vmatpush2.msra.mxu0 0.0
    %3442 = vmatprep.subr.mxu0 0.0
    %3443 = vmatpush2.msra.mxu0 0.0
    %3444 = vmatprep.mubr.f32.mxu0 0.0
    %3445 = vmatmul.mubr.f32.gmra.mxu0 %v3375
    %v3446 = vpop.f32.mrf.mxu0
    %v3447 = vadd.f32 0.0, %v3446
    %v3448 = vpop.f32.mrf.mxu0
    %v3449 = vadd.f32 0.0, %v3448
    %3450 = vmatprep.mubr.f32.mxu0 0.0
    %3451 = vmatmul.mubr.f32.gmra.mxu0 %v3378
    %v3452 = vpop.f32.mrf.mxu0
    %v3453 = vadd.f32 0.0, %v3452
    %v3454 = vpop.f32.mrf.mxu0
    %v3455 = vadd.f32 0.0, %v3454
    %3456 = vdwg.mxu0
    %vm3457 = vcmask 654336
    %v3459 = vsel %vm3457, %v1096, 0
    %v3462 = vsel %vm3457, %v1101, 0
    %3464 = vmatprep.subr.mxu0 0.0
    %3465 = vmatpush1.msra.mxu0 0.0
    %3466 = vmatprep.subr.mxu0 0.0
    %3467 = vmatpush1.msra.mxu0 0.0
    %3468 = vmatprep.subr.mxu0 0.0
    %3469 = vmatpush1.msra.mxu0 0.0
    %3470 = vmatprep.subr.mxu0 0.0
    %3471 = vmatpush1.msra.mxu0 0.0
    %3472 = vmatprep.subr.mxu0 0.0
    %3473 = vmatpush1.msra.mxu0 0.0
    %3474 = vmatprep.subr.mxu0 0.0
    %3475 = vmatpush1.msra.mxu0 0.0
    %3476 = vmatprep.subr.mxu0 %v3369
    %3477 = vmatpush1.msra.mxu0 %v3368
    %3478 = vmatprep.subr.mxu0 %v3367
    %3479 = vmatpush1.msra.mxu0 %v3366
    %3480 = vmatprep.subr.mxu0 %v3365
    %3481 = vmatpush1.msra.mxu0 %v3364
    %3482 = vmatprep.subr.mxu0 %v3363
    %3483 = vmatpush1.msra.mxu0 %v3362
    %3484 = vmatprep.subr.mxu0 %v3361
    %3485 = vmatpush1.msra.mxu0 %v3360
    %3486 = vmatprep.subr.mxu0 %v3359
    %3487 = vmatpush1.msra.mxu0 %v3358
    %3488 = vmatprep.subr.mxu0 %v3357
    %3489 = vmatpush1.msra.mxu0 %v3356
    %3490 = vmatprep.subr.mxu0 %v3355
    %3491 = vmatpush1.msra.mxu0 %v3354
    %3492 = vmatprep.subr.mxu0 %v3353
    %3493 = vmatpush1.msra.mxu0 %v3352
    %3494 = vmatprep.subr.mxu0 %v3351
    %3495 = vmatpush1.msra.mxu0 %v3350
    %3496 = vmatprep.subr.mxu0 0.0
    %3497 = vmatpush2.msra.mxu0 0.0
    %3498 = vmatprep.subr.mxu0 0.0
    %3499 = vmatpush2.msra.mxu0 0.0
    %3500 = vmatprep.subr.mxu0 0.0
    %3501 = vmatpush2.msra.mxu0 0.0
    %3502 = vmatprep.subr.mxu0 0.0
    %3503 = vmatpush2.msra.mxu0 0.0
    %3504 = vmatprep.subr.mxu0 0.0
    %3505 = vmatpush2.msra.mxu0 0.0
    %3506 = vmatprep.subr.mxu0 0.0
    %3507 = vmatpush2.msra.mxu0 0.0
    %3508 = vmatprep.subr.mxu0 0.0
    %3509 = vmatpush2.msra.mxu0 0.0
    %3510 = vmatprep.subr.mxu0 0.0
    %3511 = vmatpush2.msra.mxu0 0.0
    %3512 = vmatprep.subr.mxu0 0.0
    %3513 = vmatpush2.msra.mxu0 0.0
    %3514 = vmatprep.subr.mxu0 0.0
    %3515 = vmatpush2.msra.mxu0 0.0
    %3516 = vmatprep.subr.mxu0 0.0
    %3517 = vmatpush2.msra.mxu0 0.0
    %3518 = vmatprep.subr.mxu0 0.0
    %3519 = vmatpush2.msra.mxu0 0.0
    %3520 = vmatprep.subr.mxu0 0.0
    %3521 = vmatpush2.msra.mxu0 0.0
    %3522 = vmatprep.subr.mxu0 0.0
    %3523 = vmatpush2.msra.mxu0 0.0
    %3524 = vmatprep.subr.mxu0 0.0
    %3525 = vmatpush2.msra.mxu0 0.0
    %3526 = vmatprep.subr.mxu0 0.0
    %3527 = vmatpush2.msra.mxu0 0.0
    %3528 = vmatprep.mubr.f32.mxu0 0.0
    %3529 = vmatmul.mubr.f32.gmra.mxu0 %v3459
    %v3530 = vpop.f32.mrf.mxu0
    %v3531 = vadd.f32 %v3447, %v3530
    %v3532 = vpop.f32.mrf.mxu0
    %v3533 = vadd.f32 %v3449, %v3532
    %3534 = vmatprep.mubr.f32.mxu0 0.0
    %3535 = vmatmul.mubr.f32.gmra.mxu0 %v3462
    %v3536 = vpop.f32.mrf.mxu0
    %v3537 = vadd.f32 %v3453, %v3536
    %v3538 = vpop.f32.mrf.mxu0
    %v3539 = vadd.f32 %v3455, %v3538
    %3540 = vdwg.mxu0
    %v3541 = vld [vmem:[%s18] sm:$0xff]
    %v3542 = vld [vmem:[%s18 + $0x8] sm:$0xff]
    %v3543 = vld [vmem:[%s18 + $0x10] sm:$0xff]
    %v3544 = vld [vmem:[%s18 + $0x18] sm:$0xff]
    %v3546 = vsel %vm1822, %v2619, 0
    %v3549 = vsel %vm1822, %v2624, 0
    %3551 = vmatprep.subr.mxu0 0.0
    %3552 = vmatpush1.msra.mxu0 0.0
    %3553 = vmatprep.subr.mxu0 0.0
    %3554 = vmatpush1.msra.mxu0 0.0
    %3555 = vmatprep.subr.mxu0 0.0
    %3556 = vmatpush1.msra.mxu0 0.0
    %3557 = vmatprep.subr.mxu0 0.0
    %3558 = vmatpush1.msra.mxu0 0.0
    %3559 = vmatprep.subr.mxu0 0.0
    %3560 = vmatpush1.msra.mxu0 0.0
    %3561 = vmatprep.subr.mxu0 0.0
    %3562 = vmatpush1.msra.mxu0 0.0
    %3563 = vmatprep.subr.mxu0 0.0
    %3564 = vmatpush1.msra.mxu0 0.0
    %3565 = vmatprep.subr.mxu0 0.0
    %3566 = vmatpush1.msra.mxu0 0.0
    %3567 = vmatprep.subr.mxu0 0.0
    %3568 = vmatpush1.msra.mxu0 0.0
    %3569 = vmatprep.subr.mxu0 0.0
    %3570 = vmatpush1.msra.mxu0 0.0
    %3571 = vmatprep.subr.mxu0 0.0
    %3572 = vmatpush1.msra.mxu0 0.0
    %3573 = vmatprep.subr.mxu0 0.0
    %3574 = vmatpush1.msra.mxu0 0.0
    %3575 = vmatprep.subr.mxu0 0.0
    %3576 = vmatpush1.msra.mxu0 0.0
    %3577 = vmatprep.subr.mxu0 0.0
    %3578 = vmatpush1.msra.mxu0 0.0
    %3579 = vmatprep.subr.mxu0 %v3544
    %3580 = vmatpush1.msra.mxu0 %v3543
    %3581 = vmatprep.subr.mxu0 %v3542
    %3582 = vmatpush1.msra.mxu0 %v3541
    %3583 = vmatprep.subr.mxu0 0.0
    %3584 = vmatpush2.msra.mxu0 0.0
    %3585 = vmatprep.subr.mxu0 0.0
    %3586 = vmatpush2.msra.mxu0 0.0
    %3587 = vmatprep.subr.mxu0 0.0
    %3588 = vmatpush2.msra.mxu0 0.0
    %3589 = vmatprep.subr.mxu0 0.0
    %3590 = vmatpush2.msra.mxu0 0.0
    %3591 = vmatprep.subr.mxu0 0.0
    %3592 = vmatpush2.msra.mxu0 0.0
    %3593 = vmatprep.subr.mxu0 0.0
    %3594 = vmatpush2.msra.mxu0 0.0
    %3595 = vmatprep.subr.mxu0 0.0
    %3596 = vmatpush2.msra.mxu0 0.0
    %3597 = vmatprep.subr.mxu0 0.0
    %3598 = vmatpush2.msra.mxu0 0.0
    %3599 = vmatprep.subr.mxu0 0.0
    %3600 = vmatpush2.msra.mxu0 0.0
    %3601 = vmatprep.subr.mxu0 0.0
    %3602 = vmatpush2.msra.mxu0 0.0
    %3603 = vmatprep.subr.mxu0 0.0
    %3604 = vmatpush2.msra.mxu0 0.0
    %3605 = vmatprep.subr.mxu0 0.0
    %3606 = vmatpush2.msra.mxu0 0.0
    %3607 = vmatprep.subr.mxu0 0.0
    %3608 = vmatpush2.msra.mxu0 0.0
    %3609 = vmatprep.subr.mxu0 0.0
    %3610 = vmatpush2.msra.mxu0 0.0
    %3611 = vmatprep.subr.mxu0 0.0
    %3612 = vmatpush2.msra.mxu0 0.0
    %3613 = vmatprep.subr.mxu0 0.0
    %3614 = vmatpush2.msra.mxu0 0.0
    %3615 = vmatprep.mubr.f32.mxu0 0.0
    %3616 = vmatmul.mubr.f32.gmra.mxu0 %v3546
    %v3617 = vpop.f32.mrf.mxu0
    %v3618 = vadd.f32 0.0, %v3617
    %v3619 = vpop.f32.mrf.mxu0
    %v3620 = vadd.f32 0.0, %v3619
    %3621 = vmatprep.mubr.f32.mxu0 0.0
    %3622 = vmatmul.mubr.f32.gmra.mxu0 %v3549
    %v3623 = vpop.f32.mrf.mxu0
    %v3624 = vadd.f32 0.0, %v3623
    %v3625 = vpop.f32.mrf.mxu0
    %v3626 = vadd.f32 0.0, %v3625
    %3627 = vdwg.mxu0
    %v3628 = vadd.f32 %v3531, %v3618
    %v3629 = vadd.f32 %v3533, %v3620
    %v3630 = vadd.f32 %v3537, %v3624
    %v3631 = vadd.f32 %v3539, %v3626
    %v3632 = vld [vmem:[%s19] sm:$0xff]
    %v3633 = vld [vmem:[%s19 + $0x8] sm:$0xff]
    %v3634 = vld [vmem:[%s19 + $0x10] sm:$0xff]
    %v3635 = vld [vmem:[%s19 + $0x18] sm:$0xff]
    %v3637 = vsel %vm1822, %v3342, 0
    %v3640 = vsel %vm1822, %v3347, 0
    %3642 = vmatprep.subr.mxu0 0.0
    %3643 = vmatpush1.msra.mxu0 0.0
    %3644 = vmatprep.subr.mxu0 0.0
    %3645 = vmatpush1.msra.mxu0 0.0
    %3646 = vmatprep.subr.mxu0 0.0
    %3647 = vmatpush1.msra.mxu0 0.0
    %3648 = vmatprep.subr.mxu0 0.0
    %3649 = vmatpush1.msra.mxu0 0.0
    %3650 = vmatprep.subr.mxu0 0.0
    %3651 = vmatpush1.msra.mxu0 0.0
    %3652 = vmatprep.subr.mxu0 0.0
    %3653 = vmatpush1.msra.mxu0 0.0
    %3654 = vmatprep.subr.mxu0 0.0
    %3655 = vmatpush1.msra.mxu0 0.0
    %3656 = vmatprep.subr.mxu0 0.0
    %3657 = vmatpush1.msra.mxu0 0.0
    %3658 = vmatprep.subr.mxu0 0.0
    %3659 = vmatpush1.msra.mxu0 0.0
    %3660 = vmatprep.subr.mxu0 0.0
    %3661 = vmatpush1.msra.mxu0 0.0
    %3662 = vmatprep.subr.mxu0 0.0
    %3663 = vmatpush1.msra.mxu0 0.0
    %3664 = vmatprep.subr.mxu0 0.0
    %3665 = vmatpush1.msra.mxu0 0.0
    %3666 = vmatprep.subr.mxu0 0.0
    %3667 = vmatpush1.msra.mxu0 0.0
    %3668 = vmatprep.subr.mxu0 0.0
    %3669 = vmatpush1.msra.mxu0 0.0
    %3670 = vmatprep.subr.mxu0 %v3635
    %3671 = vmatpush1.msra.mxu0 %v3634
    %3672 = vmatprep.subr.mxu0 %v3633
    %3673 = vmatpush1.msra.mxu0 %v3632
    %3674 = vmatprep.subr.mxu0 0.0
    %3675 = vmatpush2.msra.mxu0 0.0
    %3676 = vmatprep.subr.mxu0 0.0
    %3677 = vmatpush2.msra.mxu0 0.0
    %3678 = vmatprep.subr.mxu0 0.0
    %3679 = vmatpush2.msra.mxu0 0.0
    %3680 = vmatprep.subr.mxu0 0.0
    %3681 = vmatpush2.msra.mxu0 0.0
    %3682 = vmatprep.subr.mxu0 0.0
    %3683 = vmatpush2.msra.mxu0 0.0
    %3684 = vmatprep.subr.mxu0 0.0
    %3685 = vmatpush2.msra.mxu0 0.0
    %3686 = vmatprep.subr.mxu0 0.0
    %3687 = vmatpush2.msra.mxu0 0.0
    %3688 = vmatprep.subr.mxu0 0.0
    %3689 = vmatpush2.msra.mxu0 0.0
    %3690 = vmatprep.subr.mxu0 0.0
    %3691 = vmatpush2.msra.mxu0 0.0
    %3692 = vmatprep.subr.mxu0 0.0
    %3693 = vmatpush2.msra.mxu0 0.0
    %3694 = vmatprep.subr.mxu0 0.0
    %3695 = vmatpush2.msra.mxu0 0.0
    %3696 = vmatprep.subr.mxu0 0.0
    %3697 = vmatpush2.msra.mxu0 0.0
    %3698 = vmatprep.subr.mxu0 0.0
    %3699 = vmatpush2.msra.mxu0 0.0
    %3700 = vmatprep.subr.mxu0 0.0
    %3701 = vmatpush2.msra.mxu0 0.0
    %3702 = vmatprep.subr.mxu0 0.0
    %3703 = vmatpush2.msra.mxu0 0.0
    %3704 = vmatprep.subr.mxu0 0.0
    %3705 = vmatpush2.msra.mxu0 0.0
    %3706 = vmatprep.mubr.f32.mxu0 0.0
    %3707 = vmatmul.mubr.f32.gmra.mxu0 %v3637
    %v3708 = vpop.f32.mrf.mxu0
    %v3709 = vadd.f32 0.0, %v3708
    %v3710 = vpop.f32.mrf.mxu0
    %v3711 = vadd.f32 0.0, %v3710
    %3712 = vmatprep.mubr.f32.mxu0 0.0
    %3713 = vmatmul.mubr.f32.gmra.mxu0 %v3640
    %v3714 = vpop.f32.mrf.mxu0
    %v3715 = vadd.f32 0.0, %v3714
    %v3716 = vpop.f32.mrf.mxu0
    %v3717 = vadd.f32 0.0, %v3716
    %3718 = vdwg.mxu0
    %v3719 = vadd.f32 %v3628, %v3709
    %v3720 = vadd.f32 %v3629, %v3711
    %v3721 = vadd.f32 %v3630, %v3715
    %v3722 = vadd.f32 %v3631, %v3717
    %v3723 = vld [vmem:[%s20] sm:$0x3]
    %v3725 = vlaneseq
    %v3726 = vshrl.u32 %v3725, 7
    %v3727 = vsub.s32 0, %v3726
    %v3728 = vrot.slane %v3723, %v3727
    %v3729 = vlaneseq
    %v3730 = vshrl.u32 %v3729, 7
    %v3731 = vsub.s32 1, %v3730
    %v3732 = vrot.slane %v3723, %v3731
    %v3735 = vadd.f32 %v3719, %v3728
    %v3736 = vadd.f32 %v3720, %v3732
    %v3737 = vadd.f32 %v3721, %v3728
    %v3738 = vadd.f32 %v3722, %v3732
    %v3739 = vld [vmem:[%s21] sm:$0xff]
    %v3740 = vld [vmem:[%s21 + $0x8] sm:$0xff]
    %v3741 = vld [vmem:[%s21 + $0x10] sm:$0xff]
    %v3742 = vld [vmem:[%s21 + $0x18] sm:$0xff]
    %v3743 = vld [vmem:[%s21 + $0x20] sm:$0xff]
    %v3744 = vld [vmem:[%s21 + $0x28] sm:$0xff]
    %v3745 = vld [vmem:[%s21 + $0x30] sm:$0xff]
    %v3746 = vld [vmem:[%s21 + $0x38] sm:$0xff]
    %v3747 = vld [vmem:[%s21 + $0x40] sm:$0xff]
    %v3748 = vld [vmem:[%s21 + $0x48] sm:$0xff]
    %v3749 = vld [vmem:[%s21 + $0x50] sm:$0xff]
    %v3750 = vld [vmem:[%s21 + $0x58] sm:$0xff]
    %v3751 = vld [vmem:[%s21 + $0x60] sm:$0xff]
    %v3752 = vld [vmem:[%s21 + $0x68] sm:$0xff]
    %v3753 = vld [vmem:[%s21 + $0x70] sm:$0xff]
    %v3754 = vld [vmem:[%s21 + $0x78] sm:$0xff]
    %v3755 = vld [vmem:[%s21 + $0x80] sm:$0xff]
    %v3756 = vld [vmem:[%s21 + $0x88] sm:$0xff]
    %v3757 = vld [vmem:[%s21 + $0x90] sm:$0xff]
    %v3758 = vld [vmem:[%s21 + $0x98] sm:$0xff]
    %v3759 = vld [vmem:[%s21 + $0xa0] sm:$0xff]
    %v3760 = vld [vmem:[%s21 + $0xa8] sm:$0xff]
    %v3761 = vld [vmem:[%s21 + $0xb0] sm:$0xff]
    %v3762 = vld [vmem:[%s21 + $0xb8] sm:$0xff]
    %v3763 = vld [vmem:[%s21 + $0xc0] sm:$0xff]
    %v3764 = vld [vmem:[%s21 + $0xc8] sm:$0xff]
    %v3765 = vld [vmem:[%s21 + $0xd0] sm:$0xff]
    %v3766 = vld [vmem:[%s21 + $0xd8] sm:$0xff]
    %v3767 = vld [vmem:[%s21 + $0xe0] sm:$0xff]
    %v3768 = vld [vmem:[%s21 + $0xe8] sm:$0xff]
    %v3769 = vld [vmem:[%s21 + $0xf0] sm:$0xff]
    %v3770 = vld [vmem:[%s21 + $0xf8] sm:$0xff]
    %v3771 = vld [vmem:[%s21 + $0x100] sm:$0xff]
    %v3772 = vld [vmem:[%s21 + $0x108] sm:$0xff]
    %v3773 = vld [vmem:[%s21 + $0x110] sm:$0xff]
    %v3774 = vld [vmem:[%s21 + $0x118] sm:$0xff]
    %v3775 = vld [vmem:[%s21 + $0x120] sm:$0xff]
    %v3776 = vld [vmem:[%s21 + $0x128] sm:$0xff]
    %v3777 = vld [vmem:[%s21 + $0x130] sm:$0xff]
    %v3778 = vld [vmem:[%s21 + $0x138] sm:$0xff]
    %v3779 = vld [vmem:[%s21 + $0x140] sm:$0xff]
    %v3780 = vld [vmem:[%s21 + $0x148] sm:$0xff]
    %v3781 = vld [vmem:[%s21 + $0x150] sm:$0xff]
    %v3782 = vld [vmem:[%s21 + $0x158] sm:$0xff]
    %v3783 = vld [vmem:[%s21 + $0x160] sm:$0xff]
    %v3784 = vld [vmem:[%s21 + $0x168] sm:$0xff]
    %v3785 = vld [vmem:[%s21 + $0x170] sm:$0xff]
    %v3786 = vld [vmem:[%s21 + $0x178] sm:$0xff]
    %v3787 = vld [vmem:[%s21 + $0x180] sm:$0xff]
    %v3788 = vld [vmem:[%s21 + $0x188] sm:$0xff]
    %v3789 = vld [vmem:[%s21 + $0x190] sm:$0xff]
    %v3790 = vld [vmem:[%s21 + $0x198] sm:$0xff]
    %v3791 = vld [vmem:[%s21 + $0x1a0] sm:$0xff]
    %v3792 = vld [vmem:[%s21 + $0x1a8] sm:$0xff]
    %v3793 = vld [vmem:[%s21 + $0x1b0] sm:$0xff]
    %v3794 = vld [vmem:[%s21 + $0x1b8] sm:$0xff]
    %v3795 = vld [vmem:[%s21 + $0x1c0] sm:$0xff]
    %v3796 = vld [vmem:[%s21 + $0x1c8] sm:$0xff]
    %v3797 = vld [vmem:[%s21 + $0x1d0] sm:$0xff]
    %v3798 = vld [vmem:[%s21 + $0x1d8] sm:$0xff]
    %v3799 = vld [vmem:[%s21 + $0x1e0] sm:$0xff]
    %v3800 = vld [vmem:[%s21 + $0x1e8] sm:$0xff]
    %v3801 = vld [vmem:[%s21 + $0x1f0] sm:$0xff]
    %v3802 = vld [vmem:[%s21 + $0x1f8] sm:$0xff]
    %v3803 = vld [vmem:[%s22] sm:$0x3]
    %v3805 = vlaneseq
    %v3806 = vshrl.u32 %v3805, 7
    %v3807 = vsub.s32 0, %v3806
    %v3808 = vrot.slane %v3803, %v3807
    %v3809 = vlaneseq
    %v3810 = vshrl.u32 %v3809, 7
    %v3811 = vsub.s32 1, %v3810
    %v3812 = vrot.slane %v3803, %v3811
    %3815 = vmatprep.subr.mxu0 %v3770
    %3816 = vmatpush1.msra.mxu0 %v3769
    %3817 = vmatprep.subr.mxu0 %v3768
    %3818 = vmatpush1.msra.mxu0 %v3767
    %3819 = vmatprep.subr.mxu0 %v3766
    %3820 = vmatpush1.msra.mxu0 %v3765
    %3821 = vmatprep.subr.mxu0 %v3764
    %3822 = vmatpush1.msra.mxu0 %v3763
    %3823 = vmatprep.subr.mxu0 %v3762
    %3824 = vmatpush1.msra.mxu0 %v3761
    %3825 = vmatprep.subr.mxu0 %v3760
    %3826 = vmatpush1.msra.mxu0 %v3759
    %3827 = vmatprep.subr.mxu0 %v3758
    %3828 = vmatpush1.msra.mxu0 %v3757
    %3829 = vmatprep.subr.mxu0 %v3756
    %3830 = vmatpush1.msra.mxu0 %v3755
    %3831 = vmatprep.subr.mxu0 %v3754
    %3832 = vmatpush1.msra.mxu0 %v3753
    %3833 = vmatprep.subr.mxu0 %v3752
    %3834 = vmatpush1.msra.mxu0 %v3751
    %3835 = vmatprep.subr.mxu0 %v3750
    %3836 = vmatpush1.msra.mxu0 %v3749
    %3837 = vmatprep.subr.mxu0 %v3748
    %3838 = vmatpush1.msra.mxu0 %v3747
    %3839 = vmatprep.subr.mxu0 %v3746
    %3840 = vmatpush1.msra.mxu0 %v3745
    %3841 = vmatprep.subr.mxu0 %v3744
    %3842 = vmatpush1.msra.mxu0 %v3743
    %3843 = vmatprep.subr.mxu0 %v3742
    %3844 = vmatpush1.msra.mxu0 %v3741
    %3845 = vmatprep.subr.mxu0 %v3740
    %3846 = vmatpush1.msra.mxu0 %v3739
    %3847 = vmatprep.subr.mxu0 %v3802
    %3848 = vmatpush2.msra.mxu0 %v3801
    %3849 = vmatprep.subr.mxu0 %v3800
    %3850 = vmatpush2.msra.mxu0 %v3799
    %3851 = vmatprep.subr.mxu0 %v3798
    %3852 = vmatpush2.msra.mxu0 %v3797
    %3853 = vmatprep.subr.mxu0 %v3796
    %3854 = vmatpush2.msra.mxu0 %v3795
    %3855 = vmatprep.subr.mxu0 %v3794
    %3856 = vmatpush2.msra.mxu0 %v3793
    %3857 = vmatprep.subr.mxu0 %v3792
    %3858 = vmatpush2.msra.mxu0 %v3791
    %3859 = vmatprep.subr.mxu0 %v3790
    %3860 = vmatpush2.msra.mxu0 %v3789
    %3861 = vmatprep.subr.mxu0 %v3788
    %3862 = vmatpush2.msra.mxu0 %v3787
    %3863 = vmatprep.subr.mxu0 %v3786
    %3864 = vmatpush2.msra.mxu0 %v3785
    %3865 = vmatprep.subr.mxu0 %v3784
    %3866 = vmatpush2.msra.mxu0 %v3783
    %3867 = vmatprep.subr.mxu0 %v3782
    %3868 = vmatpush2.msra.mxu0 %v3781
    %3869 = vmatprep.subr.mxu0 %v3780
    %3870 = vmatpush2.msra.mxu0 %v3779
    %3871 = vmatprep.subr.mxu0 %v3778
    %3872 = vmatpush2.msra.mxu0 %v3777
    %3873 = vmatprep.subr.mxu0 %v3776
    %3874 = vmatpush2.msra.mxu0 %v3775
    %3875 = vmatprep.subr.mxu0 %v3774
    %3876 = vmatpush2.msra.mxu0 %v3773
    %3877 = vmatprep.subr.mxu0 %v3772
    %3878 = vmatpush2.msra.mxu0 %v3771
    %3879 = vmatprep.mubr.f32.mxu0 %v3736
    %3880 = vmatmul.mubr.f32.gmra.mxu0 %v3735
    %v3881 = vpop.f32.mrf.mxu0
    %v3882 = vadd.f32 %v3808, %v3881
    %v3883 = vpop.f32.mrf.mxu0
    %v3884 = vadd.f32 %v3812, %v3883
    %3885 = vmatprep.mubr.f32.mxu0 %v3738
    %3886 = vmatmul.mubr.f32.gmra.mxu0 %v3737
    %v3887 = vpop.f32.mrf.mxu0
    %v3888 = vadd.f32 %v3808, %v3887
    %v3889 = vpop.f32.mrf.mxu0
    %v3890 = vadd.f32 %v3812, %v3889
    %3891 = vdwg.mxu0
    %v3892 = vadd.f32 %v3882, %v3884
    %3893 = vadd.xlane.f32.xlu0 %v3892
    %v3894 = vpop.xlane.xlu0 %3893
    %v3895 = vadd.f32 %v3888, %v3890
    %3896 = vadd.xlane.f32.xlu0 %v3895
    %v3897 = vpop.xlane.xlu0 %3896
    %v3898 = vrcp.pop 256.0
    %v3899 = vmul.f32 %v3894, %v3898
    %v3900 = vmul.f32 %v3897, %v3898
    %v3901 = vsub.f32 %v3882, %v3899
    %v3902 = vsub.f32 %v3884, %v3899
    %v3903 = vsub.f32 %v3888, %v3900
    %v3904 = vsub.f32 %v3890, %v3900
    %v3905 = vmul.f32 %v3901, %v3901
    %v3906 = vmul.f32 %v3902, %v3902
    %v3907 = vmul.f32 %v3903, %v3903
    %v3908 = vmul.f32 %v3904, %v3904
    %v3909 = vadd.f32 %v3905, %v3906
    %3910 = vadd.xlane.f32.xlu0 %v3909
    %v3911 = vpop.xlane.xlu0 %3910
    %v3912 = vadd.f32 %v3907, %v3908
    %3913 = vadd.xlane.f32.xlu0 %v3912
    %v3914 = vpop.xlane.xlu0 %3913
    %v3915 = vmul.f32 %v3911, %v3898
    %v3916 = vmul.f32 %v3914, %v3898
    %v3917 = vadd.f32 %v3915, 1e-05
    %v3918 = vadd.f32 %v3916, 1e-05
    %v3919 = vrsqrt.pop %v3917
    %v3920 = vrsqrt.pop %v3918
    %v3921 = vmul.f32 %v3901, %v3919
    %v3922 = vmul.f32 %v3902, %v3919
    %v3923 = vmul.f32 %v3903, %v3920
    %v3924 = vmul.f32 %v3904, %v3920
    %v3925 = vld [vmem:[%s23] sm:$0x3]
    %v3927 = vlaneseq
    %v3928 = vshrl.u32 %v3927, 7
    %v3929 = vsub.s32 0, %v3928
    %v3930 = vrot.slane %v3925, %v3929
    %v3931 = vlaneseq
    %v3932 = vshrl.u32 %v3931, 7
    %v3933 = vsub.s32 1, %v3932
    %v3934 = vrot.slane %v3925, %v3933
    %v3937 = vmul.f32 %v3921, %v3930
    %v3938 = vmul.f32 %v3922, %v3934
    %v3939 = vmul.f32 %v3923, %v3930
    %v3940 = vmul.f32 %v3924, %v3934
    %v3941 = vld [vmem:[%s24] sm:$0x3]
    %v3943 = vlaneseq
    %v3944 = vshrl.u32 %v3943, 7
    %v3945 = vsub.s32 0, %v3944
    %v3946 = vrot.slane %v3941, %v3945
    %v3947 = vlaneseq
    %v3948 = vshrl.u32 %v3947, 7
    %v3949 = vsub.s32 1, %v3948
    %v3950 = vrot.slane %v3941, %v3949
    %v3953 = vadd.f32 %v3937, %v3946
    %v3954 = vadd.f32 %v3938, %v3950
    %v3955 = vadd.f32 %v3939, %v3946
    %v3956 = vadd.f32 %v3940, %v3950
    %v3957 = vmax.f32 %v3953, 0.0
    %v3958 = vmax.f32 %v3954, 0.0
    %v3959 = vmax.f32 %v3955, 0.0
    %v3960 = vmax.f32 %v3956, 0.0
    %v3961 = vadd.f32 %v3735, %v3957
    %v3962 = vadd.f32 %v3736, %v3958
    %v3963 = vadd.f32 %v3737, %v3959
    %v3964 = vadd.f32 %v3738, %v3960
    %s3965 = scalar_lea.vmem %s21, 512
    %v3966 = vld [vmem:[%s3965] sm:$0xff]
    %v3967 = vld [vmem:[%s3965 + $0x8] sm:$0xff]
    %v3968 = vld [vmem:[%s3965 + $0x10] sm:$0xff]
    %v3969 = vld [vmem:[%s3965 + $0x18] sm:$0xff]
    %v3970 = vld [vmem:[%s3965 + $0x20] sm:$0xff]
    %v3971 = vld [vmem:[%s3965 + $0x28] sm:$0xff]
    %v3972 = vld [vmem:[%s3965 + $0x30] sm:$0xff]
    %v3973 = vld [vmem:[%s3965 + $0x38] sm:$0xff]
    %v3974 = vld [vmem:[%s3965 + $0x40] sm:$0xff]
    %v3975 = vld [vmem:[%s3965 + $0x48] sm:$0xff]
    %v3976 = vld [vmem:[%s3965 + $0x50] sm:$0xff]
    %v3977 = vld [vmem:[%s3965 + $0x58] sm:$0xff]
    %v3978 = vld [vmem:[%s3965 + $0x60] sm:$0xff]
    %v3979 = vld [vmem:[%s3965 + $0x68] sm:$0xff]
    %v3980 = vld [vmem:[%s3965 + $0x70] sm:$0xff]
    %v3981 = vld [vmem:[%s3965 + $0x78] sm:$0xff]
    %v3982 = vld [vmem:[%s3965 + $0x80] sm:$0xff]
    %v3983 = vld [vmem:[%s3965 + $0x88] sm:$0xff]
    %v3984 = vld [vmem:[%s3965 + $0x90] sm:$0xff]
    %v3985 = vld [vmem:[%s3965 + $0x98] sm:$0xff]
    %v3986 = vld [vmem:[%s3965 + $0xa0] sm:$0xff]
    %v3987 = vld [vmem:[%s3965 + $0xa8] sm:$0xff]
    %v3988 = vld [vmem:[%s3965 + $0xb0] sm:$0xff]
    %v3989 = vld [vmem:[%s3965 + $0xb8] sm:$0xff]
    %v3990 = vld [vmem:[%s3965 + $0xc0] sm:$0xff]
    %v3991 = vld [vmem:[%s3965 + $0xc8] sm:$0xff]
    %v3992 = vld [vmem:[%s3965 + $0xd0] sm:$0xff]
    %v3993 = vld [vmem:[%s3965 + $0xd8] sm:$0xff]
    %v3994 = vld [vmem:[%s3965 + $0xe0] sm:$0xff]
    %v3995 = vld [vmem:[%s3965 + $0xe8] sm:$0xff]
    %v3996 = vld [vmem:[%s3965 + $0xf0] sm:$0xff]
    %v3997 = vld [vmem:[%s3965 + $0xf8] sm:$0xff]
    %v3998 = vld [vmem:[%s3965 + $0x100] sm:$0xff]
    %v3999 = vld [vmem:[%s3965 + $0x108] sm:$0xff]
    %v4000 = vld [vmem:[%s3965 + $0x110] sm:$0xff]
    %v4001 = vld [vmem:[%s3965 + $0x118] sm:$0xff]
    %v4002 = vld [vmem:[%s3965 + $0x120] sm:$0xff]
    %v4003 = vld [vmem:[%s3965 + $0x128] sm:$0xff]
    %v4004 = vld [vmem:[%s3965 + $0x130] sm:$0xff]
    %v4005 = vld [vmem:[%s3965 + $0x138] sm:$0xff]
    %v4006 = vld [vmem:[%s3965 + $0x140] sm:$0xff]
    %v4007 = vld [vmem:[%s3965 + $0x148] sm:$0xff]
    %v4008 = vld [vmem:[%s3965 + $0x150] sm:$0xff]
    %v4009 = vld [vmem:[%s3965 + $0x158] sm:$0xff]
    %v4010 = vld [vmem:[%s3965 + $0x160] sm:$0xff]
    %v4011 = vld [vmem:[%s3965 + $0x168] sm:$0xff]
    %v4012 = vld [vmem:[%s3965 + $0x170] sm:$0xff]
    %v4013 = vld [vmem:[%s3965 + $0x178] sm:$0xff]
    %v4014 = vld [vmem:[%s3965 + $0x180] sm:$0xff]
    %v4015 = vld [vmem:[%s3965 + $0x188] sm:$0xff]
    %v4016 = vld [vmem:[%s3965 + $0x190] sm:$0xff]
    %v4017 = vld [vmem:[%s3965 + $0x198] sm:$0xff]
    %v4018 = vld [vmem:[%s3965 + $0x1a0] sm:$0xff]
    %v4019 = vld [vmem:[%s3965 + $0x1a8] sm:$0xff]
    %v4020 = vld [vmem:[%s3965 + $0x1b0] sm:$0xff]
    %v4021 = vld [vmem:[%s3965 + $0x1b8] sm:$0xff]
    %v4022 = vld [vmem:[%s3965 + $0x1c0] sm:$0xff]
    %v4023 = vld [vmem:[%s3965 + $0x1c8] sm:$0xff]
    %v4024 = vld [vmem:[%s3965 + $0x1d0] sm:$0xff]
    %v4025 = vld [vmem:[%s3965 + $0x1d8] sm:$0xff]
    %v4026 = vld [vmem:[%s3965 + $0x1e0] sm:$0xff]
    %v4027 = vld [vmem:[%s3965 + $0x1e8] sm:$0xff]
    %v4028 = vld [vmem:[%s3965 + $0x1f0] sm:$0xff]
    %v4029 = vld [vmem:[%s3965 + $0x1f8] sm:$0xff]
    %s4030 = scalar_lea.vmem %s22, 2
    %v4031 = vld [vmem:[%s4030] sm:$0x3]
    %v4033 = vlaneseq
    %v4034 = vshrl.u32 %v4033, 7
    %v4035 = vsub.s32 0, %v4034
    %v4036 = vrot.slane %v4031, %v4035
    %v4037 = vlaneseq
    %v4038 = vshrl.u32 %v4037, 7
    %v4039 = vsub.s32 1, %v4038
    %v4040 = vrot.slane %v4031, %v4039
    %4043 = vmatprep.subr.mxu0 %v3997
    %4044 = vmatpush1.msra.mxu0 %v3996
    %4045 = vmatprep.subr.mxu0 %v3995
    %4046 = vmatpush1.msra.mxu0 %v3994
    %4047 = vmatprep.subr.mxu0 %v3993
    %4048 = vmatpush1.msra.mxu0 %v3992
    %4049 = vmatprep.subr.mxu0 %v3991
    %4050 = vmatpush1.msra.mxu0 %v3990
    %4051 = vmatprep.subr.mxu0 %v3989
    %4052 = vmatpush1.msra.mxu0 %v3988
    %4053 = vmatprep.subr.mxu0 %v3987
    %4054 = vmatpush1.msra.mxu0 %v3986
    %4055 = vmatprep.subr.mxu0 %v3985
    %4056 = vmatpush1.msra.mxu0 %v3984
    %4057 = vmatprep.subr.mxu0 %v3983
    %4058 = vmatpush1.msra.mxu0 %v3982
    %4059 = vmatprep.subr.mxu0 %v3981
    %4060 = vmatpush1.msra.mxu0 %v3980
    %4061 = vmatprep.subr.mxu0 %v3979
    %4062 = vmatpush1.msra.mxu0 %v3978
    %4063 = vmatprep.subr.mxu0 %v3977
    %4064 = vmatpush1.msra.mxu0 %v3976
    %4065 = vmatprep.subr.mxu0 %v3975
    %4066 = vmatpush1.msra.mxu0 %v3974
    %4067 = vmatprep.subr.mxu0 %v3973
    %4068 = vmatpush1.msra.mxu0 %v3972
    %4069 = vmatprep.subr.mxu0 %v3971
    %4070 = vmatpush1.msra.mxu0 %v3970
    %4071 = vmatprep.subr.mxu0 %v3969
    %4072 = vmatpush1.msra.mxu0 %v3968
    %4073 = vmatprep.subr.mxu0 %v3967
    %4074 = vmatpush1.msra.mxu0 %v3966
    %4075 = vmatprep.subr.mxu0 %v4029
    %4076 = vmatpush2.msra.mxu0 %v4028
    %4077 = vmatprep.subr.mxu0 %v4027
    %4078 = vmatpush2.msra.mxu0 %v4026
    %4079 = vmatprep.subr.mxu0 %v4025
    %4080 = vmatpush2.msra.mxu0 %v4024
    %4081 = vmatprep.subr.mxu0 %v4023
    %4082 = vmatpush2.msra.mxu0 %v4022
    %4083 = vmatprep.subr.mxu0 %v4021
    %4084 = vmatpush2.msra.mxu0 %v4020
    %4085 = vmatprep.subr.mxu0 %v4019
    %4086 = vmatpush2.msra.mxu0 %v4018
    %4087 = vmatprep.subr.mxu0 %v4017
    %4088 = vmatpush2.msra.mxu0 %v4016
    %4089 = vmatprep.subr.mxu0 %v4015
    %4090 = vmatpush2.msra.mxu0 %v4014
    %4091 = vmatprep.subr.mxu0 %v4013
    %4092 = vmatpush2.msra.mxu0 %v4012
    %4093 = vmatprep.subr.mxu0 %v4011
    %4094 = vmatpush2.msra.mxu0 %v4010
    %4095 = vmatprep.subr.mxu0 %v4009
    %4096 = vmatpush2.msra.mxu0 %v4008
    %4097 = vmatprep.subr.mxu0 %v4007
    %4098 = vmatpush2.msra.mxu0 %v4006
    %4099 = vmatprep.subr.mxu0 %v4005
    %4100 = vmatpush2.msra.mxu0 %v4004
    %4101 = vmatprep.subr.mxu0 %v4003
    %4102 = vmatpush2.msra.mxu0 %v4002
    %4103 = vmatprep.subr.mxu0 %v4001
    %4104 = vmatpush2.msra.mxu0 %v4000
    %4105 = vmatprep.subr.mxu0 %v3999
    %4106 = vmatpush2.msra.mxu0 %v3998
    %4107 = vmatprep.mubr.f32.mxu0 %v3962
    %4108 = vmatmul.mubr.f32.gmra.mxu0 %v3961
    %v4109 = vpop.f32.mrf.mxu0
    %v4110 = vadd.f32 %v4036, %v4109
    %v4111 = vpop.f32.mrf.mxu0
    %v4112 = vadd.f32 %v4040, %v4111
    %4113 = vmatprep.mubr.f32.mxu0 %v3964
    %4114 = vmatmul.mubr.f32.gmra.mxu0 %v3963
    %v4115 = vpop.f32.mrf.mxu0
    %v4116 = vadd.f32 %v4036, %v4115
    %v4117 = vpop.f32.mrf.mxu0
    %v4118 = vadd.f32 %v4040, %v4117
    %4119 = vdwg.mxu0
    %v4120 = vadd.f32 %v4110, %v4112
    %4121 = vadd.xlane.f32.xlu0 %v4120
    %v4122 = vpop.xlane.xlu0 %4121
    %v4123 = vadd.f32 %v4116, %v4118
    %4124 = vadd.xlane.f32.xlu0 %v4123
    %v4125 = vpop.xlane.xlu0 %4124
    %v4126 = vmul.f32 %v4122, %v3898
    %v4127 = vmul.f32 %v4125, %v3898
    %v4128 = vsub.f32 %v4110, %v4126
    %v4129 = vsub.f32 %v4112, %v4126
    %v4130 = vsub.f32 %v4116, %v4127
    %v4131 = vsub.f32 %v4118, %v4127
    %v4132 = vmul.f32 %v4128, %v4128
    %v4133 = vmul.f32 %v4129, %v4129
    %v4134 = vmul.f32 %v4130, %v4130
    %v4135 = vmul.f32 %v4131, %v4131
    %v4136 = vadd.f32 %v4132, %v4133
    %4137 = vadd.xlane.f32.xlu0 %v4136
    %v4138 = vpop.xlane.xlu0 %4137
    %v4139 = vadd.f32 %v4134, %v4135
    %4140 = vadd.xlane.f32.xlu0 %v4139
    %v4141 = vpop.xlane.xlu0 %4140
    %v4142 = vmul.f32 %v4138, %v3898
    %v4143 = vmul.f32 %v4141, %v3898
    %v4144 = vadd.f32 %v4142, 1e-05
    %v4145 = vadd.f32 %v4143, 1e-05
    %v4146 = vrsqrt.pop %v4144
    %v4147 = vrsqrt.pop %v4145
    %v4148 = vmul.f32 %v4128, %v4146
    %v4149 = vmul.f32 %v4129, %v4146
    %v4150 = vmul.f32 %v4130, %v4147
    %v4151 = vmul.f32 %v4131, %v4147
    %s4152 = scalar_lea.vmem %s23, 2
    %v4153 = vld [vmem:[%s4152] sm:$0x3]
    %v4155 = vlaneseq
    %v4156 = vshrl.u32 %v4155, 7
    %v4157 = vsub.s32 0, %v4156
    %v4158 = vrot.slane %v4153, %v4157
    %v4159 = vlaneseq
    %v4160 = vshrl.u32 %v4159, 7
    %v4161 = vsub.s32 1, %v4160
    %v4162 = vrot.slane %v4153, %v4161
    %v4165 = vmul.f32 %v4148, %v4158
    %v4166 = vmul.f32 %v4149, %v4162
    %v4167 = vmul.f32 %v4150, %v4158
    %v4168 = vmul.f32 %v4151, %v4162
    %s4169 = scalar_lea.vmem %s24, 2
    %v4170 = vld [vmem:[%s4169] sm:$0x3]
    %v4172 = vlaneseq
    %v4173 = vshrl.u32 %v4172, 7
    %v4174 = vsub.s32 0, %v4173
    %v4175 = vrot.slane %v4170, %v4174
    %v4176 = vlaneseq
    %v4177 = vshrl.u32 %v4176, 7
    %v4178 = vsub.s32 1, %v4177
    %v4179 = vrot.slane %v4170, %v4178
    %v4182 = vadd.f32 %v4165, %v4175
    %v4183 = vadd.f32 %v4166, %v4179
    %v4184 = vadd.f32 %v4167, %v4175
    %v4185 = vadd.f32 %v4168, %v4179
    %v4186 = vmax.f32 %v4182, 0.0
    %v4187 = vmax.f32 %v4183, 0.0
    %v4188 = vmax.f32 %v4184, 0.0
    %v4189 = vmax.f32 %v4185, 0.0
    %v4190 = vadd.f32 %v3961, %v4186
    %v4191 = vadd.f32 %v3962, %v4187
    %v4192 = vadd.f32 %v3963, %v4188
    %v4193 = vadd.f32 %v3964, %v4189
    %v4194 = vld [vmem:[%s25] sm:$0xff]
    %v4195 = vld [vmem:[%s25 + $0x8] sm:$0xff]
    %v4196 = vld [vmem:[%s25 + $0x10] sm:$0xff]
    %v4197 = vld [vmem:[%s25 + $0x18] sm:$0xff]
    %v4198 = vld [vmem:[%s25 + $0x20] sm:$0xff]
    %v4199 = vld [vmem:[%s25 + $0x28] sm:$0xff]
    %v4200 = vld [vmem:[%s25 + $0x30] sm:$0xff]
    %v4201 = vld [vmem:[%s25 + $0x38] sm:$0xff]
    %v4202 = vld [vmem:[%s25 + $0x40] sm:$0xff]
    %v4203 = vld [vmem:[%s25 + $0x48] sm:$0xff]
    %v4204 = vld [vmem:[%s25 + $0x50] sm:$0xff]
    %v4205 = vld [vmem:[%s25 + $0x58] sm:$0xff]
    %v4206 = vld [vmem:[%s25 + $0x60] sm:$0xff]
    %v4207 = vld [vmem:[%s25 + $0x68] sm:$0xff]
    %v4208 = vld [vmem:[%s25 + $0x70] sm:$0xff]
    %v4209 = vld [vmem:[%s25 + $0x78] sm:$0xff]
    %v4210 = vld [vmem:[%s25 + $0x80] sm:$0xff]
    %v4211 = vld [vmem:[%s25 + $0x88] sm:$0xff]
    %v4212 = vld [vmem:[%s25 + $0x90] sm:$0xff]
    %v4213 = vld [vmem:[%s25 + $0x98] sm:$0xff]
    %v4214 = vld [vmem:[%s25 + $0xa0] sm:$0xff]
    %v4215 = vld [vmem:[%s25 + $0xa8] sm:$0xff]
    %v4216 = vld [vmem:[%s25 + $0xb0] sm:$0xff]
    %v4217 = vld [vmem:[%s25 + $0xb8] sm:$0xff]
    %v4218 = vld [vmem:[%s25 + $0xc0] sm:$0xff]
    %v4219 = vld [vmem:[%s25 + $0xc8] sm:$0xff]
    %v4220 = vld [vmem:[%s25 + $0xd0] sm:$0xff]
    %v4221 = vld [vmem:[%s25 + $0xd8] sm:$0xff]
    %v4222 = vld [vmem:[%s25 + $0xe0] sm:$0xff]
    %v4223 = vld [vmem:[%s25 + $0xe8] sm:$0xff]
    %v4224 = vld [vmem:[%s25 + $0xf0] sm:$0xff]
    %v4225 = vld [vmem:[%s25 + $0xf8] sm:$0xff]
    %v4226 = vld [vmem:[%s26] sm:$0x1]
    %v4228 = vlaneseq
    %v4229 = vshrl.u32 %v4228, 7
    %v4230 = vsub.s32 0, %v4229
    %v4231 = vrot.slane %v4226, %v4230
    %4233 = vmatprep.subr.mxu0 0.0
    %4234 = vmatpush1.msra.mxu0 %v4209
    %4235 = vmatprep.subr.mxu0 0.0
    %4236 = vmatpush1.msra.mxu0 %v4208
    %4237 = vmatprep.subr.mxu0 0.0
    %4238 = vmatpush1.msra.mxu0 %v4207
    %4239 = vmatprep.subr.mxu0 0.0
    %4240 = vmatpush1.msra.mxu0 %v4206
    %4241 = vmatprep.subr.mxu0 0.0
    %4242 = vmatpush1.msra.mxu0 %v4205
    %4243 = vmatprep.subr.mxu0 0.0
    %4244 = vmatpush1.msra.mxu0 %v4204
    %4245 = vmatprep.subr.mxu0 0.0
    %4246 = vmatpush1.msra.mxu0 %v4203
    %4247 = vmatprep.subr.mxu0 0.0
    %4248 = vmatpush1.msra.mxu0 %v4202
    %4249 = vmatprep.subr.mxu0 0.0
    %4250 = vmatpush1.msra.mxu0 %v4201
    %4251 = vmatprep.subr.mxu0 0.0
    %4252 = vmatpush1.msra.mxu0 %v4200
    %4253 = vmatprep.subr.mxu0 0.0
    %4254 = vmatpush1.msra.mxu0 %v4199
    %4255 = vmatprep.subr.mxu0 0.0
    %4256 = vmatpush1.msra.mxu0 %v4198
    %4257 = vmatprep.subr.mxu0 0.0
    %4258 = vmatpush1.msra.mxu0 %v4197
    %4259 = vmatprep.subr.mxu0 0.0
    %4260 = vmatpush1.msra.mxu0 %v4196
    %4261 = vmatprep.subr.mxu0 0.0
    %4262 = vmatpush1.msra.mxu0 %v4195
    %4263 = vmatprep.subr.mxu0 0.0
    %4264 = vmatpush1.msra.mxu0 %v4194
    %4265 = vmatprep.subr.mxu0 0.0
    %4266 = vmatpush2.msra.mxu0 %v4225
    %4267 = vmatprep.subr.mxu0 0.0
    %4268 = vmatpush2.msra.mxu0 %v4224
    %4269 = vmatprep.subr.mxu0 0.0
    %4270 = vmatpush2.msra.mxu0 %v4223
    %4271 = vmatprep.subr.mxu0 0.0
    %4272 = vmatpush2.msra.mxu0 %v4222
    %4273 = vmatprep.subr.mxu0 0.0
    %4274 = vmatpush2.msra.mxu0 %v4221
    %4275 = vmatprep.subr.mxu0 0.0
    %4276 = vmatpush2.msra.mxu0 %v4220
    %4277 = vmatprep.subr.mxu0 0.0
    %4278 = vmatpush2.msra.mxu0 %v4219
    %4279 = vmatprep.subr.mxu0 0.0
    %4280 = vmatpush2.msra.mxu0 %v4218
    %4281 = vmatprep.subr.mxu0 0.0
    %4282 = vmatpush2.msra.mxu0 %v4217
    %4283 = vmatprep.subr.mxu0 0.0
    %4284 = vmatpush2.msra.mxu0 %v4216
    %4285 = vmatprep.subr.mxu0 0.0
    %4286 = vmatpush2.msra.mxu0 %v4215
    %4287 = vmatprep.subr.mxu0 0.0
    %4288 = vmatpush2.msra.mxu0 %v4214
    %4289 = vmatprep.subr.mxu0 0.0
    %4290 = vmatpush2.msra.mxu0 %v4213
    %4291 = vmatprep.subr.mxu0 0.0
    %4292 = vmatpush2.msra.mxu0 %v4212
    %4293 = vmatprep.subr.mxu0 0.0
    %4294 = vmatpush2.msra.mxu0 %v4211
    %4295 = vmatprep.subr.mxu0 0.0
    %4296 = vmatpush2.msra.mxu0 %v4210
    %4297 = vmatprep.mubr.f32.mxu0 %v4191
    %4298 = vmatmul.mubr.f32.gmra.mxu0 %v4190
    %v4299 = vpop.f32.mrf.mxu0
    %v4300 = vadd.f32 %v4231, %v4299
    %v4301 = vpop.f32.mrf.mxu0
    %4302 = vmatprep.mubr.f32.mxu0 %v4193
    %4303 = vmatmul.mubr.f32.gmra.mxu0 %v4192
    %v4304 = vpop.f32.mrf.mxu0
    %v4305 = vadd.f32 %v4231, %v4304
    %v4306 = vpop.f32.mrf.mxu0
    %4307 = vdwg.mxu0
    %4308 = vst.msk [vmem:[#allocation2] sm:$0xff] %vm1477, %v4300
    %4309 = vst.msk [vmem:[#allocation2 + $0x8] sm:$0xff] %vm1477, %v4305
    // Predicated region
    $region110: #{observation_encoder.1} parent=1 // pred_check
      _
    $region111: #{observation_encoder.1} parent=1 // pred_check_branch
      %4311 = sbr.rel (0) target = $region113
    $region112: #{observation_encoder.1} parent=1 // pred_region
      %s4313 = ssub.s32 256, 256
      %4314 = vsyncadd [#allocation3], %s4313
      %s4315 = sshll.u32 [#allocation2], 4
      %s4316 = int_to_ptr.vmem [resolvable:$true] %s4315
      %4321 = dma.vmem_to_hbm [thread:$0]  %s4316, 256, %s27, [#allocation3], 128, 128, 8
    $region113: #{observation_encoder.1} parent=1 // pred_fallthru
      _
    // Predicated region
    $region114: #{observation_encoder.1} parent=1 // pred_check
      _
    $region115: #{observation_encoder.1} parent=1 // pred_check_branch
      %4323 = sbr.rel (0) target = $region117
    $region116: #{observation_encoder.1} parent=1 // pred_region
      %4324 = dma.done [#allocation3], 256
    $region117: #{observation_encoder.1} parent=1 // pred_fallthru
      _
    %4325 = vsyncpa [#allocation3], 1

</llo_original>
